<compile_context>
chip_gen: v5e
topology: v5e:2x2
jax: 0.10.0
libtpu: 0.0.40
codegen_flags: <defaults>
</compile_context>

<pallas_src>
from functools import partial

import jax
import jax.numpy as jnp
from jax.experimental import pallas as pl
from jax.experimental.pallas import tpu as pltpu


def lstm_last_kernel(xemb_ref, wih_ref, whh_ref, b_ref, out_ref,
                     h_scr, c_scr, xg_scr, *,
                     t_blk, t_last, b_pad, hd_pad, n_blk):
    """One grid step of the pipelined LSTM.

    xemb_ref: (t_blk*b_pad, ED)      time-major embedded tokens, block min(s, n_blk-1)
    wih_ref:  (ED, 4*hd_pad)         input->gates weights (gate-major, lane-padded)
    whh_ref:  (hd_pad, 4*hd_pad)     hidden->gates weights (gate-major, lane-padded)
    b_ref:    (1, 4*hd_pad)          b_ih + b_hh (f32)
    out_ref:  (b_pad, hd_pad)        h at the final timestep (written on last step)
    h_scr, c_scr: (b_pad, hd_pad)    f32 hidden / cell state carried across steps
    xg_scr:   (2, t_blk*b_pad, 4*hd_pad)  f32 double buffer of precomputed x-gates
    """
    s = pl.program_id(0)
    slot = s % 2          # buffer written by this step's projection
    prev = 1 - slot       # buffer holding the previous block's gates

    def project():
        # One large, MXU-friendly matmul for the whole incoming time block;
        # bias folded in once. Inputs may be bf16; accumulation is f32.
        xg_scr[slot] = (
            jnp.dot(xemb_ref[...], wih_ref[...],
                    preferred_element_type=jnp.float32)
            + b_ref[...]
        )

    def recur(n_steps, write_out):
        # TODO(synk): matmul_push_rhs(W_hh) once per block, reuse across steps.
        h = h_scr[...]
        c = c_scr[...]
        for t in range(n_steps):  # static unroll; h/c stay in vregs
            g = xg_scr[prev, t * b_pad:(t + 1) * b_pad, :] + jnp.dot(
                h.astype(whh_ref.dtype), whh_ref[...],
                preferred_element_type=jnp.float32)
            i_g = jax.nn.sigmoid(g[:, 0 * hd_pad:1 * hd_pad])
            f_g = jax.nn.sigmoid(g[:, 1 * hd_pad:2 * hd_pad])
            g_g = jnp.tanh(g[:, 2 * hd_pad:3 * hd_pad])
            o_g = jax.nn.sigmoid(g[:, 3 * hd_pad:4 * hd_pad])
            c = f_g * c + i_g * g_g
            h = o_g * jnp.tanh(c)
        h_scr[...] = h
        c_scr[...] = c
        if write_out:
            out_ref[...] = h.astype(out_ref.dtype)

    @pl.when(s == 0)
    def _prologue():
        h_scr[...] = jnp.zeros_like(h_scr)
        c_scr[...] = jnp.zeros_like(c_scr)
        project()                     # prime block 0's gates

    @pl.when(jnp.logical_and(s >= 1, s < n_blk))
    def _steady():
        # Recurrence (serial path) first, projection of the incoming block second:
        # the projection reads only xemb/wih and writes the *other* xg slot, so its
        # MXU work can fill the recurrence's idle matmul slots.
        recur(t_blk, write_out=False)
        project()

    @pl.when(s == n_blk)
    def _epilogue():
        recur(t_last, write_out=True)   # ragged last block: only valid timesteps


def _round_up(x, m):
    return (x + m - 1) // m * m


def code_encoder_forward(tokens, embed_table, w_ih, w_hh, b_ih, b_hh, *,
                         t_blk=16, compute_dtype=jnp.float32):
    """tokens: (B, T) int32. Returns (B, HD) f32 == LSTM output at the last timestep."""
    B, T = tokens.shape
    ED = embed_table.shape[1]
    HD = w_hh.shape[1]

    itemsize = jnp.dtype(compute_dtype).itemsize
    sub = max(8, 32 // itemsize)          # sublane multiple (8 for f32, 16 for bf16)
    b_pad = _round_up(B, sub)
    hd_pad = _round_up(HD, 128)           # lane multiple -> lane-aligned gate slices
    g_pad = 4 * hd_pad
    t_blk = max(1, min(t_blk, T))
    n_blk = pl.cdiv(T, t_blk)
    t_pad = n_blk * t_blk
    t_last = T - (n_blk - 1) * t_blk      # valid timesteps in the (ragged) last block

    # Embedding gather directly in time-major order (padding_idx=0 handled by the
    # zeroed row 0 of the table); emitted in compute_dtype so the kernel's only
    # streamed operand is half-width under bf16.
    emb_tm = jnp.take(embed_table, tokens.T, axis=0)                     # (T, B, ED)
    emb_tm = jnp.pad(emb_tm, ((0, t_pad - T), (0, b_pad - B), (0, 0)))
    x_flat = emb_tm.reshape(t_pad * b_pad, ED).astype(compute_dtype)

    def gate_pack(w):
        # (4*HD, in_dim) [i,f,g,o] -> (in_dim, 4*hd_pad) gate-major, lane-padded gates.
        w4 = w.reshape(4, HD, w.shape[-1])
        w4 = jnp.pad(w4, ((0, 0), (0, hd_pad - HD), (0, 0)))
        return jnp.transpose(w4, (2, 0, 1)).reshape(w.shape[-1], g_pad)

    wih_t = gate_pack(w_ih).astype(compute_dtype)                              # (ED, g_pad)
    whh_t = jnp.pad(gate_pack(w_hh), ((0, hd_pad - HD), (0, 0)))               # (hd_pad, g_pad)
    whh_t = whh_t.astype(compute_dtype)
    bias = jnp.pad((b_ih + b_hh).reshape(4, HD), ((0, 0), (0, hd_pad - HD)))
    bias = bias.reshape(1, g_pad).astype(jnp.float32)    # bias stays f32 (post-accum add)

    kernel = partial(lstm_last_kernel, t_blk=t_blk, t_last=t_last,
                     b_pad=b_pad, hd_pad=hd_pad, n_blk=n_blk)

    def build(single_buffer_weights):
        const_kw = dict(pipeline_mode=pl.Buffered(1)) if single_buffer_weights else {}
        wbuf = 1 if single_buffer_weights else 2
        vmem_bytes = (
            2 * t_blk * b_pad * ED * itemsize            # streamed x blocks (2 bufs)
            + wbuf * (ED + hd_pad) * g_pad * itemsize    # resident weights
            + wbuf * g_pad * 4                           # bias (f32)
            + 2 * t_blk * b_pad * g_pad * 4              # xg double buffer
            + 4 * b_pad * hd_pad * 4                     # h, c, out
        )
        vmem_limit = min(max(int(1.5 * vmem_bytes) + (2 << 20), 32 << 20), 64 << 20)
        return pl.pallas_call(
            kernel,
            out_shape=jax.ShapeDtypeStruct((b_pad, hd_pad), jnp.float32),
            grid=(n_blk + 1,),
            in_specs=[
                # Activations stream in one time block ahead of the recurrence
                # (auto double-buffered; index clamped on the final epilogue step).
                pl.BlockSpec((t_blk * b_pad, ED),
                             lambda s: (jnp.minimum(s, n_blk - 1), 0)),
                # Weights / bias: constant index -> DMAed once, kept resident,
                # single-buffered so realistic-size weights don't double in VMEM.
                pl.BlockSpec((ED, g_pad), lambda s: (0, 0), **const_kw),
                pl.BlockSpec((hd_pad, g_pad), lambda s: (0, 0), **const_kw),
                pl.BlockSpec((1, g_pad), lambda s: (0, 0), **const_kw),
            ],
            out_specs=pl.BlockSpec((b_pad, hd_pad), lambda s: (0, 0)),
            scratch_shapes=[
                pltpu.VMEM((b_pad, hd_pad), jnp.float32),              # h
                pltpu.VMEM((b_pad, hd_pad), jnp.float32),              # c
                pltpu.VMEM((2, t_blk * b_pad, g_pad), jnp.float32),    # xg double buffer
            ],
            compiler_params=pltpu.CompilerParams(
                dimension_semantics=("arbitrary",),   # time recurrence is sequential
                vmem_limit_bytes=vmem_limit,
            ),
        )

    try:
        out_pad = jax.block_until_ready(build(True)(x_flat, wih_t, whh_t, bias))
    except Exception:
        # Fallback if this Pallas build rejects single-buffered (Buffered(1)) specs.
        out_pad = build(False)(x_flat, wih_t, whh_t, bias)

    return out_pad[:B, :HD]


def _reference_forward(tokens, embed_table, w_ih, w_hh, b_ih, b_hh):
    """Pure-JAX reference matching torch.nn.LSTM(batch_first=True) last-step output."""
    B, T = tokens.shape
    HD = w_hh.shape[1]
    emb = jnp.take(embed_table, tokens, axis=0)            # (B, T, ED)
    h = jnp.zeros((B, HD), jnp.float32)
    c = jnp.zeros((B, HD), jnp.float32)
    for t in range(T):
        gates = emb[:, t, :] @ w_ih.T + h @ w_hh.T + b_ih + b_hh
        i_g = jax.nn.sigmoid(gates[:, 0 * HD:1 * HD])
        f_g = jax.nn.sigmoid(gates[:, 1 * HD:2 * HD])
        g_g = jnp.tanh(gates[:, 2 * HD:3 * HD])
        o_g = jax.nn.sigmoid(gates[:, 3 * HD:4 * HD])
        c = f_g * c + i_g * g_g
        h = o_g * jnp.tanh(c)
    return h


if __name__ == "__main__":
    # Small deterministic setup: vocab=50, embed_dim=64, hidden=64, batch=2, seq=8.
    VS, ED, HD = 50, 64, 64
    B, T = 2, 8

    key = jax.random.PRNGKey(0)
    k_emb, k_wih, k_whh, k_bih, k_bhh, k_tok = jax.random.split(key, 6)

    embed_table = jax.random.normal(k_emb, (VS, ED), jnp.float32) * 0.1
    embed_table = embed_table.at[0].set(0.0)               # padding_idx=0

    w_ih = jax.random.normal(k_wih, (4 * HD, ED), jnp.float32) * 0.1
    w_hh = jax.random.normal(k_whh, (4 * HD, HD), jnp.float32) * 0.1
    b_ih = jax.random.normal(k_bih, (4 * HD,), jnp.float32) * 0.1
    b_hh = jax.random.normal(k_bhh, (4 * HD,), jnp.float32) * 0.1

    tokens = jax.random.randint(k_tok, (B, T), 0, VS, jnp.int32)

    ref = _reference_forward(tokens, embed_table, w_ih, w_hh, b_ih, b_hh)

    # 1) f32 path, evenly-divided time blocks (2 recurrence blocks + 1 pipeline step).
    out = code_encoder_forward(tokens, embed_table, w_ih, w_hh, b_ih, b_hh, t_blk=4)
    out = jax.block_until_ready(out)
    assert out.shape == (B, HD)
    assert jnp.allclose(out, ref, atol=1e-5, rtol=1e-5), "f32 kernel/reference mismatch"

    # 2) f32 path, ragged last block (T=8, t_blk=3 -> last block has 2 valid steps).
    out_rag = code_encoder_forward(tokens, embed_table, w_ih, w_hh, b_ih, b_hh, t_blk=3)
    out_rag = jax.block_until_ready(out_rag)
    assert jnp.allclose(out_rag, ref, atol=1e-5, rtol=1e-5), "ragged-block mismatch"

    # 3) bf16 MXU path (f32 accumulation, f32 elementwise) -> looser tolerance.
    out_bf = code_encoder_forward(tokens, embed_table, w_ih, w_hh, b_ih, b_hh,
                                  t_blk=4, compute_dtype=jnp.bfloat16)
    out_bf = jax.block_until_ready(out_bf)
    assert jnp.allclose(out_bf, ref, atol=2e-2, rtol=2e-2), "bf16 kernel/reference mismatch"

    print("KERNEL_OK")
</pallas_src>

<mosaic_0001>
module attributes {stable_mosaic.version = 11 : i64} {
  func.func @lstm_last_kernel(%arg0: i32, %arg1: memref<32x64xf32, #tpu.memory_space<vmem>>, %arg2: memref<64x512xf32, #tpu.memory_space<vmem>>, %arg3: memref<128x512xf32, #tpu.memory_space<vmem>>, %arg4: memref<1x512xf32, #tpu.memory_space<vmem>>, %arg5: memref<8x128xf32, #tpu.memory_space<vmem>>, %arg6: memref<8x128xf32, #tpu.memory_space<vmem>>, %arg7: memref<8x128xf32, #tpu.memory_space<vmem>>, %arg8: memref<2x32x512xf32, #tpu.memory_space<vmem>>) attributes {dimension_semantics = [#tpu.dimension_semantics<arbitrary>], iteration_bounds = array<i64: 3>, scalar_prefetch = 0 : i64, scratch_operands = 3 : i64, tpu.core_type = #tpu.core_type<tc>, window_params = [{transform_indices = @transform_0, window_bounds = array<i64: 32, 64>}, {pipeline_mode = #tpu.pipeline_mode<synchronous>, transform_indices = @transform_1, window_bounds = array<i64: 64, 512>}, {pipeline_mode = #tpu.pipeline_mode<synchronous>, transform_indices = @transform_2, window_bounds = array<i64: 128, 512>}, {pipeline_mode = #tpu.pipeline_mode<synchronous>, transform_indices = @transform_3, window_bounds = array<i64: 1, 512>}, {pipeline_mode = #tpu.pipeline_mode<synchronous>, transform_indices = @transform_4, window_bounds = array<i64: 8, 128>}]} {
    %c2_i32 = arith.constant 2 : i32
    %c0_i32 = arith.constant 0 : i32
    %0 = arith.cmpi eq, %c2_i32, %c0_i32 : i32
    %c1_i32 = arith.constant 1 : i32
    %1 = arith.select %0, %c1_i32, %c2_i32 : i32
    %2 = arith.remsi %arg0, %1 : i32
    %c0_i32_0 = arith.constant 0 : i32
    %3 = arith.cmpi ne, %2, %c0_i32_0 : i32
    %c0_i32_1 = arith.constant 0 : i32
    %4 = arith.cmpi slt, %2, %c0_i32_1 : i32
    %c0_i32_2 = arith.constant 0 : i32
    %5 = arith.cmpi slt, %1, %c0_i32_2 : i32
    %6 = arith.xori %4, %5 : i1
    %7 = arith.andi %6, %3 : i1
    %8 = arith.addi %2, %1 : i32
    %9 = arith.select %7, %8, %2 : i32
    %c1_i32_3 = arith.constant 1 : i32
    %10 = arith.subi %c1_i32_3, %9 : i32
    %c0_i32_4 = arith.constant 0 : i32
    %11 = arith.cmpi eq, %arg0, %c0_i32_4 : i32
    %12 = arith.extui %11 : i1 to i32
    %c0_i32_5 = arith.constant 0 : i32
    %13 = arith.cmpi ne, %12, %c0_i32_5 : i32
    scf.if %13 {
      %cst = arith.constant 0.000000e+00 : f32
      %22 = vector.broadcast %cst : f32 to vector<8x128xf32>
      %c0 = arith.constant 0 : index
      %c0_11 = arith.constant 0 : index
      %23 = vector.load %arg6[%c0, %c0_11] : memref<8x128xf32, #tpu.memory_space<vmem>>, vector<8x128xf32>
      tpu.vector_store %arg6[%c0, %c0_11], %22 {strides = array<i32>} : memref<8x128xf32, #tpu.memory_space<vmem>>, vector<8x128xf32>,
      %cst_12 = arith.constant 0.000000e+00 : f32
      %24 = vector.broadcast %cst_12 : f32 to vector<8x128xf32>
      %c0_13 = arith.constant 0 : index
      %c0_14 = arith.constant 0 : index
      %25 = vector.load %arg7[%c0_13, %c0_14] : memref<8x128xf32, #tpu.memory_space<vmem>>, vector<8x128xf32>
      tpu.vector_store %arg7[%c0_13, %c0_14], %24 {strides = array<i32>} : memref<8x128xf32, #tpu.memory_space<vmem>>, vector<8x128xf32>,
      %c0_15 = arith.constant 0 : index
      %c0_16 = arith.constant 0 : index
      %26 = vector.load %arg1[%c0_15, %c0_16] : memref<32x64xf32, #tpu.memory_space<vmem>>, vector<32x64xf32>
      %c0_17 = arith.constant 0 : index
      %c0_18 = arith.constant 0 : index
      %27 = vector.load %arg2[%c0_17, %c0_18] : memref<64x512xf32, #tpu.memory_space<vmem>>, vector<64x512xf32>
      %cst_19 = arith.constant dense<0.000000e+00> : vector<32x512xf32>
      %28 = tpu.matmul %26, %27, %cst_19 {dimension_numbers = #tpu.dot_dimension_numbers<[1], [0], [0], [1], [0, 0, 1, 1], [], []>} : vector<32x64xf32>, vector<64x512xf32>, vector<32x512xf32> -> vector<32x512xf32>
      %c0_20 = arith.constant 0 : index
      %c0_21 = arith.constant 0 : index
      %29 = vector.load %arg4[%c0_20, %c0_21] : memref<1x512xf32, #tpu.memory_space<vmem>>, vector<1x512xf32>
      %30 = vector.broadcast %29 : vector<1x512xf32> to vector<32x512xf32>
      %31 = arith.addf %28, %30 : vector<32x512xf32>
      %32 = arith.index_cast %9 : i32 to index
      %c0_22 = arith.constant 0 : index
      %c0_23 = arith.constant 0 : index
      %33 = vector.load %arg8[%32, %c0_22, %c0_23] : memref<2x32x512xf32, #tpu.memory_space<vmem>>, vector<1x32x512xf32>
      %34 = vector.shape_cast %33 : vector<1x32x512xf32> to vector<32x512xf32>
      %35 = vector.shape_cast %31 : vector<32x512xf32> to vector<1x32x512xf32>
      tpu.vector_store %arg8[%32, %c0_22, %c0_23], %35 {strides = array<i32>} : memref<2x32x512xf32, #tpu.memory_space<vmem>>, vector<1x32x512xf32>,
    } else {
    }
    %c1_i32_6 = arith.constant 1 : i32
    %14 = arith.cmpi sge, %arg0, %c1_i32_6 : i32
    %c2_i32_7 = arith.constant 2 : i32
    %15 = arith.cmpi slt, %arg0, %c2_i32_7 : i32
    %16 = arith.andi %14, %15 : i1
    %17 = arith.extui %16 : i1 to i32
    %c0_i32_8 = arith.constant 0 : i32
    %18 = arith.cmpi ne, %17, %c0_i32_8 : i32
    scf.if %18 {
      %c0 = arith.constant 0 : index
      %c0_11 = arith.constant 0 : index
      %22 = vector.load %arg6[%c0, %c0_11] : memref<8x128xf32, #tpu.memory_space<vmem>>, vector<8x128xf32>
      %c0_12 = arith.constant 0 : index
      %c0_13 = arith.constant 0 : index
      %23 = vector.load %arg7[%c0_12, %c0_13] : memref<8x128xf32, #tpu.memory_space<vmem>>, vector<8x128xf32>
      %24 = arith.index_cast %10 : i32 to index
      %c0_14 = arith.constant 0 : index
      %c0_15 = arith.constant 0 : index
      %25 = vector.load %arg8[%24, %c0_14, %c0_15] : memref<2x32x512xf32, #tpu.memory_space<vmem>>, vector<1x8x512xf32>
      %26 = vector.shape_cast %25 : vector<1x8x512xf32> to vector<8x512xf32>
      %c0_16 = arith.constant 0 : index
      %c0_17 = arith.constant 0 : index
      %27 = vector.load %arg3[%c0_16, %c0_17] : memref<128x512xf32, #tpu.memory_space<vmem>>, vector<128x512xf32>
      %cst = arith.constant dense<0.000000e+00> : vector<8x512xf32>
      %28 = tpu.matmul %22, %27, %cst {dimension_numbers = #tpu.dot_dimension_numbers<[1], [0], [0], [1], [0, 0, 1, 1], [], []>} : vector<8x128xf32>, vector<128x512xf32>, vector<8x512xf32> -> vector<8x512xf32>
      %29 = arith.addf %26, %28 : vector<8x512xf32>
      %30 = vector.extract_strided_slice %29 {offsets = [0, 0], sizes = [8, 128], strides = [1, 1]} : vector<8x512xf32> to vector<8x128xf32>
      %31 = arith.negf %30 : vector<8x128xf32>
      %32 = math.exp %31 : vector<8x128xf32>
      %cst_18 = arith.constant 1.000000e+00 : f32
      %33 = vector.broadcast %cst_18 : f32 to vector<8x128xf32>
      %34 = arith.addf %33, %32 : vector<8x128xf32>
      %35 = arith.divf %33, %34 : vector<8x128xf32>
      %36 = vector.extract_strided_slice %29 {offsets = [0, 128], sizes = [8, 128], strides = [1, 1]} : vector<8x512xf32> to vector<8x128xf32>
      %37 = arith.negf %36 : vector<8x128xf32>
      %38 = math.exp %37 : vector<8x128xf32>
      %cst_19 = arith.constant 1.000000e+00 : f32
      %39 = vector.broadcast %cst_19 : f32 to vector<8x128xf32>
      %40 = arith.addf %39, %38 : vector<8x128xf32>
      %41 = arith.divf %39, %40 : vector<8x128xf32>
      %42 = vector.extract_strided_slice %29 {offsets = [0, 256], sizes = [8, 128], strides = [1, 1]} : vector<8x512xf32> to vector<8x128xf32>
      %43 = math.tanh %42 : vector<8x128xf32>
      %44 = vector.extract_strided_slice %29 {offsets = [0, 384], sizes = [8, 128], strides = [1, 1]} : vector<8x512xf32> to vector<8x128xf32>
      %45 = arith.negf %44 : vector<8x128xf32>
      %46 = math.exp %45 : vector<8x128xf32>
      %cst_20 = arith.constant 1.000000e+00 : f32
      %47 = vector.broadcast %cst_20 : f32 to vector<8x128xf32>
      %48 = arith.addf %47, %46 : vector<8x128xf32>
      %49 = arith.divf %47, %48 : vector<8x128xf32>
      %50 = arith.mulf %41, %23 : vector<8x128xf32>
      %51 = arith.mulf %35, %43 : vector<8x128xf32>
      %52 = arith.addf %50, %51 : vector<8x128xf32>
      %53 = math.tanh %52 : vector<8x128xf32>
      %54 = arith.mulf %49, %53 : vector<8x128xf32>
      %55 = arith.index_cast %10 : i32 to index
      %c8 = arith.constant 8 : index
      %c0_21 = arith.constant 0 : index
      %56 = vector.load %arg8[%55, %c8, %c0_21] : memref<2x32x512xf32, #tpu.memory_space<vmem>>, vector<1x8x512xf32>
      %57 = vector.shape_cast %56 : vector<1x8x512xf32> to vector<8x512xf32>
      %c0_22 = arith.constant 0 : index
      %c0_23 = arith.constant 0 : index
      %58 = vector.load %arg3[%c0_22, %c0_23] : memref<128x512xf32, #tpu.memory_space<vmem>>, vector<128x512xf32>
      %cst_24 = arith.constant dense<0.000000e+00> : vector<8x512xf32>
      %59 = tpu.matmul %54, %58, %cst_24 {dimension_numbers = #tpu.dot_dimension_numbers<[1], [0], [0], [1], [0, 0, 1, 1], [], []>} : vector<8x128xf32>, vector<128x512xf32>, vector<8x512xf32> -> vector<8x512xf32>
      %60 = arith.addf %57, %59 : vector<8x512xf32>
      %61 = vector.extract_strided_slice %60 {offsets = [0, 0], sizes = [8, 128], strides = [1, 1]} : vector<8x512xf32> to vector<8x128xf32>
      %62 = arith.negf %61 : vector<8x128xf32>
      %63 = math.exp %62 : vector<8x128xf32>
      %cst_25 = arith.constant 1.000000e+00 : f32
      %64 = vector.broadcast %cst_25 : f32 to vector<8x128xf32>
      %65 = arith.addf %64, %63 : vector<8x128xf32>
      %66 = arith.divf %64, %65 : vector<8x128xf32>
      %67 = vector.extract_strided_slice %60 {offsets = [0, 128], sizes = [8, 128], strides = [1, 1]} : vector<8x512xf32> to vector<8x128xf32>
      %68 = arith.negf %67 : vector<8x128xf32>
      %69 = math.exp %68 : vector<8x128xf32>
      %cst_26 = arith.constant 1.000000e+00 : f32
      %70 = vector.broadcast %cst_26 : f32 to vector<8x128xf32>
      %71 = arith.addf %70, %69 : vector<8x128xf32>
      %72 = arith.divf %70, %71 : vector<8x128xf32>
      %73 = vector.extract_strided_slice %60 {offsets = [0, 256], sizes = [8, 128], strides = [1, 1]} : vector<8x512xf32> to vector<8x128xf32>
      %74 = math.tanh %73 : vector<8x128xf32>
      %75 = vector.extract_strided_slice %60 {offsets = [0, 384], sizes = [8, 128], strides = [1, 1]} : vector<8x512xf32> to vector<8x128xf32>
      %76 = arith.negf %75 : vector<8x128xf32>
      %77 = math.exp %76 : vector<8x128xf32>
      %cst_27 = arith.constant 1.000000e+00 : f32
      %78 = vector.broadcast %cst_27 : f32 to vector<8x128xf32>
      %79 = arith.addf %78, %77 : vector<8x128xf32>
      %80 = arith.divf %78, %79 : vector<8x128xf32>
      %81 = arith.mulf %72, %52 : vector<8x128xf32>
      %82 = arith.mulf %66, %74 : vector<8x128xf32>
      %83 = arith.addf %81, %82 : vector<8x128xf32>
      %84 = math.tanh %83 : vector<8x128xf32>
      %85 = arith.mulf %80, %84 : vector<8x128xf32>
      %86 = arith.index_cast %10 : i32 to index
      %c16 = arith.constant 16 : index
      %c0_28 = arith.constant 0 : index
      %87 = vector.load %arg8[%86, %c16, %c0_28] : memref<2x32x512xf32, #tpu.memory_space<vmem>>, vector<1x8x512xf32>
      %88 = vector.shape_cast %87 : vector<1x8x512xf32> to vector<8x512xf32>
      %c0_29 = arith.constant 0 : index
      %c0_30 = arith.constant 0 : index
      %89 = vector.load %arg3[%c0_29, %c0_30] : memref<128x512xf32, #tpu.memory_space<vmem>>, vector<128x512xf32>
      %cst_31 = arith.constant dense<0.000000e+00> : vector<8x512xf32>
      %90 = tpu.matmul %85, %89, %cst_31 {dimension_numbers = #tpu.dot_dimension_numbers<[1], [0], [0], [1], [0, 0, 1, 1], [], []>} : vector<8x128xf32>, vector<128x512xf32>, vector<8x512xf32> -> vector<8x512xf32>
      %91 = arith.addf %88, %90 : vector<8x512xf32>
      %92 = vector.extract_strided_slice %91 {offsets = [0, 0], sizes = [8, 128], strides = [1, 1]} : vector<8x512xf32> to vector<8x128xf32>
      %93 = arith.negf %92 : vector<8x128xf32>
      %94 = math.exp %93 : vector<8x128xf32>
      %cst_32 = arith.constant 1.000000e+00 : f32
      %95 = vector.broadcast %cst_32 : f32 to vector<8x128xf32>
      %96 = arith.addf %95, %94 : vector<8x128xf32>
      %97 = arith.divf %95, %96 : vector<8x128xf32>
      %98 = vector.extract_strided_slice %91 {offsets = [0, 128], sizes = [8, 128], strides = [1, 1]} : vector<8x512xf32> to vector<8x128xf32>
      %99 = arith.negf %98 : vector<8x128xf32>
      %100 = math.exp %99 : vector<8x128xf32>
      %cst_33 = arith.constant 1.000000e+00 : f32
      %101 = vector.broadcast %cst_33 : f32 to vector<8x128xf32>
      %102 = arith.addf %101, %100 : vector<8x128xf32>
      %103 = arith.divf %101, %102 : vector<8x128xf32>
      %104 = vector.extract_strided_slice %91 {offsets = [0, 256], sizes = [8, 128], strides = [1, 1]} : vector<8x512xf32> to vector<8x128xf32>
      %105 = math.tanh %104 : vector<8x128xf32>
      %106 = vector.extract_strided_slice %91 {offsets = [0, 384], sizes = [8, 128], strides = [1, 1]} : vector<8x512xf32> to vector<8x128xf32>
      %107 = arith.negf %106 : vector<8x128xf32>
      %108 = math.exp %107 : vector<8x128xf32>
      %cst_34 = arith.constant 1.000000e+00 : f32
      %109 = vector.broadcast %cst_34 : f32 to vector<8x128xf32>
      %110 = arith.addf %109, %108 : vector<8x128xf32>
      %111 = arith.divf %109, %110 : vector<8x128xf32>
      %112 = arith.mulf %103, %83 : vector<8x128xf32>
      %113 = arith.mulf %97, %105 : vector<8x128xf32>
      %114 = arith.addf %112, %113 : vector<8x128xf32>
      %115 = math.tanh %114 : vector<8x128xf32>
      %116 = arith.mulf %111, %115 : vector<8x128xf32>
      %117 = arith.index_cast %10 : i32 to index
      %c24 = arith.constant 24 : index
      %c0_35 = arith.constant 0 : index
      %118 = vector.load %arg8[%117, %c24, %c0_35] : memref<2x32x512xf32, #tpu.memory_space<vmem>>, vector<1x8x512xf32>
      %119 = vector.shape_cast %118 : vector<1x8x512xf32> to vector<8x512xf32>
      %c0_36 = arith.constant 0 : index
      %c0_37 = arith.constant 0 : index
      %120 = vector.load %arg3[%c0_36, %c0_37] : memref<128x512xf32, #tpu.memory_space<vmem>>, vector<128x512xf32>
      %cst_38 = arith.constant dense<0.000000e+00> : vector<8x512xf32>
      %121 = tpu.matmul %116, %120, %cst_38 {dimension_numbers = #tpu.dot_dimension_numbers<[1], [0], [0], [1], [0, 0, 1, 1], [], []>} : vector<8x128xf32>, vector<128x512xf32>, vector<8x512xf32> -> vector<8x512xf32>
      %122 = arith.addf %119, %121 : vector<8x512xf32>
      %123 = vector.extract_strided_slice %122 {offsets = [0, 0], sizes = [8, 128], strides = [1, 1]} : vector<8x512xf32> to vector<8x128xf32>
      %124 = arith.negf %123 : vector<8x128xf32>
      %125 = math.exp %124 : vector<8x128xf32>
      %cst_39 = arith.constant 1.000000e+00 : f32
      %126 = vector.broadcast %cst_39 : f32 to vector<8x128xf32>
      %127 = arith.addf %126, %125 : vector<8x128xf32>
      %128 = arith.divf %126, %127 : vector<8x128xf32>
      %129 = vector.extract_strided_slice %122 {offsets = [0, 128], sizes = [8, 128], strides = [1, 1]} : vector<8x512xf32> to vector<8x128xf32>
      %130 = arith.negf %129 : vector<8x128xf32>
      %131 = math.exp %130 : vector<8x128xf32>
      %cst_40 = arith.constant 1.000000e+00 : f32
      %132 = vector.broadcast %cst_40 : f32 to vector<8x128xf32>
      %133 = arith.addf %132, %131 : vector<8x128xf32>
      %134 = arith.divf %132, %133 : vector<8x128xf32>
      %135 = vector.extract_strided_slice %122 {offsets = [0, 256], sizes = [8, 128], strides = [1, 1]} : vector<8x512xf32> to vector<8x128xf32>
      %136 = math.tanh %135 : vector<8x128xf32>
      %137 = vector.extract_strided_slice %122 {offsets = [0, 384], sizes = [8, 128], strides = [1, 1]} : vector<8x512xf32> to vector<8x128xf32>
      %138 = arith.negf %137 : vector<8x128xf32>
      %139 = math.exp %138 : vector<8x128xf32>
      %cst_41 = arith.constant 1.000000e+00 : f32
      %140 = vector.broadcast %cst_41 : f32 to vector<8x128xf32>
      %141 = arith.addf %140, %139 : vector<8x128xf32>
      %142 = arith.divf %140, %141 : vector<8x128xf32>
      %143 = arith.mulf %134, %114 : vector<8x128xf32>
      %144 = arith.mulf %128, %136 : vector<8x128xf32>
      %145 = arith.addf %143, %144 : vector<8x128xf32>
      %146 = math.tanh %145 : vector<8x128xf32>
      %147 = arith.mulf %142, %146 : vector<8x128xf32>
      %c0_42 = arith.constant 0 : index
      %c0_43 = arith.constant 0 : index
      %148 = vector.load %arg6[%c0_42, %c0_43] : memref<8x128xf32, #tpu.memory_space<vmem>>, vector<8x128xf32>
      tpu.vector_store %arg6[%c0_42, %c0_43], %147 {strides = array<i32>} : memref<8x128xf32, #tpu.memory_space<vmem>>, vector<8x128xf32>,
      %c0_44 = arith.constant 0 : index
      %c0_45 = arith.constant 0 : index
      %149 = vector.load %arg7[%c0_44, %c0_45] : memref<8x128xf32, #tpu.memory_space<vmem>>, vector<8x128xf32>
      tpu.vector_store %arg7[%c0_44, %c0_45], %145 {strides = array<i32>} : memref<8x128xf32, #tpu.memory_space<vmem>>, vector<8x128xf32>,
      %c0_46 = arith.constant 0 : index
      %c0_47 = arith.constant 0 : index
      %150 = vector.load %arg1[%c0_46, %c0_47] : memref<32x64xf32, #tpu.memory_space<vmem>>, vector<32x64xf32>
      %c0_48 = arith.constant 0 : index
      %c0_49 = arith.constant 0 : index
      %151 = vector.load %arg2[%c0_48, %c0_49] : memref<64x512xf32, #tpu.memory_space<vmem>>, vector<64x512xf32>
      %cst_50 = arith.constant dense<0.000000e+00> : vector<32x512xf32>
      %152 = tpu.matmul %150, %151, %cst_50 {dimension_numbers = #tpu.dot_dimension_numbers<[1], [0], [0], [1], [0, 0, 1, 1], [], []>} : vector<32x64xf32>, vector<64x512xf32>, vector<32x512xf32> -> vector<32x512xf32>
      %c0_51 = arith.constant 0 : index
      %c0_52 = arith.constant 0 : index
      %153 = vector.load %arg4[%c0_51, %c0_52] : memref<1x512xf32, #tpu.memory_space<vmem>>, vector<1x512xf32>
      %154 = vector.broadcast %153 : vector<1x512xf32> to vector<32x512xf32>
      %155 = arith.addf %152, %154 : vector<32x512xf32>
      %156 = arith.index_cast %9 : i32 to index
      %c0_53 = arith.constant 0 : index
      %c0_54 = arith.constant 0 : index
      %157 = vector.load %arg8[%156, %c0_53, %c0_54] : memref<2x32x512xf32, #tpu.memory_space<vmem>>, vector<1x32x512xf32>
      %158 = vector.shape_cast %157 : vector<1x32x512xf32> to vector<32x512xf32>
      %159 = vector.shape_cast %155 : vector<32x512xf32> to vector<1x32x512xf32>
      tpu.vector_store %arg8[%156, %c0_53, %c0_54], %159 {strides = array<i32>} : memref<2x32x512xf32, #tpu.memory_space<vmem>>, vector<1x32x512xf32>,
    } else {
    }
    %c2_i32_9 = arith.constant 2 : i32
    %19 = arith.cmpi eq, %arg0, %c2_i32_9 : i32
    %20 = arith.extui %19 : i1 to i32
    %c0_i32_10 = arith.constant 0 : i32
    %21 = arith.cmpi ne, %20, %c0_i32_10 : i32
    scf.if %21 {
      %c0 = arith.constant 0 : index
      %c0_11 = arith.constant 0 : index
      %22 = vector.load %arg6[%c0, %c0_11] : memref<8x128xf32, #tpu.memory_space<vmem>>, vector<8x128xf32>
      %c0_12 = arith.constant 0 : index
      %c0_13 = arith.constant 0 : index
      %23 = vector.load %arg7[%c0_12, %c0_13] : memref<8x128xf32, #tpu.memory_space<vmem>>, vector<8x128xf32>
      %24 = arith.index_cast %10 : i32 to index
      %c0_14 = arith.constant 0 : index
      %c0_15 = arith.constant 0 : index
      %25 = vector.load %arg8[%24, %c0_14, %c0_15] : memref<2x32x512xf32, #tpu.memory_space<vmem>>, vector<1x8x512xf32>
      %26 = vector.shape_cast %25 : vector<1x8x512xf32> to vector<8x512xf32>
      %c0_16 = arith.constant 0 : index
      %c0_17 = arith.constant 0 : index
      %27 = vector.load %arg3[%c0_16, %c0_17] : memref<128x512xf32, #tpu.memory_space<vmem>>, vector<128x512xf32>
      %cst = arith.constant dense<0.000000e+00> : vector<8x512xf32>
      %28 = tpu.matmul %22, %27, %cst {dimension_numbers = #tpu.dot_dimension_numbers<[1], [0], [0], [1], [0, 0, 1, 1], [], []>} : vector<8x128xf32>, vector<128x512xf32>, vector<8x512xf32> -> vector<8x512xf32>
      %29 = arith.addf %26, %28 : vector<8x512xf32>
      %30 = vector.extract_strided_slice %29 {offsets = [0, 0], sizes = [8, 128], strides = [1, 1]} : vector<8x512xf32> to vector<8x128xf32>
      %31 = arith.negf %30 : vector<8x128xf32>
      %32 = math.exp %31 : vector<8x128xf32>
      %cst_18 = arith.constant 1.000000e+00 : f32
      %33 = vector.broadcast %cst_18 : f32 to vector<8x128xf32>
      %34 = arith.addf %33, %32 : vector<8x128xf32>
      %35 = arith.divf %33, %34 : vector<8x128xf32>
      %36 = vector.extract_strided_slice %29 {offsets = [0, 128], sizes = [8, 128], strides = [1, 1]} : vector<8x512xf32> to vector<8x128xf32>
      %37 = arith.negf %36 : vector<8x128xf32>
      %38 = math.exp %37 : vector<8x128xf32>
      %cst_19 = arith.constant 1.000000e+00 : f32
      %39 = vector.broadcast %cst_19 : f32 to vector<8x128xf32>
      %40 = arith.addf %39, %38 : vector<8x128xf32>
      %41 = arith.divf %39, %40 : vector<8x128xf32>
      %42 = vector.extract_strided_slice %29 {offsets = [0, 256], sizes = [8, 128], strides = [1, 1]} : vector<8x512xf32> to vector<8x128xf32>
      %43 = math.tanh %42 : vector<8x128xf32>
      %44 = vector.extract_strided_slice %29 {offsets = [0, 384], sizes = [8, 128], strides = [1, 1]} : vector<8x512xf32> to vector<8x128xf32>
      %45 = arith.negf %44 : vector<8x128xf32>
      %46 = math.exp %45 : vector<8x128xf32>
      %cst_20 = arith.constant 1.000000e+00 : f32
      %47 = vector.broadcast %cst_20 : f32 to vector<8x128xf32>
      %48 = arith.addf %47, %46 : vector<8x128xf32>
      %49 = arith.divf %47, %48 : vector<8x128xf32>
      %50 = arith.mulf %41, %23 : vector<8x128xf32>
      %51 = arith.mulf %35, %43 : vector<8x128xf32>
      %52 = arith.addf %50, %51 : vector<8x128xf32>
      %53 = math.tanh %52 : vector<8x128xf32>
      %54 = arith.mulf %49, %53 : vector<8x128xf32>
      %55 = arith.index_cast %10 : i32 to index
      %c8 = arith.constant 8 : index
      %c0_21 = arith.constant 0 : index
      %56 = vector.load %arg8[%55, %c8, %c0_21] : memref<2x32x512xf32, #tpu.memory_space<vmem>>, vector<1x8x512xf32>
      %57 = vector.shape_cast %56 : vector<1x8x512xf32> to vector<8x512xf32>
      %c0_22 = arith.constant 0 : index
      %c0_23 = arith.constant 0 : index
      %58 = vector.load %arg3[%c0_22, %c0_23] : memref<128x512xf32, #tpu.memory_space<vmem>>, vector<128x512xf32>
      %cst_24 = arith.constant dense<0.000000e+00> : vector<8x512xf32>
      %59 = tpu.matmul %54, %58, %cst_24 {dimension_numbers = #tpu.dot_dimension_numbers<[1], [0], [0], [1], [0, 0, 1, 1], [], []>} : vector<8x128xf32>, vector<128x512xf32>, vector<8x512xf32> -> vector<8x512xf32>
      %60 = arith.addf %57, %59 : vector<8x512xf32>
      %61 = vector.extract_strided_slice %60 {offsets = [0, 0], sizes = [8, 128], strides = [1, 1]} : vector<8x512xf32> to vector<8x128xf32>
      %62 = arith.negf %61 : vector<8x128xf32>
      %63 = math.exp %62 : vector<8x128xf32>
      %cst_25 = arith.constant 1.000000e+00 : f32
      %64 = vector.broadcast %cst_25 : f32 to vector<8x128xf32>
      %65 = arith.addf %64, %63 : vector<8x128xf32>
      %66 = arith.divf %64, %65 : vector<8x128xf32>
      %67 = vector.extract_strided_slice %60 {offsets = [0, 128], sizes = [8, 128], strides = [1, 1]} : vector<8x512xf32> to vector<8x128xf32>
      %68 = arith.negf %67 : vector<8x128xf32>
      %69 = math.exp %68 : vector<8x128xf32>
      %cst_26 = arith.constant 1.000000e+00 : f32
      %70 = vector.broadcast %cst_26 : f32 to vector<8x128xf32>
      %71 = arith.addf %70, %69 : vector<8x128xf32>
      %72 = arith.divf %70, %71 : vector<8x128xf32>
      %73 = vector.extract_strided_slice %60 {offsets = [0, 256], sizes = [8, 128], strides = [1, 1]} : vector<8x512xf32> to vector<8x128xf32>
      %74 = math.tanh %73 : vector<8x128xf32>
      %75 = vector.extract_strided_slice %60 {offsets = [0, 384], sizes = [8, 128], strides = [1, 1]} : vector<8x512xf32> to vector<8x128xf32>
      %76 = arith.negf %75 : vector<8x128xf32>
      %77 = math.exp %76 : vector<8x128xf32>
      %cst_27 = arith.constant 1.000000e+00 : f32
      %78 = vector.broadcast %cst_27 : f32 to vector<8x128xf32>
      %79 = arith.addf %78, %77 : vector<8x128xf32>
      %80 = arith.divf %78, %79 : vector<8x128xf32>
      %81 = arith.mulf %72, %52 : vector<8x128xf32>
      %82 = arith.mulf %66, %74 : vector<8x128xf32>
      %83 = arith.addf %81, %82 : vector<8x128xf32>
      %84 = math.tanh %83 : vector<8x128xf32>
      %85 = arith.mulf %80, %84 : vector<8x128xf32>
      %86 = arith.index_cast %10 : i32 to index
      %c16 = arith.constant 16 : index
      %c0_28 = arith.constant 0 : index
      %87 = vector.load %arg8[%86, %c16, %c0_28] : memref<2x32x512xf32, #tpu.memory_space<vmem>>, vector<1x8x512xf32>
      %88 = vector.shape_cast %87 : vector<1x8x512xf32> to vector<8x512xf32>
      %c0_29 = arith.constant 0 : index
      %c0_30 = arith.constant 0 : index
      %89 = vector.load %arg3[%c0_29, %c0_30] : memref<128x512xf32, #tpu.memory_space<vmem>>, vector<128x512xf32>
      %cst_31 = arith.constant dense<0.000000e+00> : vector<8x512xf32>
      %90 = tpu.matmul %85, %89, %cst_31 {dimension_numbers = #tpu.dot_dimension_numbers<[1], [0], [0], [1], [0, 0, 1, 1], [], []>} : vector<8x128xf32>, vector<128x512xf32>, vector<8x512xf32> -> vector<8x512xf32>
      %91 = arith.addf %88, %90 : vector<8x512xf32>
      %92 = vector.extract_strided_slice %91 {offsets = [0, 0], sizes = [8, 128], strides = [1, 1]} : vector<8x512xf32> to vector<8x128xf32>
      %93 = arith.negf %92 : vector<8x128xf32>
      %94 = math.exp %93 : vector<8x128xf32>
      %cst_32 = arith.constant 1.000000e+00 : f32
      %95 = vector.broadcast %cst_32 : f32 to vector<8x128xf32>
      %96 = arith.addf %95, %94 : vector<8x128xf32>
      %97 = arith.divf %95, %96 : vector<8x128xf32>
      %98 = vector.extract_strided_slice %91 {offsets = [0, 128], sizes = [8, 128], strides = [1, 1]} : vector<8x512xf32> to vector<8x128xf32>
      %99 = arith.negf %98 : vector<8x128xf32>
      %100 = math.exp %99 : vector<8x128xf32>
      %cst_33 = arith.constant 1.000000e+00 : f32
      %101 = vector.broadcast %cst_33 : f32 to vector<8x128xf32>
      %102 = arith.addf %101, %100 : vector<8x128xf32>
      %103 = arith.divf %101, %102 : vector<8x128xf32>
      %104 = vector.extract_strided_slice %91 {offsets = [0, 256], sizes = [8, 128], strides = [1, 1]} : vector<8x512xf32> to vector<8x128xf32>
      %105 = math.tanh %104 : vector<8x128xf32>
      %106 = vector.extract_strided_slice %91 {offsets = [0, 384], sizes = [8, 128], strides = [1, 1]} : vector<8x512xf32> to vector<8x128xf32>
      %107 = arith.negf %106 : vector<8x128xf32>
      %108 = math.exp %107 : vector<8x128xf32>
      %cst_34 = arith.constant 1.000000e+00 : f32
      %109 = vector.broadcast %cst_34 : f32 to vector<8x128xf32>
      %110 = arith.addf %109, %108 : vector<8x128xf32>
      %111 = arith.divf %109, %110 : vector<8x128xf32>
      %112 = arith.mulf %103, %83 : vector<8x128xf32>
      %113 = arith.mulf %97, %105 : vector<8x128xf32>
      %114 = arith.addf %112, %113 : vector<8x128xf32>
      %115 = math.tanh %114 : vector<8x128xf32>
      %116 = arith.mulf %111, %115 : vector<8x128xf32>
      %117 = arith.index_cast %10 : i32 to index
      %c24 = arith.constant 24 : index
      %c0_35 = arith.constant 0 : index
      %118 = vector.load %arg8[%117, %c24, %c0_35] : memref<2x32x512xf32, #tpu.memory_space<vmem>>, vector<1x8x512xf32>
      %119 = vector.shape_cast %118 : vector<1x8x512xf32> to vector<8x512xf32>
      %c0_36 = arith.constant 0 : index
      %c0_37 = arith.constant 0 : index
      %120 = vector.load %arg3[%c0_36, %c0_37] : memref<128x512xf32, #tpu.memory_space<vmem>>, vector<128x512xf32>
      %cst_38 = arith.constant dense<0.000000e+00> : vector<8x512xf32>
      %121 = tpu.matmul %116, %120, %cst_38 {dimension_numbers = #tpu.dot_dimension_numbers<[1], [0], [0], [1], [0, 0, 1, 1], [], []>} : vector<8x128xf32>, vector<128x512xf32>, vector<8x512xf32> -> vector<8x512xf32>
      %122 = arith.addf %119, %121 : vector<8x512xf32>
      %123 = vector.extract_strided_slice %122 {offsets = [0, 0], sizes = [8, 128], strides = [1, 1]} : vector<8x512xf32> to vector<8x128xf32>
      %124 = arith.negf %123 : vector<8x128xf32>
      %125 = math.exp %124 : vector<8x128xf32>
      %cst_39 = arith.constant 1.000000e+00 : f32
      %126 = vector.broadcast %cst_39 : f32 to vector<8x128xf32>
      %127 = arith.addf %126, %125 : vector<8x128xf32>
      %128 = arith.divf %126, %127 : vector<8x128xf32>
      %129 = vector.extract_strided_slice %122 {offsets = [0, 128], sizes = [8, 128], strides = [1, 1]} : vector<8x512xf32> to vector<8x128xf32>
      %130 = arith.negf %129 : vector<8x128xf32>
      %131 = math.exp %130 : vector<8x128xf32>
      %cst_40 = arith.constant 1.000000e+00 : f32
      %132 = vector.broadcast %cst_40 : f32 to vector<8x128xf32>
      %133 = arith.addf %132, %131 : vector<8x128xf32>
      %134 = arith.divf %132, %133 : vector<8x128xf32>
      %135 = vector.extract_strided_slice %122 {offsets = [0, 256], sizes = [8, 128], strides = [1, 1]} : vector<8x512xf32> to vector<8x128xf32>
      %136 = math.tanh %135 : vector<8x128xf32>
      %137 = vector.extract_strided_slice %122 {offsets = [0, 384], sizes = [8, 128], strides = [1, 1]} : vector<8x512xf32> to vector<8x128xf32>
      %138 = arith.negf %137 : vector<8x128xf32>
      %139 = math.exp %138 : vector<8x128xf32>
      %cst_41 = arith.constant 1.000000e+00 : f32
      %140 = vector.broadcast %cst_41 : f32 to vector<8x128xf32>
      %141 = arith.addf %140, %139 : vector<8x128xf32>
      %142 = arith.divf %140, %141 : vector<8x128xf32>
      %143 = arith.mulf %134, %114 : vector<8x128xf32>
      %144 = arith.mulf %128, %136 : vector<8x128xf32>
      %145 = arith.addf %143, %144 : vector<8x128xf32>
      %146 = math.tanh %145 : vector<8x128xf32>
      %147 = arith.mulf %142, %146 : vector<8x128xf32>
      %c0_42 = arith.constant 0 : index
      %c0_43 = arith.constant 0 : index
      %148 = vector.load %arg6[%c0_42, %c0_43] : memref<8x128xf32, #tpu.memory_space<vmem>>, vector<8x128xf32>
      tpu.vector_store %arg6[%c0_42, %c0_43], %147 {strides = array<i32>} : memref<8x128xf32, #tpu.memory_space<vmem>>, vector<8x128xf32>,
      %c0_44 = arith.constant 0 : index
      %c0_45 = arith.constant 0 : index
      %149 = vector.load %arg7[%c0_44, %c0_45] : memref<8x128xf32, #tpu.memory_space<vmem>>, vector<8x128xf32>
      tpu.vector_store %arg7[%c0_44, %c0_45], %145 {strides = array<i32>} : memref<8x128xf32, #tpu.memory_space<vmem>>, vector<8x128xf32>,
      %c0_46 = arith.constant 0 : index
      %c0_47 = arith.constant 0 : index
      %150 = vector.load %arg5[%c0_46, %c0_47] : memref<8x128xf32, #tpu.memory_space<vmem>>, vector<8x128xf32>
      tpu.vector_store %arg5[%c0_46, %c0_47], %147 {strides = array<i32>} : memref<8x128xf32, #tpu.memory_space<vmem>>, vector<8x128xf32>,
    } else {
    }
    return
  }
  func.func @transform_0(%arg0: i32) -> (i32, i32) {
    %c1_i32 = arith.constant 1 : i32
    %0 = arith.minsi %arg0, %c1_i32 : i32
    %c0_i32 = arith.constant 0 : i32
    %c0_i32_0 = arith.constant 0 : i32
    return %0, %c0_i32 : i32, i32
  }
  func.func @transform_1(%arg0: i32) -> (i32, i32) {
    %c0_i32 = arith.constant 0 : i32
    %c0_i32_0 = arith.constant 0 : i32
    %c0_i32_1 = arith.constant 0 : i32
    return %c0_i32, %c0_i32_0 : i32, i32
  }
  func.func @transform_2(%arg0: i32) -> (i32, i32) {
    %c0_i32 = arith.constant 0 : i32
    %c0_i32_0 = arith.constant 0 : i32
    %c0_i32_1 = arith.constant 0 : i32
    return %c0_i32, %c0_i32_0 : i32, i32
  }
  func.func @transform_3(%arg0: i32) -> (i32, i32) {
    %c0_i32 = arith.constant 0 : i32
    %c0_i32_0 = arith.constant 0 : i32
    %c0_i32_1 = arith.constant 0 : i32
    return %c0_i32, %c0_i32_0 : i32, i32
  }
  func.func @transform_4(%arg0: i32) -> (i32, i32) {
    %c0_i32 = arith.constant 0 : i32
    %c0_i32_0 = arith.constant 0 : i32
    %c0_i32_1 = arith.constant 0 : i32
    return %c0_i32, %c0_i32_0 : i32, i32
  }
}

module attributes {stable_mosaic.version = 11 : i64} {
  func.func @lstm_last_kernel(%arg0: i32, %arg1: memref<32x64xf32, #tpu.memory_space<vmem>>, %arg2: memref<64x512xf32, #tpu.memory_space<vmem>>, %arg3: memref<128x512xf32, #tpu.memory_space<vmem>>, %arg4: memref<1x512xf32, #tpu.memory_space<vmem>>, %arg5: memref<8x128xf32, #tpu.memory_space<vmem>>, %arg6: memref<8x128xf32, #tpu.memory_space<vmem>>, %arg7: memref<8x128xf32, #tpu.memory_space<vmem>>, %arg8: memref<2x32x512xf32, #tpu.memory_space<vmem>>) attributes {dimension_semantics = [#tpu.dimension_semantics<arbitrary>], iteration_bounds = array<i64: 3>, scalar_prefetch = 0 : i64, scratch_operands = 3 : i64, tpu.core_type = #tpu.core_type<tc>, window_params = [{transform_indices = @transform_0, window_bounds = array<i64: 32, 64>}, {pipeline_mode = #tpu.pipeline_mode<synchronous>, transform_indices = @transform_1, window_bounds = array<i64: 64, 512>}, {pipeline_mode = #tpu.pipeline_mode<synchronous>, transform_indices = @transform_2, window_bounds = array<i64: 128, 512>}, {pipeline_mode = #tpu.pipeline_mode<synchronous>, transform_indices = @transform_3, window_bounds = array<i64: 1, 512>}, {pipeline_mode = #tpu.pipeline_mode<synchronous>, transform_indices = @transform_4, window_bounds = array<i64: 8, 128>}]} {
    %c2_i32 = arith.constant 2 : i32
    %c0_i32 = arith.constant 0 : i32
    %0 = arith.cmpi eq, %c2_i32, %c0_i32 : i32
    %c1_i32 = arith.constant 1 : i32
    %1 = arith.select %0, %c1_i32, %c2_i32 : i32
    %2 = arith.remsi %arg0, %1 : i32
    %c0_i32_0 = arith.constant 0 : i32
    %3 = arith.cmpi ne, %2, %c0_i32_0 : i32
    %c0_i32_1 = arith.constant 0 : i32
    %4 = arith.cmpi slt, %2, %c0_i32_1 : i32
    %c0_i32_2 = arith.constant 0 : i32
    %5 = arith.cmpi slt, %1, %c0_i32_2 : i32
    %6 = arith.xori %4, %5 : i1
    %7 = arith.andi %6, %3 : i1
    %8 = arith.addi %2, %1 : i32
    %9 = arith.select %7, %8, %2 : i32
    %c1_i32_3 = arith.constant 1 : i32
    %10 = arith.subi %c1_i32_3, %9 : i32
    %c0_i32_4 = arith.constant 0 : i32
    %11 = arith.cmpi eq, %arg0, %c0_i32_4 : i32
    %12 = arith.extui %11 : i1 to i32
    %c0_i32_5 = arith.constant 0 : i32
    %13 = arith.cmpi ne, %12, %c0_i32_5 : i32
    scf.if %13 {
      %cst = arith.constant 0.000000e+00 : f32
      %22 = vector.broadcast %cst : f32 to vector<8x128xf32>
      %c0 = arith.constant 0 : index
      %c0_11 = arith.constant 0 : index
      %23 = vector.load %arg6[%c0, %c0_11] : memref<8x128xf32, #tpu.memory_space<vmem>>, vector<8x128xf32>
      tpu.vector_store %arg6[%c0, %c0_11], %22 {strides = array<i32>} : memref<8x128xf32, #tpu.memory_space<vmem>>, vector<8x128xf32>,
      %cst_12 = arith.constant 0.000000e+00 : f32
      %24 = vector.broadcast %cst_12 : f32 to vector<8x128xf32>
      %c0_13 = arith.constant 0 : index
      %c0_14 = arith.constant 0 : index
      %25 = vector.load %arg7[%c0_13, %c0_14] : memref<8x128xf32, #tpu.memory_space<vmem>>, vector<8x128xf32>
      tpu.vector_store %arg7[%c0_13, %c0_14], %24 {strides = array<i32>} : memref<8x128xf32, #tpu.memory_space<vmem>>, vector<8x128xf32>,
      %c0_15 = arith.constant 0 : index
      %c0_16 = arith.constant 0 : index
      %26 = vector.load %arg1[%c0_15, %c0_16] : memref<32x64xf32, #tpu.memory_space<vmem>>, vector<32x64xf32>
      %c0_17 = arith.constant 0 : index
      %c0_18 = arith.constant 0 : index
      %27 = vector.load %arg2[%c0_17, %c0_18] : memref<64x512xf32, #tpu.memory_space<vmem>>, vector<64x512xf32>
      %cst_19 = arith.constant dense<0.000000e+00> : vector<32x512xf32>
      %28 = tpu.matmul %26, %27, %cst_19 {dimension_numbers = #tpu.dot_dimension_numbers<[1], [0], [0], [1], [0, 0, 1, 1], [], []>} : vector<32x64xf32>, vector<64x512xf32>, vector<32x512xf32> -> vector<32x512xf32>
      %c0_20 = arith.constant 0 : index
      %c0_21 = arith.constant 0 : index
      %29 = vector.load %arg4[%c0_20, %c0_21] : memref<1x512xf32, #tpu.memory_space<vmem>>, vector<1x512xf32>
      %30 = vector.broadcast %29 : vector<1x512xf32> to vector<32x512xf32>
      %31 = arith.addf %28, %30 : vector<32x512xf32>
      %32 = arith.index_cast %9 : i32 to index
      %c0_22 = arith.constant 0 : index
      %c0_23 = arith.constant 0 : index
      %33 = vector.load %arg8[%32, %c0_22, %c0_23] : memref<2x32x512xf32, #tpu.memory_space<vmem>>, vector<1x32x512xf32>
      %34 = vector.shape_cast %33 : vector<1x32x512xf32> to vector<32x512xf32>
      %35 = vector.shape_cast %31 : vector<32x512xf32> to vector<1x32x512xf32>
      tpu.vector_store %arg8[%32, %c0_22, %c0_23], %35 {strides = array<i32>} : memref<2x32x512xf32, #tpu.memory_space<vmem>>, vector<1x32x512xf32>,
    } else {
    }
    %c1_i32_6 = arith.constant 1 : i32
    %14 = arith.cmpi sge, %arg0, %c1_i32_6 : i32
    %c2_i32_7 = arith.constant 2 : i32
    %15 = arith.cmpi slt, %arg0, %c2_i32_7 : i32
    %16 = arith.andi %14, %15 : i1
    %17 = arith.extui %16 : i1 to i32
    %c0_i32_8 = arith.constant 0 : i32
    %18 = arith.cmpi ne, %17, %c0_i32_8 : i32
    scf.if %18 {
      %c0 = arith.constant 0 : index
      %c0_11 = arith.constant 0 : index
      %22 = vector.load %arg6[%c0, %c0_11] : memref<8x128xf32, #tpu.memory_space<vmem>>, vector<8x128xf32>
      %c0_12 = arith.constant 0 : index
      %c0_13 = arith.constant 0 : index
      %23 = vector.load %arg7[%c0_12, %c0_13] : memref<8x128xf32, #tpu.memory_space<vmem>>, vector<8x128xf32>
      %24 = arith.index_cast %10 : i32 to index
      %c0_14 = arith.constant 0 : index
      %c0_15 = arith.constant 0 : index
      %25 = vector.load %arg8[%24, %c0_14, %c0_15] : memref<2x32x512xf32, #tpu.memory_space<vmem>>, vector<1x8x512xf32>
      %26 = vector.shape_cast %25 : vector<1x8x512xf32> to vector<8x512xf32>
      %c0_16 = arith.constant 0 : index
      %c0_17 = arith.constant 0 : index
      %27 = vector.load %arg3[%c0_16, %c0_17] : memref<128x512xf32, #tpu.memory_space<vmem>>, vector<128x512xf32>
      %cst = arith.constant dense<0.000000e+00> : vector<8x512xf32>
      %28 = tpu.matmul %22, %27, %cst {dimension_numbers = #tpu.dot_dimension_numbers<[1], [0], [0], [1], [0, 0, 1, 1], [], []>} : vector<8x128xf32>, vector<128x512xf32>, vector<8x512xf32> -> vector<8x512xf32>
      %29 = arith.addf %26, %28 : vector<8x512xf32>
      %30 = vector.extract_strided_slice %29 {offsets = [0, 0], sizes = [8, 128], strides = [1, 1]} : vector<8x512xf32> to vector<8x128xf32>
      %31 = arith.negf %30 : vector<8x128xf32>
      %32 = math.exp %31 : vector<8x128xf32>
      %cst_18 = arith.constant 1.000000e+00 : f32
      %33 = vector.broadcast %cst_18 : f32 to vector<8x128xf32>
      %34 = arith.addf %33, %32 : vector<8x128xf32>
      %35 = arith.divf %33, %34 : vector<8x128xf32>
      %36 = vector.extract_strided_slice %29 {offsets = [0, 128], sizes = [8, 128], strides = [1, 1]} : vector<8x512xf32> to vector<8x128xf32>
      %37 = arith.negf %36 : vector<8x128xf32>
      %38 = math.exp %37 : vector<8x128xf32>
      %cst_19 = arith.constant 1.000000e+00 : f32
      %39 = vector.broadcast %cst_19 : f32 to vector<8x128xf32>
      %40 = arith.addf %39, %38 : vector<8x128xf32>
      %41 = arith.divf %39, %40 : vector<8x128xf32>
      %42 = vector.extract_strided_slice %29 {offsets = [0, 256], sizes = [8, 128], strides = [1, 1]} : vector<8x512xf32> to vector<8x128xf32>
      %43 = math.tanh %42 : vector<8x128xf32>
      %44 = vector.extract_strided_slice %29 {offsets = [0, 384], sizes = [8, 128], strides = [1, 1]} : vector<8x512xf32> to vector<8x128xf32>
      %45 = arith.negf %44 : vector<8x128xf32>
      %46 = math.exp %45 : vector<8x128xf32>
      %cst_20 = arith.constant 1.000000e+00 : f32
      %47 = vector.broadcast %cst_20 : f32 to vector<8x128xf32>
      %48 = arith.addf %47, %46 : vector<8x128xf32>
      %49 = arith.divf %47, %48 : vector<8x128xf32>
      %50 = arith.mulf %41, %23 : vector<8x128xf32>
      %51 = arith.mulf %35, %43 : vector<8x128xf32>
      %52 = arith.addf %50, %51 : vector<8x128xf32>
      %53 = math.tanh %52 : vector<8x128xf32>
      %54 = arith.mulf %49, %53 : vector<8x128xf32>
      %55 = arith.index_cast %10 : i32 to index
      %c8 = arith.constant 8 : index
      %c0_21 = arith.constant 0 : index
      %56 = vector.load %arg8[%55, %c8, %c0_21] : memref<2x32x512xf32, #tpu.memory_space<vmem>>, vector<1x8x512xf32>
      %57 = vector.shape_cast %56 : vector<1x8x512xf32> to vector<8x512xf32>
      %c0_22 = arith.constant 0 : index
      %c0_23 = arith.constant 0 : index
      %58 = vector.load %arg3[%c0_22, %c0_23] : memref<128x512xf32, #tpu.memory_space<vmem>>, vector<128x512xf32>
      %cst_24 = arith.constant dense<0.000000e+00> : vector<8x512xf32>
      %59 = tpu.matmul %54, %58, %cst_24 {dimension_numbers = #tpu.dot_dimension_numbers<[1], [0], [0], [1], [0, 0, 1, 1], [], []>} : vector<8x128xf32>, vector<128x512xf32>, vector<8x512xf32> -> vector<8x512xf32>
      %60 = arith.addf %57, %59 : vector<8x512xf32>
      %61 = vector.extract_strided_slice %60 {offsets = [0, 0], sizes = [8, 128], strides = [1, 1]} : vector<8x512xf32> to vector<8x128xf32>
      %62 = arith.negf %61 : vector<8x128xf32>
      %63 = math.exp %62 : vector<8x128xf32>
      %cst_25 = arith.constant 1.000000e+00 : f32
      %64 = vector.broadcast %cst_25 : f32 to vector<8x128xf32>
      %65 = arith.addf %64, %63 : vector<8x128xf32>
      %66 = arith.divf %64, %65 : vector<8x128xf32>
      %67 = vector.extract_strided_slice %60 {offsets = [0, 128], sizes = [8, 128], strides = [1, 1]} : vector<8x512xf32> to vector<8x128xf32>
      %68 = arith.negf %67 : vector<8x128xf32>
      %69 = math.exp %68 : vector<8x128xf32>
      %cst_26 = arith.constant 1.000000e+00 : f32
      %70 = vector.broadcast %cst_26 : f32 to vector<8x128xf32>
      %71 = arith.addf %70, %69 : vector<8x128xf32>
      %72 = arith.divf %70, %71 : vector<8x128xf32>
      %73 = vector.extract_strided_slice %60 {offsets = [0, 256], sizes = [8, 128], strides = [1, 1]} : vector<8x512xf32> to vector<8x128xf32>
      %74 = math.tanh %73 : vector<8x128xf32>
      %75 = vector.extract_strided_slice %60 {offsets = [0, 384], sizes = [8, 128], strides = [1, 1]} : vector<8x512xf32> to vector<8x128xf32>
      %76 = arith.negf %75 : vector<8x128xf32>
      %77 = math.exp %76 : vector<8x128xf32>
      %cst_27 = arith.constant 1.000000e+00 : f32
      %78 = vector.broadcast %cst_27 : f32 to vector<8x128xf32>
      %79 = arith.addf %78, %77 : vector<8x128xf32>
      %80 = arith.divf %78, %79 : vector<8x128xf32>
      %81 = arith.mulf %72, %52 : vector<8x128xf32>
      %82 = arith.mulf %66, %74 : vector<8x128xf32>
      %83 = arith.addf %81, %82 : vector<8x128xf32>
      %84 = math.tanh %83 : vector<8x128xf32>
      %85 = arith.mulf %80, %84 : vector<8x128xf32>
      %86 = arith.index_cast %10 : i32 to index
      %c16 = arith.constant 16 : index
      %c0_28 = arith.constant 0 : index
      %87 = vector.load %arg8[%86, %c16, %c0_28] : memref<2x32x512xf32, #tpu.memory_space<vmem>>, vector<1x8x512xf32>
      %88 = vector.shape_cast %87 : vector<1x8x512xf32> to vector<8x512xf32>
      %c0_29 = arith.constant 0 : index
      %c0_30 = arith.constant 0 : index
      %89 = vector.load %arg3[%c0_29, %c0_30] : memref<128x512xf32, #tpu.memory_space<vmem>>, vector<128x512xf32>
      %cst_31 = arith.constant dense<0.000000e+00> : vector<8x512xf32>
      %90 = tpu.matmul %85, %89, %cst_31 {dimension_numbers = #tpu.dot_dimension_numbers<[1], [0], [0], [1], [0, 0, 1, 1], [], []>} : vector<8x128xf32>, vector<128x512xf32>, vector<8x512xf32> -> vector<8x512xf32>
      %91 = arith.addf %88, %90 : vector<8x512xf32>
      %92 = vector.extract_strided_slice %91 {offsets = [0, 0], sizes = [8, 128], strides = [1, 1]} : vector<8x512xf32> to vector<8x128xf32>
      %93 = arith.negf %92 : vector<8x128xf32>
      %94 = math.exp %93 : vector<8x128xf32>
      %cst_32 = arith.constant 1.000000e+00 : f32
      %95 = vector.broadcast %cst_32 : f32 to vector<8x128xf32>
      %96 = arith.addf %95, %94 : vector<8x128xf32>
      %97 = arith.divf %95, %96 : vector<8x128xf32>
      %98 = vector.extract_strided_slice %91 {offsets = [0, 128], sizes = [8, 128], strides = [1, 1]} : vector<8x512xf32> to vector<8x128xf32>
      %99 = arith.negf %98 : vector<8x128xf32>
      %100 = math.exp %99 : vector<8x128xf32>
      %cst_33 = arith.constant 1.000000e+00 : f32
      %101 = vector.broadcast %cst_33 : f32 to vector<8x128xf32>
      %102 = arith.addf %101, %100 : vector<8x128xf32>
      %103 = arith.divf %101, %102 : vector<8x128xf32>
      %104 = vector.extract_strided_slice %91 {offsets = [0, 256], sizes = [8, 128], strides = [1, 1]} : vector<8x512xf32> to vector<8x128xf32>
      %105 = math.tanh %104 : vector<8x128xf32>
      %106 = vector.extract_strided_slice %91 {offsets = [0, 384], sizes = [8, 128], strides = [1, 1]} : vector<8x512xf32> to vector<8x128xf32>
      %107 = arith.negf %106 : vector<8x128xf32>
      %108 = math.exp %107 : vector<8x128xf32>
      %cst_34 = arith.constant 1.000000e+00 : f32
      %109 = vector.broadcast %cst_34 : f32 to vector<8x128xf32>
      %110 = arith.addf %109, %108 : vector<8x128xf32>
      %111 = arith.divf %109, %110 : vector<8x128xf32>
      %112 = arith.mulf %103, %83 : vector<8x128xf32>
      %113 = arith.mulf %97, %105 : vector<8x128xf32>
      %114 = arith.addf %112, %113 : vector<8x128xf32>
      %115 = math.tanh %114 : vector<8x128xf32>
      %116 = arith.mulf %111, %115 : vector<8x128xf32>
      %117 = arith.index_cast %10 : i32 to index
      %c24 = arith.constant 24 : index
      %c0_35 = arith.constant 0 : index
      %118 = vector.load %arg8[%117, %c24, %c0_35] : memref<2x32x512xf32, #tpu.memory_space<vmem>>, vector<1x8x512xf32>
      %119 = vector.shape_cast %118 : vector<1x8x512xf32> to vector<8x512xf32>
      %c0_36 = arith.constant 0 : index
      %c0_37 = arith.constant 0 : index
      %120 = vector.load %arg3[%c0_36, %c0_37] : memref<128x512xf32, #tpu.memory_space<vmem>>, vector<128x512xf32>
      %cst_38 = arith.constant dense<0.000000e+00> : vector<8x512xf32>
      %121 = tpu.matmul %116, %120, %cst_38 {dimension_numbers = #tpu.dot_dimension_numbers<[1], [0], [0], [1], [0, 0, 1, 1], [], []>} : vector<8x128xf32>, vector<128x512xf32>, vector<8x512xf32> -> vector<8x512xf32>
      %122 = arith.addf %119, %121 : vector<8x512xf32>
      %123 = vector.extract_strided_slice %122 {offsets = [0, 0], sizes = [8, 128], strides = [1, 1]} : vector<8x512xf32> to vector<8x128xf32>
      %124 = arith.negf %123 : vector<8x128xf32>
      %125 = math.exp %124 : vector<8x128xf32>
      %cst_39 = arith.constant 1.000000e+00 : f32
      %126 = vector.broadcast %cst_39 : f32 to vector<8x128xf32>
      %127 = arith.addf %126, %125 : vector<8x128xf32>
      %128 = arith.divf %126, %127 : vector<8x128xf32>
      %129 = vector.extract_strided_slice %122 {offsets = [0, 128], sizes = [8, 128], strides = [1, 1]} : vector<8x512xf32> to vector<8x128xf32>
      %130 = arith.negf %129 : vector<8x128xf32>
      %131 = math.exp %130 : vector<8x128xf32>
      %cst_40 = arith.constant 1.000000e+00 : f32
      %132 = vector.broadcast %cst_40 : f32 to vector<8x128xf32>
      %133 = arith.addf %132, %131 : vector<8x128xf32>
      %134 = arith.divf %132, %133 : vector<8x128xf32>
      %135 = vector.extract_strided_slice %122 {offsets = [0, 256], sizes = [8, 128], strides = [1, 1]} : vector<8x512xf32> to vector<8x128xf32>
      %136 = math.tanh %135 : vector<8x128xf32>
      %137 = vector.extract_strided_slice %122 {offsets = [0, 384], sizes = [8, 128], strides = [1, 1]} : vector<8x512xf32> to vector<8x128xf32>
      %138 = arith.negf %137 : vector<8x128xf32>
      %139 = math.exp %138 : vector<8x128xf32>
      %cst_41 = arith.constant 1.000000e+00 : f32
      %140 = vector.broadcast %cst_41 : f32 to vector<8x128xf32>
      %141 = arith.addf %140, %139 : vector<8x128xf32>
      %142 = arith.divf %140, %141 : vector<8x128xf32>
      %143 = arith.mulf %134, %114 : vector<8x128xf32>
      %144 = arith.mulf %128, %136 : vector<8x128xf32>
      %145 = arith.addf %143, %144 : vector<8x128xf32>
      %146 = math.tanh %145 : vector<8x128xf32>
      %147 = arith.mulf %142, %146 : vector<8x128xf32>
      %c0_42 = arith.constant 0 : index
      %c0_43 = arith.constant 0 : index
      %148 = vector.load %arg6[%c0_42, %c0_43] : memref<8x128xf32, #tpu.memory_space<vmem>>, vector<8x128xf32>
      tpu.vector_store %arg6[%c0_42, %c0_43], %147 {strides = array<i32>} : memref<8x128xf32, #tpu.memory_space<vmem>>, vector<8x128xf32>,
      %c0_44 = arith.constant 0 : index
      %c0_45 = arith.constant 0 : index
      %149 = vector.load %arg7[%c0_44, %c0_45] : memref<8x128xf32, #tpu.memory_space<vmem>>, vector<8x128xf32>
      tpu.vector_store %arg7[%c0_44, %c0_45], %145 {strides = array<i32>} : memref<8x128xf32, #tpu.memory_space<vmem>>, vector<8x128xf32>,
      %c0_46 = arith.constant 0 : index
      %c0_47 = arith.constant 0 : index
      %150 = vector.load %arg1[%c0_46, %c0_47] : memref<32x64xf32, #tpu.memory_space<vmem>>, vector<32x64xf32>
      %c0_48 = arith.constant 0 : index
      %c0_49 = arith.constant 0 : index
      %151 = vector.load %arg2[%c0_48, %c0_49] : memref<64x512xf32, #tpu.memory_space<vmem>>, vector<64x512xf32>
      %cst_50 = arith.constant dense<0.000000e+00> : vector<32x512xf32>
      %152 = tpu.matmul %150, %151, %cst_50 {dimension_numbers = #tpu.dot_dimension_numbers<[1], [0], [0], [1], [0, 0, 1, 1], [], []>} : vector<32x64xf32>, vector<64x512xf32>, vector<32x512xf32> -> vector<32x512xf32>
      %c0_51 = arith.constant 0 : index
      %c0_52 = arith.constant 0 : index
      %153 = vector.load %arg4[%c0_51, %c0_52] : memref<1x512xf32, #tpu.memory_space<vmem>>, vector<1x512xf32>
      %154 = vector.broadcast %153 : vector<1x512xf32> to vector<32x512xf32>
      %155 = arith.addf %152, %154 : vector<32x512xf32>
      %156 = arith.index_cast %9 : i32 to index
      %c0_53 = arith.constant 0 : index
      %c0_54 = arith.constant 0 : index
      %157 = vector.load %arg8[%156, %c0_53, %c0_54] : memref<2x32x512xf32, #tpu.memory_space<vmem>>, vector<1x32x512xf32>
      %158 = vector.shape_cast %157 : vector<1x32x512xf32> to vector<32x512xf32>
      %159 = vector.shape_cast %155 : vector<32x512xf32> to vector<1x32x512xf32>
      tpu.vector_store %arg8[%156, %c0_53, %c0_54], %159 {strides = array<i32>} : memref<2x32x512xf32, #tpu.memory_space<vmem>>, vector<1x32x512xf32>,
    } else {
    }
    %c2_i32_9 = arith.constant 2 : i32
    %19 = arith.cmpi eq, %arg0, %c2_i32_9 : i32
    %20 = arith.extui %19 : i1 to i32
    %c0_i32_10 = arith.constant 0 : i32
    %21 = arith.cmpi ne, %20, %c0_i32_10 : i32
    scf.if %21 {
      %c0 = arith.constant 0 : index
      %c0_11 = arith.constant 0 : index
      %22 = vector.load %arg6[%c0, %c0_11] : memref<8x128xf32, #tpu.memory_space<vmem>>, vector<8x128xf32>
      %c0_12 = arith.constant 0 : index
      %c0_13 = arith.constant 0 : index
      %23 = vector.load %arg7[%c0_12, %c0_13] : memref<8x128xf32, #tpu.memory_space<vmem>>, vector<8x128xf32>
      %24 = arith.index_cast %10 : i32 to index
      %c0_14 = arith.constant 0 : index
      %c0_15 = arith.constant 0 : index
      %25 = vector.load %arg8[%24, %c0_14, %c0_15] : memref<2x32x512xf32, #tpu.memory_space<vmem>>, vector<1x8x512xf32>
      %26 = vector.shape_cast %25 : vector<1x8x512xf32> to vector<8x512xf32>
      %c0_16 = arith.constant 0 : index
      %c0_17 = arith.constant 0 : index
      %27 = vector.load %arg3[%c0_16, %c0_17] : memref<128x512xf32, #tpu.memory_space<vmem>>, vector<128x512xf32>
      %cst = arith.constant dense<0.000000e+00> : vector<8x512xf32>
      %28 = tpu.matmul %22, %27, %cst {dimension_numbers = #tpu.dot_dimension_numbers<[1], [0], [0], [1], [0, 0, 1, 1], [], []>} : vector<8x128xf32>, vector<128x512xf32>, vector<8x512xf32> -> vector<8x512xf32>
      %29 = arith.addf %26, %28 : vector<8x512xf32>
      %30 = vector.extract_strided_slice %29 {offsets = [0, 0], sizes = [8, 128], strides = [1, 1]} : vector<8x512xf32> to vector<8x128xf32>
      %31 = arith.negf %30 : vector<8x128xf32>
      %32 = math.exp %31 : vector<8x128xf32>
      %cst_18 = arith.constant 1.000000e+00 : f32
      %33 = vector.broadcast %cst_18 : f32 to vector<8x128xf32>
      %34 = arith.addf %33, %32 : vector<8x128xf32>
      %35 = arith.divf %33, %34 : vector<8x128xf32>
      %36 = vector.extract_strided_slice %29 {offsets = [0, 128], sizes = [8, 128], strides = [1, 1]} : vector<8x512xf32> to vector<8x128xf32>
      %37 = arith.negf %36 : vector<8x128xf32>
      %38 = math.exp %37 : vector<8x128xf32>
      %cst_19 = arith.constant 1.000000e+00 : f32
      %39 = vector.broadcast %cst_19 : f32 to vector<8x128xf32>
      %40 = arith.addf %39, %38 : vector<8x128xf32>
      %41 = arith.divf %39, %40 : vector<8x128xf32>
      %42 = vector.extract_strided_slice %29 {offsets = [0, 256], sizes = [8, 128], strides = [1, 1]} : vector<8x512xf32> to vector<8x128xf32>
      %43 = math.tanh %42 : vector<8x128xf32>
      %44 = vector.extract_strided_slice %29 {offsets = [0, 384], sizes = [8, 128], strides = [1, 1]} : vector<8x512xf32> to vector<8x128xf32>
      %45 = arith.negf %44 : vector<8x128xf32>
      %46 = math.exp %45 : vector<8x128xf32>
      %cst_20 = arith.constant 1.000000e+00 : f32
      %47 = vector.broadcast %cst_20 : f32 to vector<8x128xf32>
      %48 = arith.addf %47, %46 : vector<8x128xf32>
      %49 = arith.divf %47, %48 : vector<8x128xf32>
      %50 = arith.mulf %41, %23 : vector<8x128xf32>
      %51 = arith.mulf %35, %43 : vector<8x128xf32>
      %52 = arith.addf %50, %51 : vector<8x128xf32>
      %53 = math.tanh %52 : vector<8x128xf32>
      %54 = arith.mulf %49, %53 : vector<8x128xf32>
      %55 = arith.index_cast %10 : i32 to index
      %c8 = arith.constant 8 : index
      %c0_21 = arith.constant 0 : index
      %56 = vector.load %arg8[%55, %c8, %c0_21] : memref<2x32x512xf32, #tpu.memory_space<vmem>>, vector<1x8x512xf32>
      %57 = vector.shape_cast %56 : vector<1x8x512xf32> to vector<8x512xf32>
      %c0_22 = arith.constant 0 : index
      %c0_23 = arith.constant 0 : index
      %58 = vector.load %arg3[%c0_22, %c0_23] : memref<128x512xf32, #tpu.memory_space<vmem>>, vector<128x512xf32>
      %cst_24 = arith.constant dense<0.000000e+00> : vector<8x512xf32>
      %59 = tpu.matmul %54, %58, %cst_24 {dimension_numbers = #tpu.dot_dimension_numbers<[1], [0], [0], [1], [0, 0, 1, 1], [], []>} : vector<8x128xf32>, vector<128x512xf32>, vector<8x512xf32> -> vector<8x512xf32>
      %60 = arith.addf %57, %59 : vector<8x512xf32>
      %61 = vector.extract_strided_slice %60 {offsets = [0, 0], sizes = [8, 128], strides = [1, 1]} : vector<8x512xf32> to vector<8x128xf32>
      %62 = arith.negf %61 : vector<8x128xf32>
      %63 = math.exp %62 : vector<8x128xf32>
      %cst_25 = arith.constant 1.000000e+00 : f32
      %64 = vector.broadcast %cst_25 : f32 to vector<8x128xf32>
      %65 = arith.addf %64, %63 : vector<8x128xf32>
      %66 = arith.divf %64, %65 : vector<8x128xf32>
      %67 = vector.extract_strided_slice %60 {offsets = [0, 128], sizes = [8, 128], strides = [1, 1]} : vector<8x512xf32> to vector<8x128xf32>
      %68 = arith.negf %67 : vector<8x128xf32>
      %69 = math.exp %68 : vector<8x128xf32>
      %cst_26 = arith.constant 1.000000e+00 : f32
      %70 = vector.broadcast %cst_26 : f32 to vector<8x128xf32>
      %71 = arith.addf %70, %69 : vector<8x128xf32>
      %72 = arith.divf %70, %71 : vector<8x128xf32>
      %73 = vector.extract_strided_slice %60 {offsets = [0, 256], sizes = [8, 128], strides = [1, 1]} : vector<8x512xf32> to vector<8x128xf32>
      %74 = math.tanh %73 : vector<8x128xf32>
      %75 = vector.extract_strided_slice %60 {offsets = [0, 384], sizes = [8, 128], strides = [1, 1]} : vector<8x512xf32> to vector<8x128xf32>
      %76 = arith.negf %75 : vector<8x128xf32>
      %77 = math.exp %76 : vector<8x128xf32>
      %cst_27 = arith.constant 1.000000e+00 : f32
      %78 = vector.broadcast %cst_27 : f32 to vector<8x128xf32>
      %79 = arith.addf %78, %77 : vector<8x128xf32>
      %80 = arith.divf %78, %79 : vector<8x128xf32>
      %81 = arith.mulf %72, %52 : vector<8x128xf32>
      %82 = arith.mulf %66, %74 : vector<8x128xf32>
      %83 = arith.addf %81, %82 : vector<8x128xf32>
      %84 = math.tanh %83 : vector<8x128xf32>
      %85 = arith.mulf %80, %84 : vector<8x128xf32>
      %86 = arith.index_cast %10 : i32 to index
      %c16 = arith.constant 16 : index
      %c0_28 = arith.constant 0 : index
      %87 = vector.load %arg8[%86, %c16, %c0_28] : memref<2x32x512xf32, #tpu.memory_space<vmem>>, vector<1x8x512xf32>
      %88 = vector.shape_cast %87 : vector<1x8x512xf32> to vector<8x512xf32>
      %c0_29 = arith.constant 0 : index
      %c0_30 = arith.constant 0 : index
      %89 = vector.load %arg3[%c0_29, %c0_30] : memref<128x512xf32, #tpu.memory_space<vmem>>, vector<128x512xf32>
      %cst_31 = arith.constant dense<0.000000e+00> : vector<8x512xf32>
      %90 = tpu.matmul %85, %89, %cst_31 {dimension_numbers = #tpu.dot_dimension_numbers<[1], [0], [0], [1], [0, 0, 1, 1], [], []>} : vector<8x128xf32>, vector<128x512xf32>, vector<8x512xf32> -> vector<8x512xf32>
      %91 = arith.addf %88, %90 : vector<8x512xf32>
      %92 = vector.extract_strided_slice %91 {offsets = [0, 0], sizes = [8, 128], strides = [1, 1]} : vector<8x512xf32> to vector<8x128xf32>
      %93 = arith.negf %92 : vector<8x128xf32>
      %94 = math.exp %93 : vector<8x128xf32>
      %cst_32 = arith.constant 1.000000e+00 : f32
      %95 = vector.broadcast %cst_32 : f32 to vector<8x128xf32>
      %96 = arith.addf %95, %94 : vector<8x128xf32>
      %97 = arith.divf %95, %96 : vector<8x128xf32>
      %98 = vector.extract_strided_slice %91 {offsets = [0, 128], sizes = [8, 128], strides = [1, 1]} : vector<8x512xf32> to vector<8x128xf32>
      %99 = arith.negf %98 : vector<8x128xf32>
      %100 = math.exp %99 : vector<8x128xf32>
      %cst_33 = arith.constant 1.000000e+00 : f32
      %101 = vector.broadcast %cst_33 : f32 to vector<8x128xf32>
      %102 = arith.addf %101, %100 : vector<8x128xf32>
      %103 = arith.divf %101, %102 : vector<8x128xf32>
      %104 = vector.extract_strided_slice %91 {offsets = [0, 256], sizes = [8, 128], strides = [1, 1]} : vector<8x512xf32> to vector<8x128xf32>
      %105 = math.tanh %104 : vector<8x128xf32>
      %106 = vector.extract_strided_slice %91 {offsets = [0, 384], sizes = [8, 128], strides = [1, 1]} : vector<8x512xf32> to vector<8x128xf32>
      %107 = arith.negf %106 : vector<8x128xf32>
      %108 = math.exp %107 : vector<8x128xf32>
      %cst_34 = arith.constant 1.000000e+00 : f32
      %109 = vector.broadcast %cst_34 : f32 to vector<8x128xf32>
      %110 = arith.addf %109, %108 : vector<8x128xf32>
      %111 = arith.divf %109, %110 : vector<8x128xf32>
      %112 = arith.mulf %103, %83 : vector<8x128xf32>
      %113 = arith.mulf %97, %105 : vector<8x128xf32>
      %114 = arith.addf %112, %113 : vector<8x128xf32>
      %115 = math.tanh %114 : vector<8x128xf32>
      %116 = arith.mulf %111, %115 : vector<8x128xf32>
      %117 = arith.index_cast %10 : i32 to index
      %c24 = arith.constant 24 : index
      %c0_35 = arith.constant 0 : index
      %118 = vector.load %arg8[%117, %c24, %c0_35] : memref<2x32x512xf32, #tpu.memory_space<vmem>>, vector<1x8x512xf32>
      %119 = vector.shape_cast %118 : vector<1x8x512xf32> to vector<8x512xf32>
      %c0_36 = arith.constant 0 : index
      %c0_37 = arith.constant 0 : index
      %120 = vector.load %arg3[%c0_36, %c0_37] : memref<128x512xf32, #tpu.memory_space<vmem>>, vector<128x512xf32>
      %cst_38 = arith.constant dense<0.000000e+00> : vector<8x512xf32>
      %121 = tpu.matmul %116, %120, %cst_38 {dimension_numbers = #tpu.dot_dimension_numbers<[1], [0], [0], [1], [0, 0, 1, 1], [], []>} : vector<8x128xf32>, vector<128x512xf32>, vector<8x512xf32> -> vector<8x512xf32>
      %122 = arith.addf %119, %121 : vector<8x512xf32>
      %123 = vector.extract_strided_slice %122 {offsets = [0, 0], sizes = [8, 128], strides = [1, 1]} : vector<8x512xf32> to vector<8x128xf32>
      %124 = arith.negf %123 : vector<8x128xf32>
      %125 = math.exp %124 : vector<8x128xf32>
      %cst_39 = arith.constant 1.000000e+00 : f32
      %126 = vector.broadcast %cst_39 : f32 to vector<8x128xf32>
      %127 = arith.addf %126, %125 : vector<8x128xf32>
      %128 = arith.divf %126, %127 : vector<8x128xf32>
      %129 = vector.extract_strided_slice %122 {offsets = [0, 128], sizes = [8, 128], strides = [1, 1]} : vector<8x512xf32> to vector<8x128xf32>
      %130 = arith.negf %129 : vector<8x128xf32>
      %131 = math.exp %130 : vector<8x128xf32>
      %cst_40 = arith.constant 1.000000e+00 : f32
      %132 = vector.broadcast %cst_40 : f32 to vector<8x128xf32>
      %133 = arith.addf %132, %131 : vector<8x128xf32>
      %134 = arith.divf %132, %133 : vector<8x128xf32>
      %135 = vector.extract_strided_slice %122 {offsets = [0, 256], sizes = [8, 128], strides = [1, 1]} : vector<8x512xf32> to vector<8x128xf32>
      %136 = math.tanh %135 : vector<8x128xf32>
      %137 = vector.extract_strided_slice %122 {offsets = [0, 384], sizes = [8, 128], strides = [1, 1]} : vector<8x512xf32> to vector<8x128xf32>
      %138 = arith.negf %137 : vector<8x128xf32>
      %139 = math.exp %138 : vector<8x128xf32>
      %cst_41 = arith.constant 1.000000e+00 : f32
      %140 = vector.broadcast %cst_41 : f32 to vector<8x128xf32>
      %141 = arith.addf %140, %139 : vector<8x128xf32>
      %142 = arith.divf %140, %141 : vector<8x128xf32>
      %143 = arith.mulf %134, %114 : vector<8x128xf32>
      %144 = arith.mulf %128, %136 : vector<8x128xf32>
      %145 = arith.addf %143, %144 : vector<8x128xf32>
      %146 = math.tanh %145 : vector<8x128xf32>
      %147 = arith.mulf %142, %146 : vector<8x128xf32>
      %c0_42 = arith.constant 0 : index
      %c0_43 = arith.constant 0 : index
      %148 = vector.load %arg6[%c0_42, %c0_43] : memref<8x128xf32, #tpu.memory_space<vmem>>, vector<8x128xf32>
      tpu.vector_store %arg6[%c0_42, %c0_43], %147 {strides = array<i32>} : memref<8x128xf32, #tpu.memory_space<vmem>>, vector<8x128xf32>,
      %c0_44 = arith.constant 0 : index
      %c0_45 = arith.constant 0 : index
      %149 = vector.load %arg7[%c0_44, %c0_45] : memref<8x128xf32, #tpu.memory_space<vmem>>, vector<8x128xf32>
      tpu.vector_store %arg7[%c0_44, %c0_45], %145 {strides = array<i32>} : memref<8x128xf32, #tpu.memory_space<vmem>>, vector<8x128xf32>,
      %c0_46 = arith.constant 0 : index
      %c0_47 = arith.constant 0 : index
      %150 = vector.load %arg5[%c0_46, %c0_47] : memref<8x128xf32, #tpu.memory_space<vmem>>, vector<8x128xf32>
      tpu.vector_store %arg5[%c0_46, %c0_47], %147 {strides = array<i32>} : memref<8x128xf32, #tpu.memory_space<vmem>>, vector<8x128xf32>,
    } else {
    }
    return
  }
  func.func @transform_0(%arg0: i32) -> (i32, i32) {
    %c1_i32 = arith.constant 1 : i32
    %0 = arith.minsi %arg0, %c1_i32 : i32
    %c0_i32 = arith.constant 0 : i32
    %c0_i32_0 = arith.constant 0 : i32
    return %0, %c0_i32 : i32, i32
  }
  func.func @transform_1(%arg0: i32) -> (i32, i32) {
    %c0_i32 = arith.constant 0 : i32
    %c0_i32_0 = arith.constant 0 : i32
    %c0_i32_1 = arith.constant 0 : i32
    return %c0_i32, %c0_i32_0 : i32, i32
  }
  func.func @transform_2(%arg0: i32) -> (i32, i32) {
    %c0_i32 = arith.constant 0 : i32
    %c0_i32_0 = arith.constant 0 : i32
    %c0_i32_1 = arith.constant 0 : i32
    return %c0_i32, %c0_i32_0 : i32, i32
  }
  func.func @transform_3(%arg0: i32) -> (i32, i32) {
    %c0_i32 = arith.constant 0 : i32
    %c0_i32_0 = arith.constant 0 : i32
    %c0_i32_1 = arith.constant 0 : i32
    return %c0_i32, %c0_i32_0 : i32, i32
  }
  func.func @transform_4(%arg0: i32) -> (i32, i32) {
    %c0_i32 = arith.constant 0 : i32
    %c0_i32_0 = arith.constant 0 : i32
    %c0_i32_1 = arith.constant 0 : i32
    return %c0_i32, %c0_i32_0 : i32, i32
  }
}

</mosaic_0001>

<llo_original>
// kernel: tpu_custom_call.1
$region0: #{tpu_custom_call.1}
  #allocation0 [shape = 'u32[]', space=smem, size = 0x4, offset = 0x4, fixed_abs, tag = 'smem constant byte address 0x4 - core index']
  #allocation1 [shape = 'u32[72,128]{1,0:T(1,128)}', space=vmem, size = 0x9000, scoped, tag = 'internal scratch']
  #allocation2 [shape = 'f32[8,128]{1,0:T(8,128)}', space=vmem, size = 0x1000, scoped, tag = 'scratch operand']
  #allocation3 [shape = 'f32[8,128]{1,0:T(8,128)}', space=vmem, size = 0x1000, scoped, tag = 'scratch operand']
  #allocation4 [shape = 'f32[2,32,512]{2,1,0:T(8,128)}', space=vmem, size = 0x20000, scoped, tag = 'scratch operand']
  %s0 = inlined_call_operand.hbm [shape: f32[64,64], index: 0, kind: input, shape index: {}]
  %s1 = inlined_call_operand.hbm [shape: f32[64,512], index: 1, kind: input, shape index: {}]
  %s2 = inlined_call_operand.hbm [shape: f32[128,512], index: 2, kind: input, shape index: {}]
  %s3 = inlined_call_operand.hbm [shape: f32[1,512], index: 3, kind: input, shape index: {}]
  %s4 = inlined_call_operand.hbm [shape: f32[8,128], index: 4, kind: output, shape index: {}]
  %s5 = sld [smem:[#allocation0]]
  $region77: #{tpu_custom_call.1} parent=0
    _
  %s7 = ssub.s32 1, %s5
  %s8 = scalar_select 0, %s7, %s5
  $region1: #{tpu_custom_call.1} parent=0
    #allocation5 [shape = 'u8[32768]{0}', space=vmem, size = 0x8000, scoped, tag = 'input window, operand 0']
    #allocation6 [shape = 's32[2]{0}', space=sflag, size = 0x8, scoped, tag = 'scoped memory for tpu_custom_call.1']
    #allocation7 [shape = 's32[2]{0}', space=sflag, size = 0x8, scoped, tag = 'scoped memory for tpu_custom_call.1']
    #allocation8 [shape = 'u8[131072]{0}', space=vmem, size = 0x20000, scoped, tag = 'input window, operand 1, single buffered']
    #allocation9 [shape = 's32[1]{0}', space=sflag, size = 0x4, scoped, tag = 'scoped memory for tpu_custom_call.1']
    #allocation10 [shape = 'u8[262144]{0}', space=vmem, size = 0x40000, scoped, tag = 'input window, operand 2, single buffered']
    #allocation11 [shape = 'u8[2048]{0}', space=vmem, size = 0x800, scoped, tag = 'input window, operand 3, single buffered']
    #allocation12 [shape = 's32[1]{0}', space=sflag, size = 0x4, scoped, tag = 'scoped memory for tpu_custom_call.1']
    #allocation13 [shape = 'u8[4096]{0}', space=vmem, size = 0x1000, scoped, tag = 'output window, operand 0, single buffered']
    %9 = vsyncpa [#allocation6], 0
    %s10 = scalar_lea.sflag [#allocation6], 1
    %11 = vsyncpa %s10, 0
    %12 = vsyncpa [#allocation9], 0
    %13 = vsyncpa [#allocation12], 0
    %14 = vsyncpa [#allocation7], 0
    loop: start=0, step=1, limit=5
    $region2: #{tpu_custom_call.1} parent=1 // loop_pre_header
      _
    $region3: #{tpu_custom_call.1} parent=1 // loop_header
      %s16 = sphi 0, %s20
      %p17 = scmp.ge.s32.totalorder %s16, 5
      %s30 = sphi 0, %s32
      %s33 = sphi 0, %s30
      %s34 = sphi 0, %s33
      %s50 = sphi 0, %s34
      %s54 = sphi 0, %s54
      %s56 = sphi 0, %s54
      %s57 = sphi 0, %s56
      %s71 = sphi 0, %s57
      %s75 = sphi 0, %s75
      %s77 = sphi 0, %s75
      %s78 = sphi 0, %s77
      %s92 = sphi 0, %s78
      %s96 = sphi 0, %s96
      %s98 = sphi 0, %s96
      %s99 = sphi 0, %s98
      %s113 = sphi 0, %s99
      %s117 = sphi 0, %s117
      %s119 = sphi 0, %s117
      %s120 = sphi 0, %s119
      %s134 = sphi 0, %s120
    $region4: #{tpu_custom_call.1} parent=1 // loop_header_branch
      %19 = sbr.rel (%p17) target = $region8
    $region5: #{tpu_custom_call.1} parent=1 // loop_body
      %s21 = ssub.s32 %s16, 1
      %s22 = ssub.s32 %s16, 2
      %s23 = sadd.s32 %s16, 1
      %p24 = scmp.lt.s32.totalorder %s16, 1
      %s25 = scalar_select %p24, %s16, 1
      %p26 = scmp.lt.s32.totalorder %s23, 1
      %s27 = scalar_select %p26, %s23, 1
      %s28 = ssub.s32 %s25, %s27
      %p29 = scmp.eq.s32.totalorder %s28, 0
      %s31 = sadd.s32 %s30, 1
      %s32 = scalar_select %p29, %s30, %s31
      %p35 = pneg %p29
      %p36 = scmp.eq.s32.totalorder %s16, 2
      %p37 = por %p35, %p36
      %p38 = scmp.ne.s32.totalorder %s30, %s33
      %p39 = scmp.eq.s32.totalorder %s16, 0
      %p40 = por %p38, %p39
      %p41 = scmp.ne.s32.totalorder %s30, %s33
      %p42 = scmp.eq.s32.totalorder %s21, 2
      %p43 = por %p41, %p42
      %p44 = scmp.ne.s32.totalorder %s33, %s34
      %p45 = scmp.eq.s32.totalorder %s21, 0
      %p46 = por %p44, %p45
      %p47 = scmp.ne.s32.totalorder %s33, %s34
      %p48 = scmp.eq.s32.totalorder %s22, 2
      %p49 = por %p47, %p48
      %p51 = scmp.ne.s32.totalorder %s34, %s50
      %p52 = scmp.eq.s32.totalorder %s22, 0
      %p53 = por %p51, %p52
      %s55 = sadd.s32 %s54, 1
      %p58 = scmp.eq.s32.totalorder %s16, 2
      %p59 = scmp.ne.s32.totalorder %s54, %s56
      %p60 = scmp.eq.s32.totalorder %s16, 0
      %p61 = por %p59, %p60
      %p62 = scmp.ne.s32.totalorder %s54, %s56
      %p63 = scmp.eq.s32.totalorder %s21, 2
      %p64 = por %p62, %p63
      %p65 = scmp.ne.s32.totalorder %s56, %s57
      %p66 = scmp.eq.s32.totalorder %s21, 0
      %p67 = por %p65, %p66
      %p68 = scmp.ne.s32.totalorder %s56, %s57
      %p69 = scmp.eq.s32.totalorder %s22, 2
      %p70 = por %p68, %p69
      %p72 = scmp.ne.s32.totalorder %s57, %s71
      %p73 = scmp.eq.s32.totalorder %s22, 0
      %p74 = por %p72, %p73
      %s76 = sadd.s32 %s75, 1
      %p79 = scmp.eq.s32.totalorder %s16, 2
      %p80 = scmp.ne.s32.totalorder %s75, %s77
      %p81 = scmp.eq.s32.totalorder %s16, 0
      %p82 = por %p80, %p81
      %p83 = scmp.ne.s32.totalorder %s75, %s77
      %p84 = scmp.eq.s32.totalorder %s21, 2
      %p85 = por %p83, %p84
      %p86 = scmp.ne.s32.totalorder %s77, %s78
      %p87 = scmp.eq.s32.totalorder %s21, 0
      %p88 = por %p86, %p87
      %p89 = scmp.ne.s32.totalorder %s77, %s78
      %p90 = scmp.eq.s32.totalorder %s22, 2
      %p91 = por %p89, %p90
      %p93 = scmp.ne.s32.totalorder %s78, %s92
      %p94 = scmp.eq.s32.totalorder %s22, 0
      %p95 = por %p93, %p94
      %s97 = sadd.s32 %s96, 1
      %p100 = scmp.eq.s32.totalorder %s16, 2
      %p101 = scmp.ne.s32.totalorder %s96, %s98
      %p102 = scmp.eq.s32.totalorder %s16, 0
      %p103 = por %p101, %p102
      %p104 = scmp.ne.s32.totalorder %s96, %s98
      %p105 = scmp.eq.s32.totalorder %s21, 2
      %p106 = por %p104, %p105
      %p107 = scmp.ne.s32.totalorder %s98, %s99
      %p108 = scmp.eq.s32.totalorder %s21, 0
      %p109 = por %p107, %p108
      %p110 = scmp.ne.s32.totalorder %s98, %s99
      %p111 = scmp.eq.s32.totalorder %s22, 2
      %p112 = por %p110, %p111
      %p114 = scmp.ne.s32.totalorder %s99, %s113
      %p115 = scmp.eq.s32.totalorder %s22, 0
      %p116 = por %p114, %p115
      %s118 = sadd.s32 %s117, 1
      %p121 = scmp.eq.s32.totalorder %s16, 2
      %p122 = scmp.ne.s32.totalorder %s117, %s119
      %p123 = scmp.eq.s32.totalorder %s16, 0
      %p124 = por %p122, %p123
      %p125 = scmp.ne.s32.totalorder %s117, %s119
      %p126 = scmp.eq.s32.totalorder %s21, 2
      %p127 = por %p125, %p126
      %p128 = scmp.ne.s32.totalorder %s119, %s120
      %p129 = scmp.eq.s32.totalorder %s21, 0
      %p130 = por %p128, %p129
      %p131 = scmp.ne.s32.totalorder %s119, %s120
      %p132 = scmp.eq.s32.totalorder %s22, 2
      %p133 = por %p131, %p132
      %p135 = scmp.ne.s32.totalorder %s120, %s134
      %p136 = scmp.eq.s32.totalorder %s22, 0
      %p137 = por %p135, %p136
      %p138 = scmp.le.s32.totalorder 1, %s16
      %p139 = scmp.lt.s32.totalorder %s16, 4
      %p140 = pnand %p138, %p139
      %p141 = pneg %p140
      // Predicated region
      $region9: #{tpu_custom_call.1} parent=5 // pred_check
        _
      $region10: #{tpu_custom_call.1} parent=5 // pred_check_branch
        %143 = sbr.rel (%p140) target = $region12
      $region11: #{tpu_custom_call.1} parent=5 // pred_region
        %s144 = ssub.s32 %s16, 1
        // Predicated region
        $region13: #{tpu_custom_call.1} parent=11 // pred_check
          %p145 = pneg %p67
        $region14: #{tpu_custom_call.1} parent=11 // pred_check_branch
          %147 = sbr.rel (%p145) target = $region16
        $region15: #{tpu_custom_call.1} parent=11 // pred_region
          %149 = vsyncadd [#allocation9], 0
          %s150 = sshll.u32 %s1, 4
          %s151 = int_to_ptr.hbm [resolvable:$true] %s150
          %s152 = sshll.u32 [#allocation8], 4
          %s153 = int_to_ptr.vmem [resolvable:$true] %s152
          %158 = dma.hbm_to_vmem [thread:$0]  %s151, 4096, %s153, [#allocation9], 512, 512, 32
        $region16: #{tpu_custom_call.1} parent=11 // pred_fallthru
          _
        // Predicated region
        $region17: #{tpu_custom_call.1} parent=11 // pred_check
          %p159 = pneg %p88
        $region18: #{tpu_custom_call.1} parent=11 // pred_check_branch
          %161 = sbr.rel (%p159) target = $region20
        $region19: #{tpu_custom_call.1} parent=11 // pred_region
          %163 = vsyncadd [#allocation9], 0
          %s164 = sshll.u32 %s2, 4
          %s165 = int_to_ptr.hbm [resolvable:$true] %s164
          %s166 = sshll.u32 [#allocation10], 4
          %s167 = int_to_ptr.vmem [resolvable:$true] %s166
          %172 = dma.hbm_to_vmem [thread:$0]  %s165, 8192, %s167, [#allocation9], 512, 512, 32
        $region20: #{tpu_custom_call.1} parent=11 // pred_fallthru
          _
        // Predicated region
        $region21: #{tpu_custom_call.1} parent=11 // pred_check
          %p173 = pneg %p109
        $region22: #{tpu_custom_call.1} parent=11 // pred_check_branch
          %175 = sbr.rel (%p173) target = $region24
        $region23: #{tpu_custom_call.1} parent=11 // pred_region
          %177 = vsyncadd [#allocation12], 0
          %s179 = sshll.u32 %s3, 4
          %s180 = int_to_ptr.hbm [resolvable:$true] %s179
          %s181 = sshll.u32 [#allocation11], 4
          %s182 = int_to_ptr.vmem [resolvable:$true] %s181
          %184 = dma.hbm_to_vmem [thread:$0]  %s180, 64, %s182, [#allocation12]
        $region24: #{tpu_custom_call.1} parent=11 // pred_fallthru
          _
      $region12: #{tpu_custom_call.1} parent=5 // pred_fallthru
        _
      %p185 = scmp.lt.s32.totalorder %s16, 3
      // Predicated region
      $region25: #{tpu_custom_call.1} parent=5 // pred_check
        %p186 = pneg %p185
      $region26: #{tpu_custom_call.1} parent=5 // pred_check_branch
        %188 = sbr.rel (%p186) target = $region28
      $region27: #{tpu_custom_call.1} parent=5 // pred_region
        // Predicated region
        $region29: #{tpu_custom_call.1} parent=27 // pred_check
          %p189 = pneg %p40
        $region30: #{tpu_custom_call.1} parent=27 // pred_check_branch
          %191 = sbr.rel (%p189) target = $region32
        $region31: #{tpu_custom_call.1} parent=27 // pred_region
          %s192 = sand.u32 %s30, 1
          %s193 = scalar_lea.sflag [#allocation6], %s192
          %s194 = sand.u32 %s30, 1
          %s195 = smul.addr %s194, 32
          %s196 = scalar_lea.vmem [#allocation5], %s195
          %p197 = scmp.lt.s32.totalorder %s16, 1
          %s198 = scalar_select %p197, %s16, 1
          %s199 = smul.u32 4, %s198
          %201 = vsyncadd %s193, 0
          %s202 = smul.addr %s199, 8
          %s203 = scalar_lea.hbm %s0, %s202
          %s204 = sshll.u32 %s203, 4
          %s205 = int_to_ptr.hbm [resolvable:$true] %s204
          %s206 = sshll.u32 %s196, 4
          %s207 = int_to_ptr.vmem [resolvable:$true] %s206
          %212 = dma.hbm_to_vmem [thread:$0]  %s205, 512, %s207, %s193, 128, 128, 8
        $region32: #{tpu_custom_call.1} parent=27 // pred_fallthru
          _
      $region28: #{tpu_custom_call.1} parent=5 // pred_fallthru
        _
      %p213 = scmp.le.s32.totalorder 1, %s16
      %p214 = scmp.lt.s32.totalorder %s16, 4
      %p215 = pnand %p213, %p214
      %p216 = pneg %p215
      // Predicated region
      $region33: #{tpu_custom_call.1} parent=5 // pred_check
        _
      $region34: #{tpu_custom_call.1} parent=5 // pred_check_branch
        %218 = sbr.rel (%p215) target = $region36
      $region35: #{tpu_custom_call.1} parent=5 // pred_region
        %s219 = ssub.s32 %s16, 1
        %s220 = sand.u32 %s33, 1
        %s221 = scalar_lea.sflag [#allocation6], %s220
        %s222 = sand.u32 %s33, 1
        %s223 = smul.addr %s222, 32
        %s224 = scalar_lea.vmem [#allocation5], %s223
        // Predicated region
        $region37: #{tpu_custom_call.1} parent=35 // pred_check
          %p225 = pneg %p46
        $region38: #{tpu_custom_call.1} parent=35 // pred_check_branch
          %227 = sbr.rel (%p225) target = $region40
        $region39: #{tpu_custom_call.1} parent=35 // pred_region
          %229 = dma.done %s221, 512
        $region40: #{tpu_custom_call.1} parent=35 // pred_fallthru
          _
        // Predicated region
        $region41: #{tpu_custom_call.1} parent=35 // pred_check
          %p230 = pneg %p67
        $region42: #{tpu_custom_call.1} parent=35 // pred_check_branch
          %232 = sbr.rel (%p230) target = $region44
        $region43: #{tpu_custom_call.1} parent=35 // pred_region
          %234 = dma.done [#allocation9], 4096
        $region44: #{tpu_custom_call.1} parent=35 // pred_fallthru
          _
        // Predicated region
        $region45: #{tpu_custom_call.1} parent=35 // pred_check
          %p235 = pneg %p88
        $region46: #{tpu_custom_call.1} parent=35 // pred_check_branch
          %237 = sbr.rel (%p235) target = $region48
        $region47: #{tpu_custom_call.1} parent=35 // pred_region
          %239 = dma.done [#allocation9], 8192
        $region48: #{tpu_custom_call.1} parent=35 // pred_fallthru
          _
        // Predicated region
        $region49: #{tpu_custom_call.1} parent=35 // pred_check
          %p240 = pneg %p109
        $region50: #{tpu_custom_call.1} parent=35 // pred_check_branch
          %242 = sbr.rel (%p240) target = $region52
        $region51: #{tpu_custom_call.1} parent=35 // pred_region
          %244 = dma.done [#allocation12], 64
        $region52: #{tpu_custom_call.1} parent=35 // pred_fallthru
          _
        %s245 = sand.u32 %s33, 1
        %s246 = scalar_lea.sflag [#allocation6], %s245
        %s247 = sand.u32 %s33, 1
        %s248 = smul.addr %s247, 32
        %s249 = scalar_lea.vmem [#allocation5], %s248
        %p250 = pneg %p46
        %p251 = pneg %p43
        %p252 = pneg %p67
        %p253 = pneg %p64
        %p254 = pneg %p88
        %p255 = pneg %p85
        %p256 = pneg %p109
        %p257 = pneg %p106
        %p258 = pneg %p130
        %p259 = pneg %p127
        %p260 = scmp.lt.s32.totalorder %s21, 1
        %s261 = scalar_select %p260, %s21, 1
        %s262 = smul.u32 4, %s261
        %p263 = scmp.lt.s32.totalorder %s21, 0
        %s264 = ssub.s32 0, %s21
        %s265 = scalar_select %p263, %s264, %s21
        %s266 = sand.u32 %s265, 1
        %s267 = ssub.s32 0, %s266
        %s268 = scalar_select %p263, %s267, %s266
        %p269 = scmp.ne.s32.totalorder %s268, 0
        %p270 = scmp.lt.s32.totalorder %s268, 0
        %p271 = pnand %p270, %p269
        %p272 = pneg %p271
        %s273 = sadd.s32 %s268, 2
        %s274 = scalar_select %p272, %s273, %s268
        %s275 = ssub.s32 1, %s274
        %p276 = scmp.eq.s32.totalorder %s21, 0
        // Predicated region
        $region53: #{tpu_custom_call.1} parent=35 // pred_check
          %p277 = pneg %p276
        $region54: #{tpu_custom_call.1} parent=35 // pred_check_branch
          %279 = sbr.rel (%p277) target = $region56
        $region55: #{tpu_custom_call.1} parent=35 // pred_region
          %280 = vst [vmem:[#allocation2] sm:$0xff] 0.0
          %281 = vst [vmem:[#allocation3] sm:$0xff] 0.0
          %v282 = vld [vmem:[%s224] sm:$0xff]
          %v283 = vld [vmem:[%s224 + $0x8] sm:$0xff]
          %v284 = vld [vmem:[%s224 + $0x10] sm:$0xff]
          %v285 = vld [vmem:[%s224 + $0x18] sm:$0xff]
          %v286 = vld [vmem:[#allocation8] sm:$0xff]
          %v287 = vld [vmem:[#allocation8 + $0x8] sm:$0xff]
          %v288 = vld [vmem:[#allocation8 + $0x10] sm:$0xff]
          %v289 = vld [vmem:[#allocation8 + $0x18] sm:$0xff]
          %v290 = vld [vmem:[#allocation8 + $0x20] sm:$0xff]
          %v291 = vld [vmem:[#allocation8 + $0x28] sm:$0xff]
          %v292 = vld [vmem:[#allocation8 + $0x30] sm:$0xff]
          %v293 = vld [vmem:[#allocation8 + $0x38] sm:$0xff]
          %v294 = vld [vmem:[#allocation8 + $0x40] sm:$0xff]
          %v295 = vld [vmem:[#allocation8 + $0x48] sm:$0xff]
          %v296 = vld [vmem:[#allocation8 + $0x50] sm:$0xff]
          %v297 = vld [vmem:[#allocation8 + $0x58] sm:$0xff]
          %v298 = vld [vmem:[#allocation8 + $0x60] sm:$0xff]
          %v299 = vld [vmem:[#allocation8 + $0x68] sm:$0xff]
          %v300 = vld [vmem:[#allocation8 + $0x70] sm:$0xff]
          %v301 = vld [vmem:[#allocation8 + $0x78] sm:$0xff]
          %v302 = vld [vmem:[#allocation8 + $0x80] sm:$0xff]
          %v303 = vld [vmem:[#allocation8 + $0x88] sm:$0xff]
          %v304 = vld [vmem:[#allocation8 + $0x90] sm:$0xff]
          %v305 = vld [vmem:[#allocation8 + $0x98] sm:$0xff]
          %v306 = vld [vmem:[#allocation8 + $0xa0] sm:$0xff]
          %v307 = vld [vmem:[#allocation8 + $0xa8] sm:$0xff]
          %v308 = vld [vmem:[#allocation8 + $0xb0] sm:$0xff]
          %v309 = vld [vmem:[#allocation8 + $0xb8] sm:$0xff]
          %v310 = vld [vmem:[#allocation8 + $0xc0] sm:$0xff]
          %v311 = vld [vmem:[#allocation8 + $0xc8] sm:$0xff]
          %v312 = vld [vmem:[#allocation8 + $0xd0] sm:$0xff]
          %v313 = vld [vmem:[#allocation8 + $0xd8] sm:$0xff]
          %v314 = vld [vmem:[#allocation8 + $0xe0] sm:$0xff]
          %v315 = vld [vmem:[#allocation8 + $0xe8] sm:$0xff]
          %v316 = vld [vmem:[#allocation8 + $0xf0] sm:$0xff]
          %v317 = vld [vmem:[#allocation8 + $0xf8] sm:$0xff]
          %v318 = vld [vmem:[#allocation11] sm:$0xf]
          %v320 = vperm.slane %v318, 0
          %v321 = vperm.slane %v318, 1
          %v322 = vperm.slane %v318, 2
          %v323 = vperm.slane %v318, 3
          %vm328 = vcmask 523264
          %v330 = vsel %vm328, %v282, 0
          %v333 = vsel %vm328, %v283, 0
          %v336 = vsel %vm328, %v284, 0
          %v339 = vsel %vm328, %v285, 0
          %341 = vmatpush.msra.mxu0 0.0
          %342 = vmatpush.msra.mxu0 0.0
          %343 = vmatpush.msra.mxu0 0.0
          %344 = vmatpush.msra.mxu0 0.0
          %345 = vmatpush.msra.mxu0 0.0
          %346 = vmatpush.msra.mxu0 0.0
          %347 = vmatpush.msra.mxu0 0.0
          %348 = vmatpush.msra.mxu0 0.0
          %349 = vmatpush.msra.mxu0 %v314
          %350 = vmatpush.msra.mxu0 %v310
          %351 = vmatpush.msra.mxu0 %v306
          %352 = vmatpush.msra.mxu0 %v302
          %353 = vmatpush.msra.mxu0 %v298
          %354 = vmatpush.msra.mxu0 %v294
          %355 = vmatpush.msra.mxu0 %v290
          %356 = vmatpush.msra.mxu0 %v286
          %357 = vmatmul.f32.gmra.mxu0 %v330
          %v358 = vpop.f32.mrf.mxu0
          %v359 = vadd.f32 %v320, %v358
          %360 = vmatmul.f32.gmra.mxu0 %v333
          %v361 = vpop.f32.mrf.mxu0
          %v362 = vadd.f32 %v320, %v361
          %363 = vmatmul.f32.gmra.mxu0 %v336
          %v364 = vpop.f32.mrf.mxu0
          %v365 = vadd.f32 %v320, %v364
          %366 = vmatmul.f32.gmra.mxu0 %v339
          %v367 = vpop.f32.mrf.mxu0
          %v368 = vadd.f32 %v320, %v367
          %369 = vdwg.mxu0
          %370 = vmatpush.msra.mxu0 0.0
          %371 = vmatpush.msra.mxu0 0.0
          %372 = vmatpush.msra.mxu0 0.0
          %373 = vmatpush.msra.mxu0 0.0
          %374 = vmatpush.msra.mxu0 0.0
          %375 = vmatpush.msra.mxu0 0.0
          %376 = vmatpush.msra.mxu0 0.0
          %377 = vmatpush.msra.mxu0 0.0
          %378 = vmatpush.msra.mxu0 %v315
          %379 = vmatpush.msra.mxu0 %v311
          %380 = vmatpush.msra.mxu0 %v307
          %381 = vmatpush.msra.mxu0 %v303
          %382 = vmatpush.msra.mxu0 %v299
          %383 = vmatpush.msra.mxu0 %v295
          %384 = vmatpush.msra.mxu0 %v291
          %385 = vmatpush.msra.mxu0 %v287
          %386 = vmatmul.f32.gmra.mxu0 %v330
          %v387 = vpop.f32.mrf.mxu0
          %v388 = vadd.f32 %v321, %v387
          %389 = vmatmul.f32.gmra.mxu0 %v333
          %v390 = vpop.f32.mrf.mxu0
          %v391 = vadd.f32 %v321, %v390
          %392 = vmatmul.f32.gmra.mxu0 %v336
          %v393 = vpop.f32.mrf.mxu0
          %v394 = vadd.f32 %v321, %v393
          %395 = vmatmul.f32.gmra.mxu0 %v339
          %v396 = vpop.f32.mrf.mxu0
          %v397 = vadd.f32 %v321, %v396
          %398 = vdwg.mxu0
          %399 = vmatpush.msra.mxu0 0.0
          %400 = vmatpush.msra.mxu0 0.0
          %401 = vmatpush.msra.mxu0 0.0
          %402 = vmatpush.msra.mxu0 0.0
          %403 = vmatpush.msra.mxu0 0.0
          %404 = vmatpush.msra.mxu0 0.0
          %405 = vmatpush.msra.mxu0 0.0
          %406 = vmatpush.msra.mxu0 0.0
          %407 = vmatpush.msra.mxu0 %v316
          %408 = vmatpush.msra.mxu0 %v312
          %409 = vmatpush.msra.mxu0 %v308
          %410 = vmatpush.msra.mxu0 %v304
          %411 = vmatpush.msra.mxu0 %v300
          %412 = vmatpush.msra.mxu0 %v296
          %413 = vmatpush.msra.mxu0 %v292
          %414 = vmatpush.msra.mxu0 %v288
          %415 = vmatmul.f32.gmra.mxu0 %v330
          %v416 = vpop.f32.mrf.mxu0
          %v417 = vadd.f32 %v322, %v416
          %418 = vmatmul.f32.gmra.mxu0 %v333
          %v419 = vpop.f32.mrf.mxu0
          %v420 = vadd.f32 %v322, %v419
          %421 = vmatmul.f32.gmra.mxu0 %v336
          %v422 = vpop.f32.mrf.mxu0
          %v423 = vadd.f32 %v322, %v422
          %424 = vmatmul.f32.gmra.mxu0 %v339
          %v425 = vpop.f32.mrf.mxu0
          %v426 = vadd.f32 %v322, %v425
          %427 = vdwg.mxu0
          %428 = vmatpush.msra.mxu0 0.0
          %429 = vmatpush.msra.mxu0 0.0
          %430 = vmatpush.msra.mxu0 0.0
          %431 = vmatpush.msra.mxu0 0.0
          %432 = vmatpush.msra.mxu0 0.0
          %433 = vmatpush.msra.mxu0 0.0
          %434 = vmatpush.msra.mxu0 0.0
          %435 = vmatpush.msra.mxu0 0.0
          %436 = vmatpush.msra.mxu0 %v317
          %437 = vmatpush.msra.mxu0 %v313
          %438 = vmatpush.msra.mxu0 %v309
          %439 = vmatpush.msra.mxu0 %v305
          %440 = vmatpush.msra.mxu0 %v301
          %441 = vmatpush.msra.mxu0 %v297
          %442 = vmatpush.msra.mxu0 %v293
          %443 = vmatpush.msra.mxu0 %v289
          %444 = vmatmul.f32.gmra.mxu0 %v330
          %v445 = vpop.f32.mrf.mxu0
          %v446 = vadd.f32 %v323, %v445
          %447 = vmatmul.f32.gmra.mxu0 %v333
          %v448 = vpop.f32.mrf.mxu0
          %v449 = vadd.f32 %v323, %v448
          %450 = vmatmul.f32.gmra.mxu0 %v336
          %v451 = vpop.f32.mrf.mxu0
          %v452 = vadd.f32 %v323, %v451
          %453 = vmatmul.f32.gmra.mxu0 %v339
          %v454 = vpop.f32.mrf.mxu0
          %v455 = vadd.f32 %v323, %v454
          %456 = vdwg.mxu0
          %s457 = smul.u32 %s274, 16
          %s458 = smul.addr %s457, 8
          %s459 = scalar_lea.vmem [#allocation4], %s458
          %460 = vst [vmem:[%s459] sm:$0xff] %v359
          %461 = vst [vmem:[%s459 + $0x8] sm:$0xff] %v388
          %462 = vst [vmem:[%s459 + $0x10] sm:$0xff] %v417
          %463 = vst [vmem:[%s459 + $0x18] sm:$0xff] %v446
          %464 = vst [vmem:[%s459 + $0x20] sm:$0xff] %v362
          %465 = vst [vmem:[%s459 + $0x28] sm:$0xff] %v391
          %466 = vst [vmem:[%s459 + $0x30] sm:$0xff] %v420
          %467 = vst [vmem:[%s459 + $0x38] sm:$0xff] %v449
          %468 = vst [vmem:[%s459 + $0x40] sm:$0xff] %v365
          %469 = vst [vmem:[%s459 + $0x48] sm:$0xff] %v394
          %470 = vst [vmem:[%s459 + $0x50] sm:$0xff] %v423
          %471 = vst [vmem:[%s459 + $0x58] sm:$0xff] %v452
          %472 = vst [vmem:[%s459 + $0x60] sm:$0xff] %v368
          %473 = vst [vmem:[%s459 + $0x68] sm:$0xff] %v397
          %474 = vst [vmem:[%s459 + $0x70] sm:$0xff] %v426
          %475 = vst [vmem:[%s459 + $0x78] sm:$0xff] %v455
        $region56: #{tpu_custom_call.1} parent=35 // pred_fallthru
          _
        %p476 = scmp.ge.s32.totalorder %s21, 1
        %p477 = scmp.lt.s32.totalorder %s21, 2
        %p478 = pnand %p476, %p477
        %p479 = pneg %p478
        // Predicated region
        $region57: #{tpu_custom_call.1} parent=35 // pred_check
          _
        $region58: #{tpu_custom_call.1} parent=35 // pred_check_branch
          %481 = sbr.rel (%p478) target = $region60
        $region59: #{tpu_custom_call.1} parent=35 // pred_region
          %v482 = vld [vmem:[#allocation2] sm:$0xff]
          %v483 = vld [vmem:[#allocation3] sm:$0xff]
          %s484 = smul.u32 %s275, 16
          %s485 = smul.addr %s484, 8
          %s486 = scalar_lea.vmem [#allocation4], %s485
          %v487 = vld [vmem:[%s486] sm:$0xff]
          %v488 = vld [vmem:[%s486 + $0x8] sm:$0xff]
          %v489 = vld [vmem:[%s486 + $0x10] sm:$0xff]
          %v490 = vld [vmem:[%s486 + $0x18] sm:$0xff]
          %v491 = vld [vmem:[#allocation10] sm:$0xff]
          %v492 = vld [vmem:[#allocation10 + $0x8] sm:$0xff]
          %v493 = vld [vmem:[#allocation10 + $0x10] sm:$0xff]
          %v494 = vld [vmem:[#allocation10 + $0x18] sm:$0xff]
          %v495 = vld [vmem:[#allocation10 + $0x20] sm:$0xff]
          %v496 = vld [vmem:[#allocation10 + $0x28] sm:$0xff]
          %v497 = vld [vmem:[#allocation10 + $0x30] sm:$0xff]
          %v498 = vld [vmem:[#allocation10 + $0x38] sm:$0xff]
          %v499 = vld [vmem:[#allocation10 + $0x40] sm:$0xff]
          %v500 = vld [vmem:[#allocation10 + $0x48] sm:$0xff]
          %v501 = vld [vmem:[#allocation10 + $0x50] sm:$0xff]
          %v502 = vld [vmem:[#allocation10 + $0x58] sm:$0xff]
          %v503 = vld [vmem:[#allocation10 + $0x60] sm:$0xff]
          %v504 = vld [vmem:[#allocation10 + $0x68] sm:$0xff]
          %v505 = vld [vmem:[#allocation10 + $0x70] sm:$0xff]
          %v506 = vld [vmem:[#allocation10 + $0x78] sm:$0xff]
          %v507 = vld [vmem:[#allocation10 + $0x80] sm:$0xff]
          %v508 = vld [vmem:[#allocation10 + $0x88] sm:$0xff]
          %v509 = vld [vmem:[#allocation10 + $0x90] sm:$0xff]
          %v510 = vld [vmem:[#allocation10 + $0x98] sm:$0xff]
          %v511 = vld [vmem:[#allocation10 + $0xa0] sm:$0xff]
          %v512 = vld [vmem:[#allocation10 + $0xa8] sm:$0xff]
          %v513 = vld [vmem:[#allocation10 + $0xb0] sm:$0xff]
          %v514 = vld [vmem:[#allocation10 + $0xb8] sm:$0xff]
          %v515 = vld [vmem:[#allocation10 + $0xc0] sm:$0xff]
          %v516 = vld [vmem:[#allocation10 + $0xc8] sm:$0xff]
          %v517 = vld [vmem:[#allocation10 + $0xd0] sm:$0xff]
          %v518 = vld [vmem:[#allocation10 + $0xd8] sm:$0xff]
          %v519 = vld [vmem:[#allocation10 + $0xe0] sm:$0xff]
          %v520 = vld [vmem:[#allocation10 + $0xe8] sm:$0xff]
          %v521 = vld [vmem:[#allocation10 + $0xf0] sm:$0xff]
          %v522 = vld [vmem:[#allocation10 + $0xf8] sm:$0xff]
          %v523 = vld [vmem:[#allocation10 + $0x100] sm:$0xff]
          %v524 = vld [vmem:[#allocation10 + $0x108] sm:$0xff]
          %v525 = vld [vmem:[#allocation10 + $0x110] sm:$0xff]
          %v526 = vld [vmem:[#allocation10 + $0x118] sm:$0xff]
          %v527 = vld [vmem:[#allocation10 + $0x120] sm:$0xff]
          %v528 = vld [vmem:[#allocation10 + $0x128] sm:$0xff]
          %v529 = vld [vmem:[#allocation10 + $0x130] sm:$0xff]
          %v530 = vld [vmem:[#allocation10 + $0x138] sm:$0xff]
          %v531 = vld [vmem:[#allocation10 + $0x140] sm:$0xff]
          %v532 = vld [vmem:[#allocation10 + $0x148] sm:$0xff]
          %v533 = vld [vmem:[#allocation10 + $0x150] sm:$0xff]
          %v534 = vld [vmem:[#allocation10 + $0x158] sm:$0xff]
          %v535 = vld [vmem:[#allocation10 + $0x160] sm:$0xff]
          %v536 = vld [vmem:[#allocation10 + $0x168] sm:$0xff]
          %v537 = vld [vmem:[#allocation10 + $0x170] sm:$0xff]
          %v538 = vld [vmem:[#allocation10 + $0x178] sm:$0xff]
          %v539 = vld [vmem:[#allocation10 + $0x180] sm:$0xff]
          %v540 = vld [vmem:[#allocation10 + $0x188] sm:$0xff]
          %v541 = vld [vmem:[#allocation10 + $0x190] sm:$0xff]
          %v542 = vld [vmem:[#allocation10 + $0x198] sm:$0xff]
          %v543 = vld [vmem:[#allocation10 + $0x1a0] sm:$0xff]
          %v544 = vld [vmem:[#allocation10 + $0x1a8] sm:$0xff]
          %v545 = vld [vmem:[#allocation10 + $0x1b0] sm:$0xff]
          %v546 = vld [vmem:[#allocation10 + $0x1b8] sm:$0xff]
          %v547 = vld [vmem:[#allocation10 + $0x1c0] sm:$0xff]
          %v548 = vld [vmem:[#allocation10 + $0x1c8] sm:$0xff]
          %v549 = vld [vmem:[#allocation10 + $0x1d0] sm:$0xff]
          %v550 = vld [vmem:[#allocation10 + $0x1d8] sm:$0xff]
          %v551 = vld [vmem:[#allocation10 + $0x1e0] sm:$0xff]
          %v552 = vld [vmem:[#allocation10 + $0x1e8] sm:$0xff]
          %v553 = vld [vmem:[#allocation10 + $0x1f0] sm:$0xff]
          %v554 = vld [vmem:[#allocation10 + $0x1f8] sm:$0xff]
          %555 = vmatpush.msra.mxu0 %v551
          %556 = vmatpush.msra.mxu0 %v547
          %557 = vmatpush.msra.mxu0 %v543
          %558 = vmatpush.msra.mxu0 %v539
          %559 = vmatpush.msra.mxu0 %v535
          %560 = vmatpush.msra.mxu0 %v531
          %561 = vmatpush.msra.mxu0 %v527
          %562 = vmatpush.msra.mxu0 %v523
          %563 = vmatpush.msra.mxu0 %v519
          %564 = vmatpush.msra.mxu0 %v515
          %565 = vmatpush.msra.mxu0 %v511
          %566 = vmatpush.msra.mxu0 %v507
          %567 = vmatpush.msra.mxu0 %v503
          %568 = vmatpush.msra.mxu0 %v499
          %569 = vmatpush.msra.mxu0 %v495
          %570 = vmatpush.msra.mxu0 %v491
          %571 = vmatmul.f32.gmra.mxu0 %v482
          %v572 = vpop.f32.mrf.mxu0
          %v573 = vadd.f32 0.0, %v572
          %574 = vdwg.mxu0
          %575 = vmatpush.msra.mxu0 %v552
          %576 = vmatpush.msra.mxu0 %v548
          %577 = vmatpush.msra.mxu0 %v544
          %578 = vmatpush.msra.mxu0 %v540
          %579 = vmatpush.msra.mxu0 %v536
          %580 = vmatpush.msra.mxu0 %v532
          %581 = vmatpush.msra.mxu0 %v528
          %582 = vmatpush.msra.mxu0 %v524
          %583 = vmatpush.msra.mxu0 %v520
          %584 = vmatpush.msra.mxu0 %v516
          %585 = vmatpush.msra.mxu0 %v512
          %586 = vmatpush.msra.mxu0 %v508
          %587 = vmatpush.msra.mxu0 %v504
          %588 = vmatpush.msra.mxu0 %v500
          %589 = vmatpush.msra.mxu0 %v496
          %590 = vmatpush.msra.mxu0 %v492
          %591 = vmatmul.f32.gmra.mxu0 %v482
          %v592 = vpop.f32.mrf.mxu0
          %v593 = vadd.f32 0.0, %v592
          %594 = vdwg.mxu0
          %595 = vmatpush.msra.mxu0 %v553
          %596 = vmatpush.msra.mxu0 %v549
          %597 = vmatpush.msra.mxu0 %v545
          %598 = vmatpush.msra.mxu0 %v541
          %599 = vmatpush.msra.mxu0 %v537
          %600 = vmatpush.msra.mxu0 %v533
          %601 = vmatpush.msra.mxu0 %v529
          %602 = vmatpush.msra.mxu0 %v525
          %603 = vmatpush.msra.mxu0 %v521
          %604 = vmatpush.msra.mxu0 %v517
          %605 = vmatpush.msra.mxu0 %v513
          %606 = vmatpush.msra.mxu0 %v509
          %607 = vmatpush.msra.mxu0 %v505
          %608 = vmatpush.msra.mxu0 %v501
          %609 = vmatpush.msra.mxu0 %v497
          %610 = vmatpush.msra.mxu0 %v493
          %611 = vmatmul.f32.gmra.mxu0 %v482
          %v612 = vpop.f32.mrf.mxu0
          %v613 = vadd.f32 0.0, %v612
          %614 = vdwg.mxu0
          %615 = vmatpush.msra.mxu0 %v554
          %616 = vmatpush.msra.mxu0 %v550
          %617 = vmatpush.msra.mxu0 %v546
          %618 = vmatpush.msra.mxu0 %v542
          %619 = vmatpush.msra.mxu0 %v538
          %620 = vmatpush.msra.mxu0 %v534
          %621 = vmatpush.msra.mxu0 %v530
          %622 = vmatpush.msra.mxu0 %v526
          %623 = vmatpush.msra.mxu0 %v522
          %624 = vmatpush.msra.mxu0 %v518
          %625 = vmatpush.msra.mxu0 %v514
          %626 = vmatpush.msra.mxu0 %v510
          %627 = vmatpush.msra.mxu0 %v506
          %628 = vmatpush.msra.mxu0 %v502
          %629 = vmatpush.msra.mxu0 %v498
          %630 = vmatpush.msra.mxu0 %v494
          %631 = vmatmul.f32.gmra.mxu0 %v482
          %v632 = vpop.f32.mrf.mxu0
          %v633 = vadd.f32 0.0, %v632
          %634 = vdwg.mxu0
          %v635 = vadd.f32 %v487, %v573
          %v636 = vadd.f32 %v488, %v593
          %v637 = vadd.f32 %v489, %v613
          %v638 = vadd.f32 %v490, %v633
          %v639 = vxor.u32 %v635, 2147483648
          %v640 = vmul.f32 %v639, 1.442695
          %v641 = vpow.pop %v640
          %v642 = vadd.f32 %v641, 1.0
          %v643 = vrcp.pop %v642
          %v644 = vmul.f32 %v642, %v643
          %v645 = vsub.f32 1.0, %v644
          %v646 = vmul.f32 %v643, %v645
          %v647 = vadd.f32 %v643, %v646
          %vm648 = vweird.f32 %v642
          %vm649 = vweird.f32 %v643
          %vm650 = vmor %vm648, %vm649
          %v651 = vsel %vm650, %v643, %v647
          %v652 = vand.u32 2147483647, %v642
          %vm653 = vcmp.eq.f32.partialorder %v652, 8.507059e+37
          %v654 = vand.u32 %v642, 2147483648
          %v655 = vor.u32 1.1754944e-38, %v654
          %v656 = vsel %vm653, %v655, %v651
          %v657 = vmul.f32 1.0, %v656
          %v658 = vxor.u32 %v636, 2147483648
          %v659 = vmul.f32 %v658, 1.442695
          %v660 = vpow.pop %v659
          %v661 = vadd.f32 %v660, 1.0
          %v662 = vrcp.pop %v661
          %v663 = vmul.f32 %v661, %v662
          %v664 = vsub.f32 1.0, %v663
          %v665 = vmul.f32 %v662, %v664
          %v666 = vadd.f32 %v662, %v665
          %vm667 = vweird.f32 %v661
          %vm668 = vweird.f32 %v662
          %vm669 = vmor %vm667, %vm668
          %v670 = vsel %vm669, %v662, %v666
          %v671 = vand.u32 2147483647, %v661
          %vm672 = vcmp.eq.f32.partialorder %v671, 8.507059e+37
          %v673 = vand.u32 %v661, 2147483648
          %v674 = vor.u32 1.1754944e-38, %v673
          %v675 = vsel %vm672, %v674, %v670
          %v676 = vmul.f32 1.0, %v675
          %v677 = vtanh.pop %v637
          %v678 = vxor.u32 %v638, 2147483648
          %v679 = vmul.f32 %v678, 1.442695
          %v680 = vpow.pop %v679
          %v681 = vadd.f32 %v680, 1.0
          %v682 = vrcp.pop %v681
          %v683 = vmul.f32 %v681, %v682
          %v684 = vsub.f32 1.0, %v683
          %v685 = vmul.f32 %v682, %v684
          %v686 = vadd.f32 %v682, %v685
          %vm687 = vweird.f32 %v681
          %vm688 = vweird.f32 %v682
          %vm689 = vmor %vm687, %vm688
          %v690 = vsel %vm689, %v682, %v686
          %v691 = vand.u32 2147483647, %v681
          %vm692 = vcmp.eq.f32.partialorder %v691, 8.507059e+37
          %v693 = vand.u32 %v681, 2147483648
          %v694 = vor.u32 1.1754944e-38, %v693
          %v695 = vsel %vm692, %v694, %v690
          %v696 = vmul.f32 1.0, %v695
          %v697 = vmul.f32 %v676, %v483
          %v698 = vmul.f32 %v657, %v677
          %v699 = vadd.f32 %v697, %v698
          %v700 = vtanh.pop %v699
          %v701 = vmul.f32 %v696, %v700
          %v702 = vld [vmem:[%s486 + $0x20] sm:$0xff]
          %v703 = vld [vmem:[%s486 + $0x28] sm:$0xff]
          %v704 = vld [vmem:[%s486 + $0x30] sm:$0xff]
          %v705 = vld [vmem:[%s486 + $0x38] sm:$0xff]
          %706 = vmatpush.msra.mxu0 %v551
          %707 = vmatpush.msra.mxu0 %v547
          %708 = vmatpush.msra.mxu0 %v543
          %709 = vmatpush.msra.mxu0 %v539
          %710 = vmatpush.msra.mxu0 %v535
          %711 = vmatpush.msra.mxu0 %v531
          %712 = vmatpush.msra.mxu0 %v527
          %713 = vmatpush.msra.mxu0 %v523
          %714 = vmatpush.msra.mxu0 %v519
          %715 = vmatpush.msra.mxu0 %v515
          %716 = vmatpush.msra.mxu0 %v511
          %717 = vmatpush.msra.mxu0 %v507
          %718 = vmatpush.msra.mxu0 %v503
          %719 = vmatpush.msra.mxu0 %v499
          %720 = vmatpush.msra.mxu0 %v495
          %721 = vmatpush.msra.mxu0 %v491
          %722 = vmatmul.f32.gmra.mxu0 %v701
          %v723 = vpop.f32.mrf.mxu0
          %v724 = vadd.f32 0.0, %v723
          %725 = vdwg.mxu0
          %726 = vmatpush.msra.mxu0 %v552
          %727 = vmatpush.msra.mxu0 %v548
          %728 = vmatpush.msra.mxu0 %v544
          %729 = vmatpush.msra.mxu0 %v540
          %730 = vmatpush.msra.mxu0 %v536
          %731 = vmatpush.msra.mxu0 %v532
          %732 = vmatpush.msra.mxu0 %v528
          %733 = vmatpush.msra.mxu0 %v524
          %734 = vmatpush.msra.mxu0 %v520
          %735 = vmatpush.msra.mxu0 %v516
          %736 = vmatpush.msra.mxu0 %v512
          %737 = vmatpush.msra.mxu0 %v508
          %738 = vmatpush.msra.mxu0 %v504
          %739 = vmatpush.msra.mxu0 %v500
          %740 = vmatpush.msra.mxu0 %v496
          %741 = vmatpush.msra.mxu0 %v492
          %742 = vmatmul.f32.gmra.mxu0 %v701
          %v743 = vpop.f32.mrf.mxu0
          %v744 = vadd.f32 0.0, %v743
          %745 = vdwg.mxu0
          %746 = vmatpush.msra.mxu0 %v553
          %747 = vmatpush.msra.mxu0 %v549
          %748 = vmatpush.msra.mxu0 %v545
          %749 = vmatpush.msra.mxu0 %v541
          %750 = vmatpush.msra.mxu0 %v537
          %751 = vmatpush.msra.mxu0 %v533
          %752 = vmatpush.msra.mxu0 %v529
          %753 = vmatpush.msra.mxu0 %v525
          %754 = vmatpush.msra.mxu0 %v521
          %755 = vmatpush.msra.mxu0 %v517
          %756 = vmatpush.msra.mxu0 %v513
          %757 = vmatpush.msra.mxu0 %v509
          %758 = vmatpush.msra.mxu0 %v505
          %759 = vmatpush.msra.mxu0 %v501
          %760 = vmatpush.msra.mxu0 %v497
          %761 = vmatpush.msra.mxu0 %v493
          %762 = vmatmul.f32.gmra.mxu0 %v701
          %v763 = vpop.f32.mrf.mxu0
          %v764 = vadd.f32 0.0, %v763
          %765 = vdwg.mxu0
          %766 = vmatpush.msra.mxu0 %v554
          %767 = vmatpush.msra.mxu0 %v550
          %768 = vmatpush.msra.mxu0 %v546
          %769 = vmatpush.msra.mxu0 %v542
          %770 = vmatpush.msra.mxu0 %v538
          %771 = vmatpush.msra.mxu0 %v534
          %772 = vmatpush.msra.mxu0 %v530
          %773 = vmatpush.msra.mxu0 %v526
          %774 = vmatpush.msra.mxu0 %v522
          %775 = vmatpush.msra.mxu0 %v518
          %776 = vmatpush.msra.mxu0 %v514
          %777 = vmatpush.msra.mxu0 %v510
          %778 = vmatpush.msra.mxu0 %v506
          %779 = vmatpush.msra.mxu0 %v502
          %780 = vmatpush.msra.mxu0 %v498
          %781 = vmatpush.msra.mxu0 %v494
          %782 = vmatmul.f32.gmra.mxu0 %v701
          %v783 = vpop.f32.mrf.mxu0
          %v784 = vadd.f32 0.0, %v783
          %785 = vdwg.mxu0
          %v786 = vadd.f32 %v702, %v724
          %v787 = vadd.f32 %v703, %v744
          %v788 = vadd.f32 %v704, %v764
          %v789 = vadd.f32 %v705, %v784
          %v790 = vxor.u32 %v786, 2147483648
          %v791 = vmul.f32 %v790, 1.442695
          %v792 = vpow.pop %v791
          %v793 = vadd.f32 %v792, 1.0
          %v794 = vrcp.pop %v793
          %v795 = vmul.f32 %v793, %v794
          %v796 = vsub.f32 1.0, %v795
          %v797 = vmul.f32 %v794, %v796
          %v798 = vadd.f32 %v794, %v797
          %vm799 = vweird.f32 %v793
          %vm800 = vweird.f32 %v794
          %vm801 = vmor %vm799, %vm800
          %v802 = vsel %vm801, %v794, %v798
          %v803 = vand.u32 2147483647, %v793
          %vm804 = vcmp.eq.f32.partialorder %v803, 8.507059e+37
          %v805 = vand.u32 %v793, 2147483648
          %v806 = vor.u32 1.1754944e-38, %v805
          %v807 = vsel %vm804, %v806, %v802
          %v808 = vmul.f32 1.0, %v807
          %v809 = vxor.u32 %v787, 2147483648
          %v810 = vmul.f32 %v809, 1.442695
          %v811 = vpow.pop %v810
          %v812 = vadd.f32 %v811, 1.0
          %v813 = vrcp.pop %v812
          %v814 = vmul.f32 %v812, %v813
          %v815 = vsub.f32 1.0, %v814
          %v816 = vmul.f32 %v813, %v815
          %v817 = vadd.f32 %v813, %v816
          %vm818 = vweird.f32 %v812
          %vm819 = vweird.f32 %v813
          %vm820 = vmor %vm818, %vm819
          %v821 = vsel %vm820, %v813, %v817
          %v822 = vand.u32 2147483647, %v812
          %vm823 = vcmp.eq.f32.partialorder %v822, 8.507059e+37
          %v824 = vand.u32 %v812, 2147483648
          %v825 = vor.u32 1.1754944e-38, %v824
          %v826 = vsel %vm823, %v825, %v821
          %v827 = vmul.f32 1.0, %v826
          %v828 = vtanh.pop %v788
          %v829 = vxor.u32 %v789, 2147483648
          %v830 = vmul.f32 %v829, 1.442695
          %v831 = vpow.pop %v830
          %v832 = vadd.f32 %v831, 1.0
          %v833 = vrcp.pop %v832
          %v834 = vmul.f32 %v832, %v833
          %v835 = vsub.f32 1.0, %v834
          %v836 = vmul.f32 %v833, %v835
          %v837 = vadd.f32 %v833, %v836
          %vm838 = vweird.f32 %v832
          %vm839 = vweird.f32 %v833
          %vm840 = vmor %vm838, %vm839
          %v841 = vsel %vm840, %v833, %v837
          %v842 = vand.u32 2147483647, %v832
          %vm843 = vcmp.eq.f32.partialorder %v842, 8.507059e+37
          %v844 = vand.u32 %v832, 2147483648
          %v845 = vor.u32 1.1754944e-38, %v844
          %v846 = vsel %vm843, %v845, %v841
          %v847 = vmul.f32 1.0, %v846
          %v848 = vmul.f32 %v827, %v699
          %v849 = vmul.f32 %v808, %v828
          %v850 = vadd.f32 %v848, %v849
          %v851 = vtanh.pop %v850
          %v852 = vmul.f32 %v847, %v851
          %v853 = vld [vmem:[%s486 + $0x40] sm:$0xff]
          %v854 = vld [vmem:[%s486 + $0x48] sm:$0xff]
          %v855 = vld [vmem:[%s486 + $0x50] sm:$0xff]
          %v856 = vld [vmem:[%s486 + $0x58] sm:$0xff]
          %857 = vmatpush.msra.mxu0 %v551
          %858 = vmatpush.msra.mxu0 %v547
          %859 = vmatpush.msra.mxu0 %v543
          %860 = vmatpush.msra.mxu0 %v539
          %861 = vmatpush.msra.mxu0 %v535
          %862 = vmatpush.msra.mxu0 %v531
          %863 = vmatpush.msra.mxu0 %v527
          %864 = vmatpush.msra.mxu0 %v523
          %865 = vmatpush.msra.mxu0 %v519
          %866 = vmatpush.msra.mxu0 %v515
          %867 = vmatpush.msra.mxu0 %v511
          %868 = vmatpush.msra.mxu0 %v507
          %869 = vmatpush.msra.mxu0 %v503
          %870 = vmatpush.msra.mxu0 %v499
          %871 = vmatpush.msra.mxu0 %v495
          %872 = vmatpush.msra.mxu0 %v491
          %873 = vmatmul.f32.gmra.mxu0 %v852
          %v874 = vpop.f32.mrf.mxu0
          %v875 = vadd.f32 0.0, %v874
          %876 = vdwg.mxu0
          %877 = vmatpush.msra.mxu0 %v552
          %878 = vmatpush.msra.mxu0 %v548
          %879 = vmatpush.msra.mxu0 %v544
          %880 = vmatpush.msra.mxu0 %v540
          %881 = vmatpush.msra.mxu0 %v536
          %882 = vmatpush.msra.mxu0 %v532
          %883 = vmatpush.msra.mxu0 %v528
          %884 = vmatpush.msra.mxu0 %v524
          %885 = vmatpush.msra.mxu0 %v520
          %886 = vmatpush.msra.mxu0 %v516
          %887 = vmatpush.msra.mxu0 %v512
          %888 = vmatpush.msra.mxu0 %v508
          %889 = vmatpush.msra.mxu0 %v504
          %890 = vmatpush.msra.mxu0 %v500
          %891 = vmatpush.msra.mxu0 %v496
          %892 = vmatpush.msra.mxu0 %v492
          %893 = vmatmul.f32.gmra.mxu0 %v852
          %v894 = vpop.f32.mrf.mxu0
          %v895 = vadd.f32 0.0, %v894
          %896 = vdwg.mxu0
          %897 = vmatpush.msra.mxu0 %v553
          %898 = vmatpush.msra.mxu0 %v549
          %899 = vmatpush.msra.mxu0 %v545
          %900 = vmatpush.msra.mxu0 %v541
          %901 = vmatpush.msra.mxu0 %v537
          %902 = vmatpush.msra.mxu0 %v533
          %903 = vmatpush.msra.mxu0 %v529
          %904 = vmatpush.msra.mxu0 %v525
          %905 = vmatpush.msra.mxu0 %v521
          %906 = vmatpush.msra.mxu0 %v517
          %907 = vmatpush.msra.mxu0 %v513
          %908 = vmatpush.msra.mxu0 %v509
          %909 = vmatpush.msra.mxu0 %v505
          %910 = vmatpush.msra.mxu0 %v501
          %911 = vmatpush.msra.mxu0 %v497
          %912 = vmatpush.msra.mxu0 %v493
          %913 = vmatmul.f32.gmra.mxu0 %v852
          %v914 = vpop.f32.mrf.mxu0
          %v915 = vadd.f32 0.0, %v914
          %916 = vdwg.mxu0
          %917 = vmatpush.msra.mxu0 %v554
          %918 = vmatpush.msra.mxu0 %v550
          %919 = vmatpush.msra.mxu0 %v546
          %920 = vmatpush.msra.mxu0 %v542
          %921 = vmatpush.msra.mxu0 %v538
          %922 = vmatpush.msra.mxu0 %v534
          %923 = vmatpush.msra.mxu0 %v530
          %924 = vmatpush.msra.mxu0 %v526
          %925 = vmatpush.msra.mxu0 %v522
          %926 = vmatpush.msra.mxu0 %v518
          %927 = vmatpush.msra.mxu0 %v514
          %928 = vmatpush.msra.mxu0 %v510
          %929 = vmatpush.msra.mxu0 %v506
          %930 = vmatpush.msra.mxu0 %v502
          %931 = vmatpush.msra.mxu0 %v498
          %932 = vmatpush.msra.mxu0 %v494
          %933 = vmatmul.f32.gmra.mxu0 %v852
          %v934 = vpop.f32.mrf.mxu0
          %v935 = vadd.f32 0.0, %v934
          %936 = vdwg.mxu0
          %v937 = vadd.f32 %v853, %v875
          %v938 = vadd.f32 %v854, %v895
          %v939 = vadd.f32 %v855, %v915
          %v940 = vadd.f32 %v856, %v935
          %v941 = vxor.u32 %v937, 2147483648
          %v942 = vmul.f32 %v941, 1.442695
          %v943 = vpow.pop %v942
          %v944 = vadd.f32 %v943, 1.0
          %v945 = vrcp.pop %v944
          %v946 = vmul.f32 %v944, %v945
          %v947 = vsub.f32 1.0, %v946
          %v948 = vmul.f32 %v945, %v947
          %v949 = vadd.f32 %v945, %v948
          %vm950 = vweird.f32 %v944
          %vm951 = vweird.f32 %v945
          %vm952 = vmor %vm950, %vm951
          %v953 = vsel %vm952, %v945, %v949
          %v954 = vand.u32 2147483647, %v944
          %vm955 = vcmp.eq.f32.partialorder %v954, 8.507059e+37
          %v956 = vand.u32 %v944, 2147483648
          %v957 = vor.u32 1.1754944e-38, %v956
          %v958 = vsel %vm955, %v957, %v953
          %v959 = vmul.f32 1.0, %v958
          %v960 = vxor.u32 %v938, 2147483648
          %v961 = vmul.f32 %v960, 1.442695
          %v962 = vpow.pop %v961
          %v963 = vadd.f32 %v962, 1.0
          %v964 = vrcp.pop %v963
          %v965 = vmul.f32 %v963, %v964
          %v966 = vsub.f32 1.0, %v965
          %v967 = vmul.f32 %v964, %v966
          %v968 = vadd.f32 %v964, %v967
          %vm969 = vweird.f32 %v963
          %vm970 = vweird.f32 %v964
          %vm971 = vmor %vm969, %vm970
          %v972 = vsel %vm971, %v964, %v968
          %v973 = vand.u32 2147483647, %v963
          %vm974 = vcmp.eq.f32.partialorder %v973, 8.507059e+37
          %v975 = vand.u32 %v963, 2147483648
          %v976 = vor.u32 1.1754944e-38, %v975
          %v977 = vsel %vm974, %v976, %v972
          %v978 = vmul.f32 1.0, %v977
          %v979 = vtanh.pop %v939
          %v980 = vxor.u32 %v940, 2147483648
          %v981 = vmul.f32 %v980, 1.442695
          %v982 = vpow.pop %v981
          %v983 = vadd.f32 %v982, 1.0
          %v984 = vrcp.pop %v983
          %v985 = vmul.f32 %v983, %v984
          %v986 = vsub.f32 1.0, %v985
          %v987 = vmul.f32 %v984, %v986
          %v988 = vadd.f32 %v984, %v987
          %vm989 = vweird.f32 %v983
          %vm990 = vweird.f32 %v984
          %vm991 = vmor %vm989, %vm990
          %v992 = vsel %vm991, %v984, %v988
          %v993 = vand.u32 2147483647, %v983
          %vm994 = vcmp.eq.f32.partialorder %v993, 8.507059e+37
          %v995 = vand.u32 %v983, 2147483648
          %v996 = vor.u32 1.1754944e-38, %v995
          %v997 = vsel %vm994, %v996, %v992
          %v998 = vmul.f32 1.0, %v997
          %v999 = vmul.f32 %v978, %v850
          %v1000 = vmul.f32 %v959, %v979
          %v1001 = vadd.f32 %v999, %v1000
          %v1002 = vtanh.pop %v1001
          %v1003 = vmul.f32 %v998, %v1002
          %v1004 = vld [vmem:[%s486 + $0x60] sm:$0xff]
          %v1005 = vld [vmem:[%s486 + $0x68] sm:$0xff]
          %v1006 = vld [vmem:[%s486 + $0x70] sm:$0xff]
          %v1007 = vld [vmem:[%s486 + $0x78] sm:$0xff]
          %1008 = vmatpush.msra.mxu0 %v551
          %1009 = vmatpush.msra.mxu0 %v547
          %1010 = vmatpush.msra.mxu0 %v543
          %1011 = vmatpush.msra.mxu0 %v539
          %1012 = vmatpush.msra.mxu0 %v535
          %1013 = vmatpush.msra.mxu0 %v531
          %1014 = vmatpush.msra.mxu0 %v527
          %1015 = vmatpush.msra.mxu0 %v523
          %1016 = vmatpush.msra.mxu0 %v519
          %1017 = vmatpush.msra.mxu0 %v515
          %1018 = vmatpush.msra.mxu0 %v511
          %1019 = vmatpush.msra.mxu0 %v507
          %1020 = vmatpush.msra.mxu0 %v503
          %1021 = vmatpush.msra.mxu0 %v499
          %1022 = vmatpush.msra.mxu0 %v495
          %1023 = vmatpush.msra.mxu0 %v491
          %1024 = vmatmul.f32.gmra.mxu0 %v1003
          %v1025 = vpop.f32.mrf.mxu0
          %v1026 = vadd.f32 0.0, %v1025
          %1027 = vdwg.mxu0
          %1028 = vmatpush.msra.mxu0 %v552
          %1029 = vmatpush.msra.mxu0 %v548
          %1030 = vmatpush.msra.mxu0 %v544
          %1031 = vmatpush.msra.mxu0 %v540
          %1032 = vmatpush.msra.mxu0 %v536
          %1033 = vmatpush.msra.mxu0 %v532
          %1034 = vmatpush.msra.mxu0 %v528
          %1035 = vmatpush.msra.mxu0 %v524
          %1036 = vmatpush.msra.mxu0 %v520
          %1037 = vmatpush.msra.mxu0 %v516
          %1038 = vmatpush.msra.mxu0 %v512
          %1039 = vmatpush.msra.mxu0 %v508
          %1040 = vmatpush.msra.mxu0 %v504
          %1041 = vmatpush.msra.mxu0 %v500
          %1042 = vmatpush.msra.mxu0 %v496
          %1043 = vmatpush.msra.mxu0 %v492
          %1044 = vmatmul.f32.gmra.mxu0 %v1003
          %v1045 = vpop.f32.mrf.mxu0
          %v1046 = vadd.f32 0.0, %v1045
          %1047 = vdwg.mxu0
          %1048 = vmatpush.msra.mxu0 %v553
          %1049 = vmatpush.msra.mxu0 %v549
          %1050 = vmatpush.msra.mxu0 %v545
          %1051 = vmatpush.msra.mxu0 %v541
          %1052 = vmatpush.msra.mxu0 %v537
          %1053 = vmatpush.msra.mxu0 %v533
          %1054 = vmatpush.msra.mxu0 %v529
          %1055 = vmatpush.msra.mxu0 %v525
          %1056 = vmatpush.msra.mxu0 %v521
          %1057 = vmatpush.msra.mxu0 %v517
          %1058 = vmatpush.msra.mxu0 %v513
          %1059 = vmatpush.msra.mxu0 %v509
          %1060 = vmatpush.msra.mxu0 %v505
          %1061 = vmatpush.msra.mxu0 %v501
          %1062 = vmatpush.msra.mxu0 %v497
          %1063 = vmatpush.msra.mxu0 %v493
          %1064 = vmatmul.f32.gmra.mxu0 %v1003
          %v1065 = vpop.f32.mrf.mxu0
          %v1066 = vadd.f32 0.0, %v1065
          %1067 = vdwg.mxu0
          %1068 = vmatpush.msra.mxu0 %v554
          %1069 = vmatpush.msra.mxu0 %v550
          %1070 = vmatpush.msra.mxu0 %v546
          %1071 = vmatpush.msra.mxu0 %v542
          %1072 = vmatpush.msra.mxu0 %v538
          %1073 = vmatpush.msra.mxu0 %v534
          %1074 = vmatpush.msra.mxu0 %v530
          %1075 = vmatpush.msra.mxu0 %v526
          %1076 = vmatpush.msra.mxu0 %v522
          %1077 = vmatpush.msra.mxu0 %v518
          %1078 = vmatpush.msra.mxu0 %v514
          %1079 = vmatpush.msra.mxu0 %v510
          %1080 = vmatpush.msra.mxu0 %v506
          %1081 = vmatpush.msra.mxu0 %v502
          %1082 = vmatpush.msra.mxu0 %v498
          %1083 = vmatpush.msra.mxu0 %v494
          %1084 = vmatmul.f32.gmra.mxu0 %v1003
          %v1085 = vpop.f32.mrf.mxu0
          %v1086 = vadd.f32 0.0, %v1085
          %1087 = vdwg.mxu0
          %v1088 = vadd.f32 %v1004, %v1026
          %v1089 = vadd.f32 %v1005, %v1046
          %v1090 = vadd.f32 %v1006, %v1066
          %v1091 = vadd.f32 %v1007, %v1086
          %v1092 = vxor.u32 %v1088, 2147483648
          %v1093 = vmul.f32 %v1092, 1.442695
          %v1094 = vpow.pop %v1093
          %v1095 = vadd.f32 %v1094, 1.0
          %v1096 = vrcp.pop %v1095
          %v1097 = vmul.f32 %v1095, %v1096
          %v1098 = vsub.f32 1.0, %v1097
          %v1099 = vmul.f32 %v1096, %v1098
          %v1100 = vadd.f32 %v1096, %v1099
          %vm1101 = vweird.f32 %v1095
          %vm1102 = vweird.f32 %v1096
          %vm1103 = vmor %vm1101, %vm1102
          %v1104 = vsel %vm1103, %v1096, %v1100
          %v1105 = vand.u32 2147483647, %v1095
          %vm1106 = vcmp.eq.f32.partialorder %v1105, 8.507059e+37
          %v1107 = vand.u32 %v1095, 2147483648
          %v1108 = vor.u32 1.1754944e-38, %v1107
          %v1109 = vsel %vm1106, %v1108, %v1104
          %v1110 = vmul.f32 1.0, %v1109
          %v1111 = vxor.u32 %v1089, 2147483648
          %v1112 = vmul.f32 %v1111, 1.442695
          %v1113 = vpow.pop %v1112
          %v1114 = vadd.f32 %v1113, 1.0
          %v1115 = vrcp.pop %v1114
          %v1116 = vmul.f32 %v1114, %v1115
          %v1117 = vsub.f32 1.0, %v1116
          %v1118 = vmul.f32 %v1115, %v1117
          %v1119 = vadd.f32 %v1115, %v1118
          %vm1120 = vweird.f32 %v1114
          %vm1121 = vweird.f32 %v1115
          %vm1122 = vmor %vm1120, %vm1121
          %v1123 = vsel %vm1122, %v1115, %v1119
          %v1124 = vand.u32 2147483647, %v1114
          %vm1125 = vcmp.eq.f32.partialorder %v1124, 8.507059e+37
          %v1126 = vand.u32 %v1114, 2147483648
          %v1127 = vor.u32 1.1754944e-38, %v1126
          %v1128 = vsel %vm1125, %v1127, %v1123
          %v1129 = vmul.f32 1.0, %v1128
          %v1130 = vtanh.pop %v1090
          %v1131 = vxor.u32 %v1091, 2147483648
          %v1132 = vmul.f32 %v1131, 1.442695
          %v1133 = vpow.pop %v1132
          %v1134 = vadd.f32 %v1133, 1.0
          %v1135 = vrcp.pop %v1134
          %v1136 = vmul.f32 %v1134, %v1135
          %v1137 = vsub.f32 1.0, %v1136
          %v1138 = vmul.f32 %v1135, %v1137
          %v1139 = vadd.f32 %v1135, %v1138
          %vm1140 = vweird.f32 %v1134
          %vm1141 = vweird.f32 %v1135
          %vm1142 = vmor %vm1140, %vm1141
          %v1143 = vsel %vm1142, %v1135, %v1139
          %v1144 = vand.u32 2147483647, %v1134
          %vm1145 = vcmp.eq.f32.partialorder %v1144, 8.507059e+37
          %v1146 = vand.u32 %v1134, 2147483648
          %v1147 = vor.u32 1.1754944e-38, %v1146
          %v1148 = vsel %vm1145, %v1147, %v1143
          %v1149 = vmul.f32 1.0, %v1148
          %v1150 = vmul.f32 %v1129, %v1001
          %v1151 = vmul.f32 %v1110, %v1130
          %v1152 = vadd.f32 %v1150, %v1151
          %v1153 = vtanh.pop %v1152
          %v1154 = vmul.f32 %v1149, %v1153
          %1155 = vst [vmem:[#allocation2] sm:$0xff] %v1154
          %1156 = vst [vmem:[#allocation3] sm:$0xff] %v1152
          %v1157 = vld [vmem:[%s224] sm:$0xff]
          %v1158 = vld [vmem:[%s224 + $0x8] sm:$0xff]
          %v1159 = vld [vmem:[%s224 + $0x10] sm:$0xff]
          %v1160 = vld [vmem:[%s224 + $0x18] sm:$0xff]
          %v1161 = vld [vmem:[#allocation8] sm:$0xff]
          %v1162 = vld [vmem:[#allocation8 + $0x8] sm:$0xff]
          %v1163 = vld [vmem:[#allocation8 + $0x10] sm:$0xff]
          %v1164 = vld [vmem:[#allocation8 + $0x18] sm:$0xff]
          %v1165 = vld [vmem:[#allocation8 + $0x20] sm:$0xff]
          %v1166 = vld [vmem:[#allocation8 + $0x28] sm:$0xff]
          %v1167 = vld [vmem:[#allocation8 + $0x30] sm:$0xff]
          %v1168 = vld [vmem:[#allocation8 + $0x38] sm:$0xff]
          %v1169 = vld [vmem:[#allocation8 + $0x40] sm:$0xff]
          %v1170 = vld [vmem:[#allocation8 + $0x48] sm:$0xff]
          %v1171 = vld [vmem:[#allocation8 + $0x50] sm:$0xff]
          %v1172 = vld [vmem:[#allocation8 + $0x58] sm:$0xff]
          %v1173 = vld [vmem:[#allocation8 + $0x60] sm:$0xff]
          %v1174 = vld [vmem:[#allocation8 + $0x68] sm:$0xff]
          %v1175 = vld [vmem:[#allocation8 + $0x70] sm:$0xff]
          %v1176 = vld [vmem:[#allocation8 + $0x78] sm:$0xff]
          %v1177 = vld [vmem:[#allocation8 + $0x80] sm:$0xff]
          %v1178 = vld [vmem:[#allocation8 + $0x88] sm:$0xff]
          %v1179 = vld [vmem:[#allocation8 + $0x90] sm:$0xff]
          %v1180 = vld [vmem:[#allocation8 + $0x98] sm:$0xff]
          %v1181 = vld [vmem:[#allocation8 + $0xa0] sm:$0xff]
          %v1182 = vld [vmem:[#allocation8 + $0xa8] sm:$0xff]
          %v1183 = vld [vmem:[#allocation8 + $0xb0] sm:$0xff]
          %v1184 = vld [vmem:[#allocation8 + $0xb8] sm:$0xff]
          %v1185 = vld [vmem:[#allocation8 + $0xc0] sm:$0xff]
          %v1186 = vld [vmem:[#allocation8 + $0xc8] sm:$0xff]
          %v1187 = vld [vmem:[#allocation8 + $0xd0] sm:$0xff]
          %v1188 = vld [vmem:[#allocation8 + $0xd8] sm:$0xff]
          %v1189 = vld [vmem:[#allocation8 + $0xe0] sm:$0xff]
          %v1190 = vld [vmem:[#allocation8 + $0xe8] sm:$0xff]
          %v1191 = vld [vmem:[#allocation8 + $0xf0] sm:$0xff]
          %v1192 = vld [vmem:[#allocation8 + $0xf8] sm:$0xff]
          %v1193 = vld [vmem:[#allocation11] sm:$0xf]
          %v1195 = vperm.slane %v1193, 0
          %v1196 = vperm.slane %v1193, 1
          %v1197 = vperm.slane %v1193, 2
          %v1198 = vperm.slane %v1193, 3
          %vm1203 = vcmask 523264
          %v1205 = vsel %vm1203, %v1157, 0
          %v1208 = vsel %vm1203, %v1158, 0
          %v1211 = vsel %vm1203, %v1159, 0
          %v1214 = vsel %vm1203, %v1160, 0
          %1216 = vmatpush.msra.mxu0 0.0
          %1217 = vmatpush.msra.mxu0 0.0
          %1218 = vmatpush.msra.mxu0 0.0
          %1219 = vmatpush.msra.mxu0 0.0
          %1220 = vmatpush.msra.mxu0 0.0
          %1221 = vmatpush.msra.mxu0 0.0
          %1222 = vmatpush.msra.mxu0 0.0
          %1223 = vmatpush.msra.mxu0 0.0
          %1224 = vmatpush.msra.mxu0 %v1189
          %1225 = vmatpush.msra.mxu0 %v1185
          %1226 = vmatpush.msra.mxu0 %v1181
          %1227 = vmatpush.msra.mxu0 %v1177
          %1228 = vmatpush.msra.mxu0 %v1173
          %1229 = vmatpush.msra.mxu0 %v1169
          %1230 = vmatpush.msra.mxu0 %v1165
          %1231 = vmatpush.msra.mxu0 %v1161
          %1232 = vmatmul.f32.gmra.mxu0 %v1205
          %v1233 = vpop.f32.mrf.mxu0
          %v1234 = vadd.f32 %v1195, %v1233
          %1235 = vmatmul.f32.gmra.mxu0 %v1208
          %v1236 = vpop.f32.mrf.mxu0
          %v1237 = vadd.f32 %v1195, %v1236
          %1238 = vmatmul.f32.gmra.mxu0 %v1211
          %v1239 = vpop.f32.mrf.mxu0
          %v1240 = vadd.f32 %v1195, %v1239
          %1241 = vmatmul.f32.gmra.mxu0 %v1214
          %v1242 = vpop.f32.mrf.mxu0
          %v1243 = vadd.f32 %v1195, %v1242
          %1244 = vdwg.mxu0
          %1245 = vmatpush.msra.mxu0 0.0
          %1246 = vmatpush.msra.mxu0 0.0
          %1247 = vmatpush.msra.mxu0 0.0
          %1248 = vmatpush.msra.mxu0 0.0
          %1249 = vmatpush.msra.mxu0 0.0
          %1250 = vmatpush.msra.mxu0 0.0
          %1251 = vmatpush.msra.mxu0 0.0
          %1252 = vmatpush.msra.mxu0 0.0
          %1253 = vmatpush.msra.mxu0 %v1190
          %1254 = vmatpush.msra.mxu0 %v1186
          %1255 = vmatpush.msra.mxu0 %v1182
          %1256 = vmatpush.msra.mxu0 %v1178
          %1257 = vmatpush.msra.mxu0 %v1174
          %1258 = vmatpush.msra.mxu0 %v1170
          %1259 = vmatpush.msra.mxu0 %v1166
          %1260 = vmatpush.msra.mxu0 %v1162
          %1261 = vmatmul.f32.gmra.mxu0 %v1205
          %v1262 = vpop.f32.mrf.mxu0
          %v1263 = vadd.f32 %v1196, %v1262
          %1264 = vmatmul.f32.gmra.mxu0 %v1208
          %v1265 = vpop.f32.mrf.mxu0
          %v1266 = vadd.f32 %v1196, %v1265
          %1267 = vmatmul.f32.gmra.mxu0 %v1211
          %v1268 = vpop.f32.mrf.mxu0
          %v1269 = vadd.f32 %v1196, %v1268
          %1270 = vmatmul.f32.gmra.mxu0 %v1214
          %v1271 = vpop.f32.mrf.mxu0
          %v1272 = vadd.f32 %v1196, %v1271
          %1273 = vdwg.mxu0
          %1274 = vmatpush.msra.mxu0 0.0
          %1275 = vmatpush.msra.mxu0 0.0
          %1276 = vmatpush.msra.mxu0 0.0
          %1277 = vmatpush.msra.mxu0 0.0
          %1278 = vmatpush.msra.mxu0 0.0
          %1279 = vmatpush.msra.mxu0 0.0
          %1280 = vmatpush.msra.mxu0 0.0
          %1281 = vmatpush.msra.mxu0 0.0
          %1282 = vmatpush.msra.mxu0 %v1191
          %1283 = vmatpush.msra.mxu0 %v1187
          %1284 = vmatpush.msra.mxu0 %v1183
          %1285 = vmatpush.msra.mxu0 %v1179
          %1286 = vmatpush.msra.mxu0 %v1175
          %1287 = vmatpush.msra.mxu0 %v1171
          %1288 = vmatpush.msra.mxu0 %v1167
          %1289 = vmatpush.msra.mxu0 %v1163
          %1290 = vmatmul.f32.gmra.mxu0 %v1205
          %v1291 = vpop.f32.mrf.mxu0
          %v1292 = vadd.f32 %v1197, %v1291
          %1293 = vmatmul.f32.gmra.mxu0 %v1208
          %v1294 = vpop.f32.mrf.mxu0
          %v1295 = vadd.f32 %v1197, %v1294
          %1296 = vmatmul.f32.gmra.mxu0 %v1211
          %v1297 = vpop.f32.mrf.mxu0
          %v1298 = vadd.f32 %v1197, %v1297
          %1299 = vmatmul.f32.gmra.mxu0 %v1214
          %v1300 = vpop.f32.mrf.mxu0
          %v1301 = vadd.f32 %v1197, %v1300
          %1302 = vdwg.mxu0
          %1303 = vmatpush.msra.mxu0 0.0
          %1304 = vmatpush.msra.mxu0 0.0
          %1305 = vmatpush.msra.mxu0 0.0
          %1306 = vmatpush.msra.mxu0 0.0
          %1307 = vmatpush.msra.mxu0 0.0
          %1308 = vmatpush.msra.mxu0 0.0
          %1309 = vmatpush.msra.mxu0 0.0
          %1310 = vmatpush.msra.mxu0 0.0
          %1311 = vmatpush.msra.mxu0 %v1192
          %1312 = vmatpush.msra.mxu0 %v1188
          %1313 = vmatpush.msra.mxu0 %v1184
          %1314 = vmatpush.msra.mxu0 %v1180
          %1315 = vmatpush.msra.mxu0 %v1176
          %1316 = vmatpush.msra.mxu0 %v1172
          %1317 = vmatpush.msra.mxu0 %v1168
          %1318 = vmatpush.msra.mxu0 %v1164
          %1319 = vmatmul.f32.gmra.mxu0 %v1205
          %v1320 = vpop.f32.mrf.mxu0
          %v1321 = vadd.f32 %v1198, %v1320
          %1322 = vmatmul.f32.gmra.mxu0 %v1208
          %v1323 = vpop.f32.mrf.mxu0
          %v1324 = vadd.f32 %v1198, %v1323
          %1325 = vmatmul.f32.gmra.mxu0 %v1211
          %v1326 = vpop.f32.mrf.mxu0
          %v1327 = vadd.f32 %v1198, %v1326
          %1328 = vmatmul.f32.gmra.mxu0 %v1214
          %v1329 = vpop.f32.mrf.mxu0
          %v1330 = vadd.f32 %v1198, %v1329
          %1331 = vdwg.mxu0
          %s1332 = smul.u32 %s274, 16
          %s1333 = smul.addr %s1332, 8
          %s1334 = scalar_lea.vmem [#allocation4], %s1333
          %1335 = vst [vmem:[%s1334] sm:$0xff] %v1234
          %1336 = vst [vmem:[%s1334 + $0x8] sm:$0xff] %v1263
          %1337 = vst [vmem:[%s1334 + $0x10] sm:$0xff] %v1292
          %1338 = vst [vmem:[%s1334 + $0x18] sm:$0xff] %v1321
          %1339 = vst [vmem:[%s1334 + $0x20] sm:$0xff] %v1237
          %1340 = vst [vmem:[%s1334 + $0x28] sm:$0xff] %v1266
          %1341 = vst [vmem:[%s1334 + $0x30] sm:$0xff] %v1295
          %1342 = vst [vmem:[%s1334 + $0x38] sm:$0xff] %v1324
          %1343 = vst [vmem:[%s1334 + $0x40] sm:$0xff] %v1240
          %1344 = vst [vmem:[%s1334 + $0x48] sm:$0xff] %v1269
          %1345 = vst [vmem:[%s1334 + $0x50] sm:$0xff] %v1298
          %1346 = vst [vmem:[%s1334 + $0x58] sm:$0xff] %v1327
          %1347 = vst [vmem:[%s1334 + $0x60] sm:$0xff] %v1243
          %1348 = vst [vmem:[%s1334 + $0x68] sm:$0xff] %v1272
          %1349 = vst [vmem:[%s1334 + $0x70] sm:$0xff] %v1301
          %1350 = vst [vmem:[%s1334 + $0x78] sm:$0xff] %v1330
        $region60: #{tpu_custom_call.1} parent=35 // pred_fallthru
          _
        %p1351 = scmp.eq.s32.totalorder %s21, 2
        // Predicated region
        $region61: #{tpu_custom_call.1} parent=35 // pred_check
          %p1352 = pneg %p1351
        $region62: #{tpu_custom_call.1} parent=35 // pred_check_branch
          %1354 = sbr.rel (%p1352) target = $region64
        $region63: #{tpu_custom_call.1} parent=35 // pred_region
          %v1355 = vld [vmem:[#allocation2] sm:$0xff]
          %v1356 = vld [vmem:[#allocation3] sm:$0xff]
          %s1357 = smul.u32 %s275, 16
          %s1358 = smul.addr %s1357, 8
          %s1359 = scalar_lea.vmem [#allocation4], %s1358
          %v1360 = vld [vmem:[%s1359] sm:$0xff]
          %v1361 = vld [vmem:[%s1359 + $0x8] sm:$0xff]
          %v1362 = vld [vmem:[%s1359 + $0x10] sm:$0xff]
          %v1363 = vld [vmem:[%s1359 + $0x18] sm:$0xff]
          %v1364 = vld [vmem:[#allocation10] sm:$0xff]
          %v1365 = vld [vmem:[#allocation10 + $0x8] sm:$0xff]
          %v1366 = vld [vmem:[#allocation10 + $0x10] sm:$0xff]
          %v1367 = vld [vmem:[#allocation10 + $0x18] sm:$0xff]
          %v1368 = vld [vmem:[#allocation10 + $0x20] sm:$0xff]
          %v1369 = vld [vmem:[#allocation10 + $0x28] sm:$0xff]
          %v1370 = vld [vmem:[#allocation10 + $0x30] sm:$0xff]
          %v1371 = vld [vmem:[#allocation10 + $0x38] sm:$0xff]
          %v1372 = vld [vmem:[#allocation10 + $0x40] sm:$0xff]
          %v1373 = vld [vmem:[#allocation10 + $0x48] sm:$0xff]
          %v1374 = vld [vmem:[#allocation10 + $0x50] sm:$0xff]
          %v1375 = vld [vmem:[#allocation10 + $0x58] sm:$0xff]
          %v1376 = vld [vmem:[#allocation10 + $0x60] sm:$0xff]
          %v1377 = vld [vmem:[#allocation10 + $0x68] sm:$0xff]
          %v1378 = vld [vmem:[#allocation10 + $0x70] sm:$0xff]
          %v1379 = vld [vmem:[#allocation10 + $0x78] sm:$0xff]
          %v1380 = vld [vmem:[#allocation10 + $0x80] sm:$0xff]
          %v1381 = vld [vmem:[#allocation10 + $0x88] sm:$0xff]
          %v1382 = vld [vmem:[#allocation10 + $0x90] sm:$0xff]
          %v1383 = vld [vmem:[#allocation10 + $0x98] sm:$0xff]
          %v1384 = vld [vmem:[#allocation10 + $0xa0] sm:$0xff]
          %v1385 = vld [vmem:[#allocation10 + $0xa8] sm:$0xff]
          %v1386 = vld [vmem:[#allocation10 + $0xb0] sm:$0xff]
          %v1387 = vld [vmem:[#allocation10 + $0xb8] sm:$0xff]
          %v1388 = vld [vmem:[#allocation10 + $0xc0] sm:$0xff]
          %v1389 = vld [vmem:[#allocation10 + $0xc8] sm:$0xff]
          %v1390 = vld [vmem:[#allocation10 + $0xd0] sm:$0xff]
          %v1391 = vld [vmem:[#allocation10 + $0xd8] sm:$0xff]
          %v1392 = vld [vmem:[#allocation10 + $0xe0] sm:$0xff]
          %v1393 = vld [vmem:[#allocation10 + $0xe8] sm:$0xff]
          %v1394 = vld [vmem:[#allocation10 + $0xf0] sm:$0xff]
          %v1395 = vld [vmem:[#allocation10 + $0xf8] sm:$0xff]
          %v1396 = vld [vmem:[#allocation10 + $0x100] sm:$0xff]
          %v1397 = vld [vmem:[#allocation10 + $0x108] sm:$0xff]
          %v1398 = vld [vmem:[#allocation10 + $0x110] sm:$0xff]
          %v1399 = vld [vmem:[#allocation10 + $0x118] sm:$0xff]
          %v1400 = vld [vmem:[#allocation10 + $0x120] sm:$0xff]
          %v1401 = vld [vmem:[#allocation10 + $0x128] sm:$0xff]
          %v1402 = vld [vmem:[#allocation10 + $0x130] sm:$0xff]
          %v1403 = vld [vmem:[#allocation10 + $0x138] sm:$0xff]
          %v1404 = vld [vmem:[#allocation10 + $0x140] sm:$0xff]
          %v1405 = vld [vmem:[#allocation10 + $0x148] sm:$0xff]
          %v1406 = vld [vmem:[#allocation10 + $0x150] sm:$0xff]
          %v1407 = vld [vmem:[#allocation10 + $0x158] sm:$0xff]
          %v1408 = vld [vmem:[#allocation10 + $0x160] sm:$0xff]
          %v1409 = vld [vmem:[#allocation10 + $0x168] sm:$0xff]
          %v1410 = vld [vmem:[#allocation10 + $0x170] sm:$0xff]
          %v1411 = vld [vmem:[#allocation10 + $0x178] sm:$0xff]
          %v1412 = vld [vmem:[#allocation10 + $0x180] sm:$0xff]
          %v1413 = vld [vmem:[#allocation10 + $0x188] sm:$0xff]
          %v1414 = vld [vmem:[#allocation10 + $0x190] sm:$0xff]
          %v1415 = vld [vmem:[#allocation10 + $0x198] sm:$0xff]
          %v1416 = vld [vmem:[#allocation10 + $0x1a0] sm:$0xff]
          %v1417 = vld [vmem:[#allocation10 + $0x1a8] sm:$0xff]
          %v1418 = vld [vmem:[#allocation10 + $0x1b0] sm:$0xff]
          %v1419 = vld [vmem:[#allocation10 + $0x1b8] sm:$0xff]
          %v1420 = vld [vmem:[#allocation10 + $0x1c0] sm:$0xff]
          %v1421 = vld [vmem:[#allocation10 + $0x1c8] sm:$0xff]
          %v1422 = vld [vmem:[#allocation10 + $0x1d0] sm:$0xff]
          %v1423 = vld [vmem:[#allocation10 + $0x1d8] sm:$0xff]
          %v1424 = vld [vmem:[#allocation10 + $0x1e0] sm:$0xff]
          %v1425 = vld [vmem:[#allocation10 + $0x1e8] sm:$0xff]
          %v1426 = vld [vmem:[#allocation10 + $0x1f0] sm:$0xff]
          %v1427 = vld [vmem:[#allocation10 + $0x1f8] sm:$0xff]
          %1428 = vmatpush.msra.mxu0 %v1424
          %1429 = vmatpush.msra.mxu0 %v1420
          %1430 = vmatpush.msra.mxu0 %v1416
          %1431 = vmatpush.msra.mxu0 %v1412
          %1432 = vmatpush.msra.mxu0 %v1408
          %1433 = vmatpush.msra.mxu0 %v1404
          %1434 = vmatpush.msra.mxu0 %v1400
          %1435 = vmatpush.msra.mxu0 %v1396
          %1436 = vmatpush.msra.mxu0 %v1392
          %1437 = vmatpush.msra.mxu0 %v1388
          %1438 = vmatpush.msra.mxu0 %v1384
          %1439 = vmatpush.msra.mxu0 %v1380
          %1440 = vmatpush.msra.mxu0 %v1376
          %1441 = vmatpush.msra.mxu0 %v1372
          %1442 = vmatpush.msra.mxu0 %v1368
          %1443 = vmatpush.msra.mxu0 %v1364
          %1444 = vmatmul.f32.gmra.mxu0 %v1355
          %v1445 = vpop.f32.mrf.mxu0
          %v1446 = vadd.f32 0.0, %v1445
          %1447 = vdwg.mxu0
          %1448 = vmatpush.msra.mxu0 %v1425
          %1449 = vmatpush.msra.mxu0 %v1421
          %1450 = vmatpush.msra.mxu0 %v1417
          %1451 = vmatpush.msra.mxu0 %v1413
          %1452 = vmatpush.msra.mxu0 %v1409
          %1453 = vmatpush.msra.mxu0 %v1405
          %1454 = vmatpush.msra.mxu0 %v1401
          %1455 = vmatpush.msra.mxu0 %v1397
          %1456 = vmatpush.msra.mxu0 %v1393
          %1457 = vmatpush.msra.mxu0 %v1389
          %1458 = vmatpush.msra.mxu0 %v1385
          %1459 = vmatpush.msra.mxu0 %v1381
          %1460 = vmatpush.msra.mxu0 %v1377
          %1461 = vmatpush.msra.mxu0 %v1373
          %1462 = vmatpush.msra.mxu0 %v1369
          %1463 = vmatpush.msra.mxu0 %v1365
          %1464 = vmatmul.f32.gmra.mxu0 %v1355
          %v1465 = vpop.f32.mrf.mxu0
          %v1466 = vadd.f32 0.0, %v1465
          %1467 = vdwg.mxu0
          %1468 = vmatpush.msra.mxu0 %v1426
          %1469 = vmatpush.msra.mxu0 %v1422
          %1470 = vmatpush.msra.mxu0 %v1418
          %1471 = vmatpush.msra.mxu0 %v1414
          %1472 = vmatpush.msra.mxu0 %v1410
          %1473 = vmatpush.msra.mxu0 %v1406
          %1474 = vmatpush.msra.mxu0 %v1402
          %1475 = vmatpush.msra.mxu0 %v1398
          %1476 = vmatpush.msra.mxu0 %v1394
          %1477 = vmatpush.msra.mxu0 %v1390
          %1478 = vmatpush.msra.mxu0 %v1386
          %1479 = vmatpush.msra.mxu0 %v1382
          %1480 = vmatpush.msra.mxu0 %v1378
          %1481 = vmatpush.msra.mxu0 %v1374
          %1482 = vmatpush.msra.mxu0 %v1370
          %1483 = vmatpush.msra.mxu0 %v1366
          %1484 = vmatmul.f32.gmra.mxu0 %v1355
          %v1485 = vpop.f32.mrf.mxu0
          %v1486 = vadd.f32 0.0, %v1485
          %1487 = vdwg.mxu0
          %1488 = vmatpush.msra.mxu0 %v1427
          %1489 = vmatpush.msra.mxu0 %v1423
          %1490 = vmatpush.msra.mxu0 %v1419
          %1491 = vmatpush.msra.mxu0 %v1415
          %1492 = vmatpush.msra.mxu0 %v1411
          %1493 = vmatpush.msra.mxu0 %v1407
          %1494 = vmatpush.msra.mxu0 %v1403
          %1495 = vmatpush.msra.mxu0 %v1399
          %1496 = vmatpush.msra.mxu0 %v1395
          %1497 = vmatpush.msra.mxu0 %v1391
          %1498 = vmatpush.msra.mxu0 %v1387
          %1499 = vmatpush.msra.mxu0 %v1383
          %1500 = vmatpush.msra.mxu0 %v1379
          %1501 = vmatpush.msra.mxu0 %v1375
          %1502 = vmatpush.msra.mxu0 %v1371
          %1503 = vmatpush.msra.mxu0 %v1367
          %1504 = vmatmul.f32.gmra.mxu0 %v1355
          %v1505 = vpop.f32.mrf.mxu0
          %v1506 = vadd.f32 0.0, %v1505
          %1507 = vdwg.mxu0
          %v1508 = vadd.f32 %v1360, %v1446
          %v1509 = vadd.f32 %v1361, %v1466
          %v1510 = vadd.f32 %v1362, %v1486
          %v1511 = vadd.f32 %v1363, %v1506
          %v1512 = vxor.u32 %v1508, 2147483648
          %v1513 = vmul.f32 %v1512, 1.442695
          %v1514 = vpow.pop %v1513
          %v1515 = vadd.f32 %v1514, 1.0
          %v1516 = vrcp.pop %v1515
          %v1517 = vmul.f32 %v1515, %v1516
          %v1518 = vsub.f32 1.0, %v1517
          %v1519 = vmul.f32 %v1516, %v1518
          %v1520 = vadd.f32 %v1516, %v1519
          %vm1521 = vweird.f32 %v1515
          %vm1522 = vweird.f32 %v1516
          %vm1523 = vmor %vm1521, %vm1522
          %v1524 = vsel %vm1523, %v1516, %v1520
          %v1525 = vand.u32 2147483647, %v1515
          %vm1526 = vcmp.eq.f32.partialorder %v1525, 8.507059e+37
          %v1527 = vand.u32 %v1515, 2147483648
          %v1528 = vor.u32 1.1754944e-38, %v1527
          %v1529 = vsel %vm1526, %v1528, %v1524
          %v1530 = vmul.f32 1.0, %v1529
          %v1531 = vxor.u32 %v1509, 2147483648
          %v1532 = vmul.f32 %v1531, 1.442695
          %v1533 = vpow.pop %v1532
          %v1534 = vadd.f32 %v1533, 1.0
          %v1535 = vrcp.pop %v1534
          %v1536 = vmul.f32 %v1534, %v1535
          %v1537 = vsub.f32 1.0, %v1536
          %v1538 = vmul.f32 %v1535, %v1537
          %v1539 = vadd.f32 %v1535, %v1538
          %vm1540 = vweird.f32 %v1534
          %vm1541 = vweird.f32 %v1535
          %vm1542 = vmor %vm1540, %vm1541
          %v1543 = vsel %vm1542, %v1535, %v1539
          %v1544 = vand.u32 2147483647, %v1534
          %vm1545 = vcmp.eq.f32.partialorder %v1544, 8.507059e+37
          %v1546 = vand.u32 %v1534, 2147483648
          %v1547 = vor.u32 1.1754944e-38, %v1546
          %v1548 = vsel %vm1545, %v1547, %v1543
          %v1549 = vmul.f32 1.0, %v1548
          %v1550 = vtanh.pop %v1510
          %v1551 = vxor.u32 %v1511, 2147483648
          %v1552 = vmul.f32 %v1551, 1.442695
          %v1553 = vpow.pop %v1552
          %v1554 = vadd.f32 %v1553, 1.0
          %v1555 = vrcp.pop %v1554
          %v1556 = vmul.f32 %v1554, %v1555
          %v1557 = vsub.f32 1.0, %v1556
          %v1558 = vmul.f32 %v1555, %v1557
          %v1559 = vadd.f32 %v1555, %v1558
          %vm1560 = vweird.f32 %v1554
          %vm1561 = vweird.f32 %v1555
          %vm1562 = vmor %vm1560, %vm1561
          %v1563 = vsel %vm1562, %v1555, %v1559
          %v1564 = vand.u32 2147483647, %v1554
          %vm1565 = vcmp.eq.f32.partialorder %v1564, 8.507059e+37
          %v1566 = vand.u32 %v1554, 2147483648
          %v1567 = vor.u32 1.1754944e-38, %v1566
          %v1568 = vsel %vm1565, %v1567, %v1563
          %v1569 = vmul.f32 1.0, %v1568
          %v1570 = vmul.f32 %v1549, %v1356
          %v1571 = vmul.f32 %v1530, %v1550
          %v1572 = vadd.f32 %v1570, %v1571
          %v1573 = vtanh.pop %v1572
          %v1574 = vmul.f32 %v1569, %v1573
          %v1575 = vld [vmem:[%s1359 + $0x20] sm:$0xff]
          %v1576 = vld [vmem:[%s1359 + $0x28] sm:$0xff]
          %v1577 = vld [vmem:[%s1359 + $0x30] sm:$0xff]
          %v1578 = vld [vmem:[%s1359 + $0x38] sm:$0xff]
          %1579 = vmatpush.msra.mxu0 %v1424
          %1580 = vmatpush.msra.mxu0 %v1420
          %1581 = vmatpush.msra.mxu0 %v1416
          %1582 = vmatpush.msra.mxu0 %v1412
          %1583 = vmatpush.msra.mxu0 %v1408
          %1584 = vmatpush.msra.mxu0 %v1404
          %1585 = vmatpush.msra.mxu0 %v1400
          %1586 = vmatpush.msra.mxu0 %v1396
          %1587 = vmatpush.msra.mxu0 %v1392
          %1588 = vmatpush.msra.mxu0 %v1388
          %1589 = vmatpush.msra.mxu0 %v1384
          %1590 = vmatpush.msra.mxu0 %v1380
          %1591 = vmatpush.msra.mxu0 %v1376
          %1592 = vmatpush.msra.mxu0 %v1372
          %1593 = vmatpush.msra.mxu0 %v1368
          %1594 = vmatpush.msra.mxu0 %v1364
          %1595 = vmatmul.f32.gmra.mxu0 %v1574
          %v1596 = vpop.f32.mrf.mxu0
          %v1597 = vadd.f32 0.0, %v1596
          %1598 = vdwg.mxu0
          %1599 = vmatpush.msra.mxu0 %v1425
          %1600 = vmatpush.msra.mxu0 %v1421
          %1601 = vmatpush.msra.mxu0 %v1417
          %1602 = vmatpush.msra.mxu0 %v1413
          %1603 = vmatpush.msra.mxu0 %v1409
          %1604 = vmatpush.msra.mxu0 %v1405
          %1605 = vmatpush.msra.mxu0 %v1401
          %1606 = vmatpush.msra.mxu0 %v1397
          %1607 = vmatpush.msra.mxu0 %v1393
          %1608 = vmatpush.msra.mxu0 %v1389
          %1609 = vmatpush.msra.mxu0 %v1385
          %1610 = vmatpush.msra.mxu0 %v1381
          %1611 = vmatpush.msra.mxu0 %v1377
          %1612 = vmatpush.msra.mxu0 %v1373
          %1613 = vmatpush.msra.mxu0 %v1369
          %1614 = vmatpush.msra.mxu0 %v1365
          %1615 = vmatmul.f32.gmra.mxu0 %v1574
          %v1616 = vpop.f32.mrf.mxu0
          %v1617 = vadd.f32 0.0, %v1616
          %1618 = vdwg.mxu0
          %1619 = vmatpush.msra.mxu0 %v1426
          %1620 = vmatpush.msra.mxu0 %v1422
          %1621 = vmatpush.msra.mxu0 %v1418
          %1622 = vmatpush.msra.mxu0 %v1414
          %1623 = vmatpush.msra.mxu0 %v1410
          %1624 = vmatpush.msra.mxu0 %v1406
          %1625 = vmatpush.msra.mxu0 %v1402
          %1626 = vmatpush.msra.mxu0 %v1398
          %1627 = vmatpush.msra.mxu0 %v1394
          %1628 = vmatpush.msra.mxu0 %v1390
          %1629 = vmatpush.msra.mxu0 %v1386
          %1630 = vmatpush.msra.mxu0 %v1382
          %1631 = vmatpush.msra.mxu0 %v1378
          %1632 = vmatpush.msra.mxu0 %v1374
          %1633 = vmatpush.msra.mxu0 %v1370
          %1634 = vmatpush.msra.mxu0 %v1366
          %1635 = vmatmul.f32.gmra.mxu0 %v1574
          %v1636 = vpop.f32.mrf.mxu0
          %v1637 = vadd.f32 0.0, %v1636
          %1638 = vdwg.mxu0
          %1639 = vmatpush.msra.mxu0 %v1427
          %1640 = vmatpush.msra.mxu0 %v1423
          %1641 = vmatpush.msra.mxu0 %v1419
          %1642 = vmatpush.msra.mxu0 %v1415
          %1643 = vmatpush.msra.mxu0 %v1411
          %1644 = vmatpush.msra.mxu0 %v1407
          %1645 = vmatpush.msra.mxu0 %v1403
          %1646 = vmatpush.msra.mxu0 %v1399
          %1647 = vmatpush.msra.mxu0 %v1395
          %1648 = vmatpush.msra.mxu0 %v1391
          %1649 = vmatpush.msra.mxu0 %v1387
          %1650 = vmatpush.msra.mxu0 %v1383
          %1651 = vmatpush.msra.mxu0 %v1379
          %1652 = vmatpush.msra.mxu0 %v1375
          %1653 = vmatpush.msra.mxu0 %v1371
          %1654 = vmatpush.msra.mxu0 %v1367
          %1655 = vmatmul.f32.gmra.mxu0 %v1574
          %v1656 = vpop.f32.mrf.mxu0
          %v1657 = vadd.f32 0.0, %v1656
          %1658 = vdwg.mxu0
          %v1659 = vadd.f32 %v1575, %v1597
          %v1660 = vadd.f32 %v1576, %v1617
          %v1661 = vadd.f32 %v1577, %v1637
          %v1662 = vadd.f32 %v1578, %v1657
          %v1663 = vxor.u32 %v1659, 2147483648
          %v1664 = vmul.f32 %v1663, 1.442695
          %v1665 = vpow.pop %v1664
          %v1666 = vadd.f32 %v1665, 1.0
          %v1667 = vrcp.pop %v1666
          %v1668 = vmul.f32 %v1666, %v1667
          %v1669 = vsub.f32 1.0, %v1668
          %v1670 = vmul.f32 %v1667, %v1669
          %v1671 = vadd.f32 %v1667, %v1670
          %vm1672 = vweird.f32 %v1666
          %vm1673 = vweird.f32 %v1667
          %vm1674 = vmor %vm1672, %vm1673
          %v1675 = vsel %vm1674, %v1667, %v1671
          %v1676 = vand.u32 2147483647, %v1666
          %vm1677 = vcmp.eq.f32.partialorder %v1676, 8.507059e+37
          %v1678 = vand.u32 %v1666, 2147483648
          %v1679 = vor.u32 1.1754944e-38, %v1678
          %v1680 = vsel %vm1677, %v1679, %v1675
          %v1681 = vmul.f32 1.0, %v1680
          %v1682 = vxor.u32 %v1660, 2147483648
          %v1683 = vmul.f32 %v1682, 1.442695
          %v1684 = vpow.pop %v1683
          %v1685 = vadd.f32 %v1684, 1.0
          %v1686 = vrcp.pop %v1685
          %v1687 = vmul.f32 %v1685, %v1686
          %v1688 = vsub.f32 1.0, %v1687
          %v1689 = vmul.f32 %v1686, %v1688
          %v1690 = vadd.f32 %v1686, %v1689
          %vm1691 = vweird.f32 %v1685
          %vm1692 = vweird.f32 %v1686
          %vm1693 = vmor %vm1691, %vm1692
          %v1694 = vsel %vm1693, %v1686, %v1690
          %v1695 = vand.u32 2147483647, %v1685
          %vm1696 = vcmp.eq.f32.partialorder %v1695, 8.507059e+37
          %v1697 = vand.u32 %v1685, 2147483648
          %v1698 = vor.u32 1.1754944e-38, %v1697
          %v1699 = vsel %vm1696, %v1698, %v1694
          %v1700 = vmul.f32 1.0, %v1699
          %v1701 = vtanh.pop %v1661
          %v1702 = vxor.u32 %v1662, 2147483648
          %v1703 = vmul.f32 %v1702, 1.442695
          %v1704 = vpow.pop %v1703
          %v1705 = vadd.f32 %v1704, 1.0
          %v1706 = vrcp.pop %v1705
          %v1707 = vmul.f32 %v1705, %v1706
          %v1708 = vsub.f32 1.0, %v1707
          %v1709 = vmul.f32 %v1706, %v1708
          %v1710 = vadd.f32 %v1706, %v1709
          %vm1711 = vweird.f32 %v1705
          %vm1712 = vweird.f32 %v1706
          %vm1713 = vmor %vm1711, %vm1712
          %v1714 = vsel %vm1713, %v1706, %v1710
          %v1715 = vand.u32 2147483647, %v1705
          %vm1716 = vcmp.eq.f32.partialorder %v1715, 8.507059e+37
          %v1717 = vand.u32 %v1705, 2147483648
          %v1718 = vor.u32 1.1754944e-38, %v1717
          %v1719 = vsel %vm1716, %v1718, %v1714
          %v1720 = vmul.f32 1.0, %v1719
          %v1721 = vmul.f32 %v1700, %v1572
          %v1722 = vmul.f32 %v1681, %v1701
          %v1723 = vadd.f32 %v1721, %v1722
          %v1724 = vtanh.pop %v1723
          %v1725 = vmul.f32 %v1720, %v1724
          %v1726 = vld [vmem:[%s1359 + $0x40] sm:$0xff]
          %v1727 = vld [vmem:[%s1359 + $0x48] sm:$0xff]
          %v1728 = vld [vmem:[%s1359 + $0x50] sm:$0xff]
          %v1729 = vld [vmem:[%s1359 + $0x58] sm:$0xff]
          %1730 = vmatpush.msra.mxu0 %v1424
          %1731 = vmatpush.msra.mxu0 %v1420
          %1732 = vmatpush.msra.mxu0 %v1416
          %1733 = vmatpush.msra.mxu0 %v1412
          %1734 = vmatpush.msra.mxu0 %v1408
          %1735 = vmatpush.msra.mxu0 %v1404
          %1736 = vmatpush.msra.mxu0 %v1400
          %1737 = vmatpush.msra.mxu0 %v1396
          %1738 = vmatpush.msra.mxu0 %v1392
          %1739 = vmatpush.msra.mxu0 %v1388
          %1740 = vmatpush.msra.mxu0 %v1384
          %1741 = vmatpush.msra.mxu0 %v1380
          %1742 = vmatpush.msra.mxu0 %v1376
          %1743 = vmatpush.msra.mxu0 %v1372
          %1744 = vmatpush.msra.mxu0 %v1368
          %1745 = vmatpush.msra.mxu0 %v1364
          %1746 = vmatmul.f32.gmra.mxu0 %v1725
          %v1747 = vpop.f32.mrf.mxu0
          %v1748 = vadd.f32 0.0, %v1747
          %1749 = vdwg.mxu0
          %1750 = vmatpush.msra.mxu0 %v1425
          %1751 = vmatpush.msra.mxu0 %v1421
          %1752 = vmatpush.msra.mxu0 %v1417
          %1753 = vmatpush.msra.mxu0 %v1413
          %1754 = vmatpush.msra.mxu0 %v1409
          %1755 = vmatpush.msra.mxu0 %v1405
          %1756 = vmatpush.msra.mxu0 %v1401
          %1757 = vmatpush.msra.mxu0 %v1397
          %1758 = vmatpush.msra.mxu0 %v1393
          %1759 = vmatpush.msra.mxu0 %v1389
          %1760 = vmatpush.msra.mxu0 %v1385
          %1761 = vmatpush.msra.mxu0 %v1381
          %1762 = vmatpush.msra.mxu0 %v1377
          %1763 = vmatpush.msra.mxu0 %v1373
          %1764 = vmatpush.msra.mxu0 %v1369
          %1765 = vmatpush.msra.mxu0 %v1365
          %1766 = vmatmul.f32.gmra.mxu0 %v1725
          %v1767 = vpop.f32.mrf.mxu0
          %v1768 = vadd.f32 0.0, %v1767
          %1769 = vdwg.mxu0
          %1770 = vmatpush.msra.mxu0 %v1426
          %1771 = vmatpush.msra.mxu0 %v1422
          %1772 = vmatpush.msra.mxu0 %v1418
          %1773 = vmatpush.msra.mxu0 %v1414
          %1774 = vmatpush.msra.mxu0 %v1410
          %1775 = vmatpush.msra.mxu0 %v1406
          %1776 = vmatpush.msra.mxu0 %v1402
          %1777 = vmatpush.msra.mxu0 %v1398
          %1778 = vmatpush.msra.mxu0 %v1394
          %1779 = vmatpush.msra.mxu0 %v1390
          %1780 = vmatpush.msra.mxu0 %v1386
          %1781 = vmatpush.msra.mxu0 %v1382
          %1782 = vmatpush.msra.mxu0 %v1378
          %1783 = vmatpush.msra.mxu0 %v1374
          %1784 = vmatpush.msra.mxu0 %v1370
          %1785 = vmatpush.msra.mxu0 %v1366
          %1786 = vmatmul.f32.gmra.mxu0 %v1725
          %v1787 = vpop.f32.mrf.mxu0
          %v1788 = vadd.f32 0.0, %v1787
          %1789 = vdwg.mxu0
          %1790 = vmatpush.msra.mxu0 %v1427
          %1791 = vmatpush.msra.mxu0 %v1423
          %1792 = vmatpush.msra.mxu0 %v1419
          %1793 = vmatpush.msra.mxu0 %v1415
          %1794 = vmatpush.msra.mxu0 %v1411
          %1795 = vmatpush.msra.mxu0 %v1407
          %1796 = vmatpush.msra.mxu0 %v1403
          %1797 = vmatpush.msra.mxu0 %v1399
          %1798 = vmatpush.msra.mxu0 %v1395
          %1799 = vmatpush.msra.mxu0 %v1391
          %1800 = vmatpush.msra.mxu0 %v1387
          %1801 = vmatpush.msra.mxu0 %v1383
          %1802 = vmatpush.msra.mxu0 %v1379
          %1803 = vmatpush.msra.mxu0 %v1375
          %1804 = vmatpush.msra.mxu0 %v1371
          %1805 = vmatpush.msra.mxu0 %v1367
          %1806 = vmatmul.f32.gmra.mxu0 %v1725
          %v1807 = vpop.f32.mrf.mxu0
          %v1808 = vadd.f32 0.0, %v1807
          %1809 = vdwg.mxu0
          %v1810 = vadd.f32 %v1726, %v1748
          %v1811 = vadd.f32 %v1727, %v1768
          %v1812 = vadd.f32 %v1728, %v1788
          %v1813 = vadd.f32 %v1729, %v1808
          %v1814 = vxor.u32 %v1810, 2147483648
          %v1815 = vmul.f32 %v1814, 1.442695
          %v1816 = vpow.pop %v1815
          %v1817 = vadd.f32 %v1816, 1.0
          %v1818 = vrcp.pop %v1817
          %v1819 = vmul.f32 %v1817, %v1818
          %v1820 = vsub.f32 1.0, %v1819
          %v1821 = vmul.f32 %v1818, %v1820
          %v1822 = vadd.f32 %v1818, %v1821
          %vm1823 = vweird.f32 %v1817
          %vm1824 = vweird.f32 %v1818
          %vm1825 = vmor %vm1823, %vm1824
          %v1826 = vsel %vm1825, %v1818, %v1822
          %v1827 = vand.u32 2147483647, %v1817
          %vm1828 = vcmp.eq.f32.partialorder %v1827, 8.507059e+37
          %v1829 = vand.u32 %v1817, 2147483648
          %v1830 = vor.u32 1.1754944e-38, %v1829
          %v1831 = vsel %vm1828, %v1830, %v1826
          %v1832 = vmul.f32 1.0, %v1831
          %v1833 = vxor.u32 %v1811, 2147483648
          %v1834 = vmul.f32 %v1833, 1.442695
          %v1835 = vpow.pop %v1834
          %v1836 = vadd.f32 %v1835, 1.0
          %v1837 = vrcp.pop %v1836
          %v1838 = vmul.f32 %v1836, %v1837
          %v1839 = vsub.f32 1.0, %v1838
          %v1840 = vmul.f32 %v1837, %v1839
          %v1841 = vadd.f32 %v1837, %v1840
          %vm1842 = vweird.f32 %v1836
          %vm1843 = vweird.f32 %v1837
          %vm1844 = vmor %vm1842, %vm1843
          %v1845 = vsel %vm1844, %v1837, %v1841
          %v1846 = vand.u32 2147483647, %v1836
          %vm1847 = vcmp.eq.f32.partialorder %v1846, 8.507059e+37
          %v1848 = vand.u32 %v1836, 2147483648
          %v1849 = vor.u32 1.1754944e-38, %v1848
          %v1850 = vsel %vm1847, %v1849, %v1845
          %v1851 = vmul.f32 1.0, %v1850
          %v1852 = vtanh.pop %v1812
          %v1853 = vxor.u32 %v1813, 2147483648
          %v1854 = vmul.f32 %v1853, 1.442695
          %v1855 = vpow.pop %v1854
          %v1856 = vadd.f32 %v1855, 1.0
          %v1857 = vrcp.pop %v1856
          %v1858 = vmul.f32 %v1856, %v1857
          %v1859 = vsub.f32 1.0, %v1858
          %v1860 = vmul.f32 %v1857, %v1859
          %v1861 = vadd.f32 %v1857, %v1860
          %vm1862 = vweird.f32 %v1856
          %vm1863 = vweird.f32 %v1857
          %vm1864 = vmor %vm1862, %vm1863
          %v1865 = vsel %vm1864, %v1857, %v1861
          %v1866 = vand.u32 2147483647, %v1856
          %vm1867 = vcmp.eq.f32.partialorder %v1866, 8.507059e+37
          %v1868 = vand.u32 %v1856, 2147483648
          %v1869 = vor.u32 1.1754944e-38, %v1868
          %v1870 = vsel %vm1867, %v1869, %v1865
          %v1871 = vmul.f32 1.0, %v1870
          %v1872 = vmul.f32 %v1851, %v1723
          %v1873 = vmul.f32 %v1832, %v1852
          %v1874 = vadd.f32 %v1872, %v1873
          %v1875 = vtanh.pop %v1874
          %v1876 = vmul.f32 %v1871, %v1875
          %v1877 = vld [vmem:[%s1359 + $0x60] sm:$0xff]
          %v1878 = vld [vmem:[%s1359 + $0x68] sm:$0xff]
          %v1879 = vld [vmem:[%s1359 + $0x70] sm:$0xff]
          %v1880 = vld [vmem:[%s1359 + $0x78] sm:$0xff]
          %1881 = vmatpush.msra.mxu0 %v1424
          %1882 = vmatpush.msra.mxu0 %v1420
          %1883 = vmatpush.msra.mxu0 %v1416
          %1884 = vmatpush.msra.mxu0 %v1412
          %1885 = vmatpush.msra.mxu0 %v1408
          %1886 = vmatpush.msra.mxu0 %v1404
          %1887 = vmatpush.msra.mxu0 %v1400
          %1888 = vmatpush.msra.mxu0 %v1396
          %1889 = vmatpush.msra.mxu0 %v1392
          %1890 = vmatpush.msra.mxu0 %v1388
          %1891 = vmatpush.msra.mxu0 %v1384
          %1892 = vmatpush.msra.mxu0 %v1380
          %1893 = vmatpush.msra.mxu0 %v1376
          %1894 = vmatpush.msra.mxu0 %v1372
          %1895 = vmatpush.msra.mxu0 %v1368
          %1896 = vmatpush.msra.mxu0 %v1364
          %1897 = vmatmul.f32.gmra.mxu0 %v1876
          %v1898 = vpop.f32.mrf.mxu0
          %v1899 = vadd.f32 0.0, %v1898
          %1900 = vdwg.mxu0
          %1901 = vmatpush.msra.mxu0 %v1425
          %1902 = vmatpush.msra.mxu0 %v1421
          %1903 = vmatpush.msra.mxu0 %v1417
          %1904 = vmatpush.msra.mxu0 %v1413
          %1905 = vmatpush.msra.mxu0 %v1409
          %1906 = vmatpush.msra.mxu0 %v1405
          %1907 = vmatpush.msra.mxu0 %v1401
          %1908 = vmatpush.msra.mxu0 %v1397
          %1909 = vmatpush.msra.mxu0 %v1393
          %1910 = vmatpush.msra.mxu0 %v1389
          %1911 = vmatpush.msra.mxu0 %v1385
          %1912 = vmatpush.msra.mxu0 %v1381
          %1913 = vmatpush.msra.mxu0 %v1377
          %1914 = vmatpush.msra.mxu0 %v1373
          %1915 = vmatpush.msra.mxu0 %v1369
          %1916 = vmatpush.msra.mxu0 %v1365
          %1917 = vmatmul.f32.gmra.mxu0 %v1876
          %v1918 = vpop.f32.mrf.mxu0
          %v1919 = vadd.f32 0.0, %v1918
          %1920 = vdwg.mxu0
          %1921 = vmatpush.msra.mxu0 %v1426
          %1922 = vmatpush.msra.mxu0 %v1422
          %1923 = vmatpush.msra.mxu0 %v1418
          %1924 = vmatpush.msra.mxu0 %v1414
          %1925 = vmatpush.msra.mxu0 %v1410
          %1926 = vmatpush.msra.mxu0 %v1406
          %1927 = vmatpush.msra.mxu0 %v1402
          %1928 = vmatpush.msra.mxu0 %v1398
          %1929 = vmatpush.msra.mxu0 %v1394
          %1930 = vmatpush.msra.mxu0 %v1390
          %1931 = vmatpush.msra.mxu0 %v1386
          %1932 = vmatpush.msra.mxu0 %v1382
          %1933 = vmatpush.msra.mxu0 %v1378
          %1934 = vmatpush.msra.mxu0 %v1374
          %1935 = vmatpush.msra.mxu0 %v1370
          %1936 = vmatpush.msra.mxu0 %v1366
          %1937 = vmatmul.f32.gmra.mxu0 %v1876
          %v1938 = vpop.f32.mrf.mxu0
          %v1939 = vadd.f32 0.0, %v1938
          %1940 = vdwg.mxu0
          %1941 = vmatpush.msra.mxu0 %v1427
          %1942 = vmatpush.msra.mxu0 %v1423
          %1943 = vmatpush.msra.mxu0 %v1419
          %1944 = vmatpush.msra.mxu0 %v1415
          %1945 = vmatpush.msra.mxu0 %v1411
          %1946 = vmatpush.msra.mxu0 %v1407
          %1947 = vmatpush.msra.mxu0 %v1403
          %1948 = vmatpush.msra.mxu0 %v1399
          %1949 = vmatpush.msra.mxu0 %v1395
          %1950 = vmatpush.msra.mxu0 %v1391
          %1951 = vmatpush.msra.mxu0 %v1387
          %1952 = vmatpush.msra.mxu0 %v1383
          %1953 = vmatpush.msra.mxu0 %v1379
          %1954 = vmatpush.msra.mxu0 %v1375
          %1955 = vmatpush.msra.mxu0 %v1371
          %1956 = vmatpush.msra.mxu0 %v1367
          %1957 = vmatmul.f32.gmra.mxu0 %v1876
          %v1958 = vpop.f32.mrf.mxu0
          %v1959 = vadd.f32 0.0, %v1958
          %1960 = vdwg.mxu0
          %v1961 = vadd.f32 %v1877, %v1899
          %v1962 = vadd.f32 %v1878, %v1919
          %v1963 = vadd.f32 %v1879, %v1939
          %v1964 = vadd.f32 %v1880, %v1959
          %v1965 = vxor.u32 %v1961, 2147483648
          %v1966 = vmul.f32 %v1965, 1.442695
          %v1967 = vpow.pop %v1966
          %v1968 = vadd.f32 %v1967, 1.0
          %v1969 = vrcp.pop %v1968
          %v1970 = vmul.f32 %v1968, %v1969
          %v1971 = vsub.f32 1.0, %v1970
          %v1972 = vmul.f32 %v1969, %v1971
          %v1973 = vadd.f32 %v1969, %v1972
          %vm1974 = vweird.f32 %v1968
          %vm1975 = vweird.f32 %v1969
          %vm1976 = vmor %vm1974, %vm1975
          %v1977 = vsel %vm1976, %v1969, %v1973
          %v1978 = vand.u32 2147483647, %v1968
          %vm1979 = vcmp.eq.f32.partialorder %v1978, 8.507059e+37
          %v1980 = vand.u32 %v1968, 2147483648
          %v1981 = vor.u32 1.1754944e-38, %v1980
          %v1982 = vsel %vm1979, %v1981, %v1977
          %v1983 = vmul.f32 1.0, %v1982
          %v1984 = vxor.u32 %v1962, 2147483648
          %v1985 = vmul.f32 %v1984, 1.442695
          %v1986 = vpow.pop %v1985
          %v1987 = vadd.f32 %v1986, 1.0
          %v1988 = vrcp.pop %v1987
          %v1989 = vmul.f32 %v1987, %v1988
          %v1990 = vsub.f32 1.0, %v1989
          %v1991 = vmul.f32 %v1988, %v1990
          %v1992 = vadd.f32 %v1988, %v1991
          %vm1993 = vweird.f32 %v1987
          %vm1994 = vweird.f32 %v1988
          %vm1995 = vmor %vm1993, %vm1994
          %v1996 = vsel %vm1995, %v1988, %v1992
          %v1997 = vand.u32 2147483647, %v1987
          %vm1998 = vcmp.eq.f32.partialorder %v1997, 8.507059e+37
          %v1999 = vand.u32 %v1987, 2147483648
          %v2000 = vor.u32 1.1754944e-38, %v1999
          %v2001 = vsel %vm1998, %v2000, %v1996
          %v2002 = vmul.f32 1.0, %v2001
          %v2003 = vtanh.pop %v1963
          %v2004 = vxor.u32 %v1964, 2147483648
          %v2005 = vmul.f32 %v2004, 1.442695
          %v2006 = vpow.pop %v2005
          %v2007 = vadd.f32 %v2006, 1.0
          %v2008 = vrcp.pop %v2007
          %v2009 = vmul.f32 %v2007, %v2008
          %v2010 = vsub.f32 1.0, %v2009
          %v2011 = vmul.f32 %v2008, %v2010
          %v2012 = vadd.f32 %v2008, %v2011
          %vm2013 = vweird.f32 %v2007
          %vm2014 = vweird.f32 %v2008
          %vm2015 = vmor %vm2013, %vm2014
          %v2016 = vsel %vm2015, %v2008, %v2012
          %v2017 = vand.u32 2147483647, %v2007
          %vm2018 = vcmp.eq.f32.partialorder %v2017, 8.507059e+37
          %v2019 = vand.u32 %v2007, 2147483648
          %v2020 = vor.u32 1.1754944e-38, %v2019
          %v2021 = vsel %vm2018, %v2020, %v2016
          %v2022 = vmul.f32 1.0, %v2021
          %v2023 = vmul.f32 %v2002, %v1874
          %v2024 = vmul.f32 %v1983, %v2003
          %v2025 = vadd.f32 %v2023, %v2024
          %v2026 = vtanh.pop %v2025
          %v2027 = vmul.f32 %v2022, %v2026
          %2028 = vst [vmem:[#allocation2] sm:$0xff] %v2027
          %2029 = vst [vmem:[#allocation3] sm:$0xff] %v2025
          %2030 = vst [vmem:[#allocation13] sm:$0xff] %v2027
        $region64: #{tpu_custom_call.1} parent=35 // pred_fallthru
          _
        // Predicated region
        $region65: #{tpu_custom_call.1} parent=35 // pred_check
          %p2031 = pneg %p127
        $region66: #{tpu_custom_call.1} parent=35 // pred_check_branch
          %2033 = sbr.rel (%p2031) target = $region68
        $region67: #{tpu_custom_call.1} parent=35 // pred_region
          %2035 = vsyncadd [#allocation7], 0
          %s2037 = sshll.u32 [#allocation13], 4
          %s2038 = int_to_ptr.vmem [resolvable:$true] %s2037
          %s2039 = sshll.u32 %s4, 4
          %s2040 = int_to_ptr.hbm [resolvable:$true] %s2039
          %2042 = dma.vmem_to_hbm [thread:$0]  %s2038, 128, %s2040, [#allocation7]
        $region68: #{tpu_custom_call.1} parent=35 // pred_fallthru
          _
        // Predicated region
        $region69: #{tpu_custom_call.1} parent=35 // pred_check
          %p2043 = pneg %p127
        $region70: #{tpu_custom_call.1} parent=35 // pred_check_branch
          %2045 = sbr.rel (%p2043) target = $region72
        $region71: #{tpu_custom_call.1} parent=35 // pred_region
          %2047 = dma.done [#allocation7], 128
        $region72: #{tpu_custom_call.1} parent=35 // pred_fallthru
          _
      $region36: #{tpu_custom_call.1} parent=5 // pred_fallthru
        _
      %p2048 = scmp.le.s32.totalorder 2, %s16
      // Predicated region
      $region73: #{tpu_custom_call.1} parent=5 // pred_check
        %p2049 = pneg %p2048
      $region74: #{tpu_custom_call.1} parent=5 // pred_check_branch
        %2051 = sbr.rel (%p2049) target = $region76
      $region75: #{tpu_custom_call.1} parent=5 // pred_region
        %s2052 = ssub.s32 %s16, 2
      $region76: #{tpu_custom_call.1} parent=5 // pred_fallthru
        _
    $region6: #{tpu_custom_call.1} parent=1 // loop_footer
      %s20 = sadd.s32 1, %s16
    $region7: #{tpu_custom_call.1} parent=1 // loop_footer_branch
      %15 = sbr.rel target = $region3
    $region8: #{tpu_custom_call.1} parent=1 // loop_exit
      _
    %2053 = vsyncpa [#allocation6], 1
    %s2054 = scalar_lea.sflag [#allocation6], 1
    %2055 = vsyncpa %s2054, 1
    %2056 = vsyncpa [#allocation9], 1
    %2057 = vsyncpa [#allocation12], 1
    %2058 = vsyncpa [#allocation7], 1
    %s2059 = scalar_lea.sflag [#allocation7], 1
    %2060 = vsyncpa %s2059, 1

// kernel: tpu_custom_call.1
$region0: #{tpu_custom_call.1}
  #allocation0 [shape = 'u32[]', space=smem, size = 0x4, offset = 0x4, fixed_abs, tag = 'smem constant byte address 0x4 - core index']
  #allocation1 [shape = 'u32[72,128]{1,0:T(1,128)}', space=vmem, size = 0x9000, scoped, tag = 'internal scratch']
  #allocation2 [shape = 'f32[8,128]{1,0:T(8,128)}', space=vmem, size = 0x1000, scoped, tag = 'scratch operand']
  #allocation3 [shape = 'f32[8,128]{1,0:T(8,128)}', space=vmem, size = 0x1000, scoped, tag = 'scratch operand']
  #allocation4 [shape = 'f32[2,32,512]{2,1,0:T(8,128)}', space=vmem, size = 0x20000, scoped, tag = 'scratch operand']
  %s0 = inlined_call_operand.hbm [shape: f32[64,64], index: 0, kind: input, shape index: {}]
  %s1 = inlined_call_operand.hbm [shape: f32[64,512], index: 1, kind: input, shape index: {}]
  %s2 = inlined_call_operand.hbm [shape: f32[128,512], index: 2, kind: input, shape index: {}]
  %s3 = inlined_call_operand.hbm [shape: f32[1,512], index: 3, kind: input, shape index: {}]
  %s4 = inlined_call_operand.hbm [shape: f32[8,128], index: 4, kind: output, shape index: {}]
  %s5 = sld [smem:[#allocation0]]
  $region77: #{tpu_custom_call.1} parent=0
    _
  %s7 = ssub.s32 1, %s5
  %s8 = scalar_select 0, %s7, %s5
  $region1: #{tpu_custom_call.1} parent=0
    #allocation5 [shape = 'u8[32768]{0}', space=vmem, size = 0x8000, scoped, tag = 'input window, operand 0']
    #allocation6 [shape = 's32[2]{0}', space=sflag, size = 0x8, scoped, tag = 'scoped memory for tpu_custom_call.1']
    #allocation7 [shape = 's32[2]{0}', space=sflag, size = 0x8, scoped, tag = 'scoped memory for tpu_custom_call.1']
    #allocation8 [shape = 'u8[131072]{0}', space=vmem, size = 0x20000, scoped, tag = 'input window, operand 1, single buffered']
    #allocation9 [shape = 's32[1]{0}', space=sflag, size = 0x4, scoped, tag = 'scoped memory for tpu_custom_call.1']
    #allocation10 [shape = 'u8[262144]{0}', space=vmem, size = 0x40000, scoped, tag = 'input window, operand 2, single buffered']
    #allocation11 [shape = 'u8[2048]{0}', space=vmem, size = 0x800, scoped, tag = 'input window, operand 3, single buffered']
    #allocation12 [shape = 's32[1]{0}', space=sflag, size = 0x4, scoped, tag = 'scoped memory for tpu_custom_call.1']
    #allocation13 [shape = 'u8[4096]{0}', space=vmem, size = 0x1000, scoped, tag = 'output window, operand 0, single buffered']
    %9 = vsyncpa [#allocation6], 0
    %s10 = scalar_lea.sflag [#allocation6], 1
    %11 = vsyncpa %s10, 0
    %12 = vsyncpa [#allocation9], 0
    %13 = vsyncpa [#allocation12], 0
    %14 = vsyncpa [#allocation7], 0
    loop: start=0, step=1, limit=5
    $region2: #{tpu_custom_call.1} parent=1 // loop_pre_header
      _
    $region3: #{tpu_custom_call.1} parent=1 // loop_header
      %s16 = sphi 0, %s20
      %p17 = scmp.ge.s32.totalorder %s16, 5
      %s30 = sphi 0, %s32
      %s33 = sphi 0, %s30
      %s34 = sphi 0, %s33
      %s50 = sphi 0, %s34
      %s54 = sphi 0, %s54
      %s56 = sphi 0, %s54
      %s57 = sphi 0, %s56
      %s71 = sphi 0, %s57
      %s75 = sphi 0, %s75
      %s77 = sphi 0, %s75
      %s78 = sphi 0, %s77
      %s92 = sphi 0, %s78
      %s96 = sphi 0, %s96
      %s98 = sphi 0, %s96
      %s99 = sphi 0, %s98
      %s113 = sphi 0, %s99
      %s117 = sphi 0, %s117
      %s119 = sphi 0, %s117
      %s120 = sphi 0, %s119
      %s134 = sphi 0, %s120
    $region4: #{tpu_custom_call.1} parent=1 // loop_header_branch
      %19 = sbr.rel (%p17) target = $region8
    $region5: #{tpu_custom_call.1} parent=1 // loop_body
      %s21 = ssub.s32 %s16, 1
      %s22 = ssub.s32 %s16, 2
      %s23 = sadd.s32 %s16, 1
      %p24 = scmp.lt.s32.totalorder %s16, 1
      %s25 = scalar_select %p24, %s16, 1
      %p26 = scmp.lt.s32.totalorder %s23, 1
      %s27 = scalar_select %p26, %s23, 1
      %s28 = ssub.s32 %s25, %s27
      %p29 = scmp.eq.s32.totalorder %s28, 0
      %s31 = sadd.s32 %s30, 1
      %s32 = scalar_select %p29, %s30, %s31
      %p35 = pneg %p29
      %p36 = scmp.eq.s32.totalorder %s16, 2
      %p37 = por %p35, %p36
      %p38 = scmp.ne.s32.totalorder %s30, %s33
      %p39 = scmp.eq.s32.totalorder %s16, 0
      %p40 = por %p38, %p39
      %p41 = scmp.ne.s32.totalorder %s30, %s33
      %p42 = scmp.eq.s32.totalorder %s21, 2
      %p43 = por %p41, %p42
      %p44 = scmp.ne.s32.totalorder %s33, %s34
      %p45 = scmp.eq.s32.totalorder %s21, 0
      %p46 = por %p44, %p45
      %p47 = scmp.ne.s32.totalorder %s33, %s34
      %p48 = scmp.eq.s32.totalorder %s22, 2
      %p49 = por %p47, %p48
      %p51 = scmp.ne.s32.totalorder %s34, %s50
      %p52 = scmp.eq.s32.totalorder %s22, 0
      %p53 = por %p51, %p52
      %s55 = sadd.s32 %s54, 1
      %p58 = scmp.eq.s32.totalorder %s16, 2
      %p59 = scmp.ne.s32.totalorder %s54, %s56
      %p60 = scmp.eq.s32.totalorder %s16, 0
      %p61 = por %p59, %p60
      %p62 = scmp.ne.s32.totalorder %s54, %s56
      %p63 = scmp.eq.s32.totalorder %s21, 2
      %p64 = por %p62, %p63
      %p65 = scmp.ne.s32.totalorder %s56, %s57
      %p66 = scmp.eq.s32.totalorder %s21, 0
      %p67 = por %p65, %p66
      %p68 = scmp.ne.s32.totalorder %s56, %s57
      %p69 = scmp.eq.s32.totalorder %s22, 2
      %p70 = por %p68, %p69
      %p72 = scmp.ne.s32.totalorder %s57, %s71
      %p73 = scmp.eq.s32.totalorder %s22, 0
      %p74 = por %p72, %p73
      %s76 = sadd.s32 %s75, 1
      %p79 = scmp.eq.s32.totalorder %s16, 2
      %p80 = scmp.ne.s32.totalorder %s75, %s77
      %p81 = scmp.eq.s32.totalorder %s16, 0
      %p82 = por %p80, %p81
      %p83 = scmp.ne.s32.totalorder %s75, %s77
      %p84 = scmp.eq.s32.totalorder %s21, 2
      %p85 = por %p83, %p84
      %p86 = scmp.ne.s32.totalorder %s77, %s78
      %p87 = scmp.eq.s32.totalorder %s21, 0
      %p88 = por %p86, %p87
      %p89 = scmp.ne.s32.totalorder %s77, %s78
      %p90 = scmp.eq.s32.totalorder %s22, 2
      %p91 = por %p89, %p90
      %p93 = scmp.ne.s32.totalorder %s78, %s92
      %p94 = scmp.eq.s32.totalorder %s22, 0
      %p95 = por %p93, %p94
      %s97 = sadd.s32 %s96, 1
      %p100 = scmp.eq.s32.totalorder %s16, 2
      %p101 = scmp.ne.s32.totalorder %s96, %s98
      %p102 = scmp.eq.s32.totalorder %s16, 0
      %p103 = por %p101, %p102
      %p104 = scmp.ne.s32.totalorder %s96, %s98
      %p105 = scmp.eq.s32.totalorder %s21, 2
      %p106 = por %p104, %p105
      %p107 = scmp.ne.s32.totalorder %s98, %s99
      %p108 = scmp.eq.s32.totalorder %s21, 0
      %p109 = por %p107, %p108
      %p110 = scmp.ne.s32.totalorder %s98, %s99
      %p111 = scmp.eq.s32.totalorder %s22, 2
      %p112 = por %p110, %p111
      %p114 = scmp.ne.s32.totalorder %s99, %s113
      %p115 = scmp.eq.s32.totalorder %s22, 0
      %p116 = por %p114, %p115
      %s118 = sadd.s32 %s117, 1
      %p121 = scmp.eq.s32.totalorder %s16, 2
      %p122 = scmp.ne.s32.totalorder %s117, %s119
      %p123 = scmp.eq.s32.totalorder %s16, 0
      %p124 = por %p122, %p123
      %p125 = scmp.ne.s32.totalorder %s117, %s119
      %p126 = scmp.eq.s32.totalorder %s21, 2
      %p127 = por %p125, %p126
      %p128 = scmp.ne.s32.totalorder %s119, %s120
      %p129 = scmp.eq.s32.totalorder %s21, 0
      %p130 = por %p128, %p129
      %p131 = scmp.ne.s32.totalorder %s119, %s120
      %p132 = scmp.eq.s32.totalorder %s22, 2
      %p133 = por %p131, %p132
      %p135 = scmp.ne.s32.totalorder %s120, %s134
      %p136 = scmp.eq.s32.totalorder %s22, 0
      %p137 = por %p135, %p136
      %p138 = scmp.le.s32.totalorder 1, %s16
      %p139 = scmp.lt.s32.totalorder %s16, 4
      %p140 = pnand %p138, %p139
      %p141 = pneg %p140
      // Predicated region
      $region9: #{tpu_custom_call.1} parent=5 // pred_check
        _
      $region10: #{tpu_custom_call.1} parent=5 // pred_check_branch
        %143 = sbr.rel (%p140) target = $region12
      $region11: #{tpu_custom_call.1} parent=5 // pred_region
        %s144 = ssub.s32 %s16, 1
        // Predicated region
        $region13: #{tpu_custom_call.1} parent=11 // pred_check
          %p145 = pneg %p67
        $region14: #{tpu_custom_call.1} parent=11 // pred_check_branch
          %147 = sbr.rel (%p145) target = $region16
        $region15: #{tpu_custom_call.1} parent=11 // pred_region
          %149 = vsyncadd [#allocation9], 0
          %s150 = sshll.u32 %s1, 4
          %s151 = int_to_ptr.hbm [resolvable:$true] %s150
          %s152 = sshll.u32 [#allocation8], 4
          %s153 = int_to_ptr.vmem [resolvable:$true] %s152
          %158 = dma.hbm_to_vmem [thread:$0]  %s151, 4096, %s153, [#allocation9], 512, 512, 32
        $region16: #{tpu_custom_call.1} parent=11 // pred_fallthru
          _
        // Predicated region
        $region17: #{tpu_custom_call.1} parent=11 // pred_check
          %p159 = pneg %p88
        $region18: #{tpu_custom_call.1} parent=11 // pred_check_branch
          %161 = sbr.rel (%p159) target = $region20
        $region19: #{tpu_custom_call.1} parent=11 // pred_region
          %163 = vsyncadd [#allocation9], 0
          %s164 = sshll.u32 %s2, 4
          %s165 = int_to_ptr.hbm [resolvable:$true] %s164
          %s166 = sshll.u32 [#allocation10], 4
          %s167 = int_to_ptr.vmem [resolvable:$true] %s166
          %172 = dma.hbm_to_vmem [thread:$0]  %s165, 8192, %s167, [#allocation9], 512, 512, 32
        $region20: #{tpu_custom_call.1} parent=11 // pred_fallthru
          _
        // Predicated region
        $region21: #{tpu_custom_call.1} parent=11 // pred_check
          %p173 = pneg %p109
        $region22: #{tpu_custom_call.1} parent=11 // pred_check_branch
          %175 = sbr.rel (%p173) target = $region24
        $region23: #{tpu_custom_call.1} parent=11 // pred_region
          %177 = vsyncadd [#allocation12], 0
          %s179 = sshll.u32 %s3, 4
          %s180 = int_to_ptr.hbm [resolvable:$true] %s179
          %s181 = sshll.u32 [#allocation11], 4
          %s182 = int_to_ptr.vmem [resolvable:$true] %s181
          %184 = dma.hbm_to_vmem [thread:$0]  %s180, 64, %s182, [#allocation12]
        $region24: #{tpu_custom_call.1} parent=11 // pred_fallthru
          _
      $region12: #{tpu_custom_call.1} parent=5 // pred_fallthru
        _
      %p185 = scmp.lt.s32.totalorder %s16, 3
      // Predicated region
      $region25: #{tpu_custom_call.1} parent=5 // pred_check
        %p186 = pneg %p185
      $region26: #{tpu_custom_call.1} parent=5 // pred_check_branch
        %188 = sbr.rel (%p186) target = $region28
      $region27: #{tpu_custom_call.1} parent=5 // pred_region
        // Predicated region
        $region29: #{tpu_custom_call.1} parent=27 // pred_check
          %p189 = pneg %p40
        $region30: #{tpu_custom_call.1} parent=27 // pred_check_branch
          %191 = sbr.rel (%p189) target = $region32
        $region31: #{tpu_custom_call.1} parent=27 // pred_region
          %s192 = sand.u32 %s30, 1
          %s193 = scalar_lea.sflag [#allocation6], %s192
          %s194 = sand.u32 %s30, 1
          %s195 = smul.addr %s194, 32
          %s196 = scalar_lea.vmem [#allocation5], %s195
          %p197 = scmp.lt.s32.totalorder %s16, 1
          %s198 = scalar_select %p197, %s16, 1
          %s199 = smul.u32 4, %s198
          %201 = vsyncadd %s193, 0
          %s202 = smul.addr %s199, 8
          %s203 = scalar_lea.hbm %s0, %s202
          %s204 = sshll.u32 %s203, 4
          %s205 = int_to_ptr.hbm [resolvable:$true] %s204
          %s206 = sshll.u32 %s196, 4
          %s207 = int_to_ptr.vmem [resolvable:$true] %s206
          %212 = dma.hbm_to_vmem [thread:$0]  %s205, 512, %s207, %s193, 128, 128, 8
        $region32: #{tpu_custom_call.1} parent=27 // pred_fallthru
          _
      $region28: #{tpu_custom_call.1} parent=5 // pred_fallthru
        _
      %p213 = scmp.le.s32.totalorder 1, %s16
      %p214 = scmp.lt.s32.totalorder %s16, 4
      %p215 = pnand %p213, %p214
      %p216 = pneg %p215
      // Predicated region
      $region33: #{tpu_custom_call.1} parent=5 // pred_check
        _
      $region34: #{tpu_custom_call.1} parent=5 // pred_check_branch
        %218 = sbr.rel (%p215) target = $region36
      $region35: #{tpu_custom_call.1} parent=5 // pred_region
        %s219 = ssub.s32 %s16, 1
        %s220 = sand.u32 %s33, 1
        %s221 = scalar_lea.sflag [#allocation6], %s220
        %s222 = sand.u32 %s33, 1
        %s223 = smul.addr %s222, 32
        %s224 = scalar_lea.vmem [#allocation5], %s223
        // Predicated region
        $region37: #{tpu_custom_call.1} parent=35 // pred_check
          %p225 = pneg %p46
        $region38: #{tpu_custom_call.1} parent=35 // pred_check_branch
          %227 = sbr.rel (%p225) target = $region40
        $region39: #{tpu_custom_call.1} parent=35 // pred_region
          %229 = dma.done %s221, 512
        $region40: #{tpu_custom_call.1} parent=35 // pred_fallthru
          _
        // Predicated region
        $region41: #{tpu_custom_call.1} parent=35 // pred_check
          %p230 = pneg %p67
        $region42: #{tpu_custom_call.1} parent=35 // pred_check_branch
          %232 = sbr.rel (%p230) target = $region44
        $region43: #{tpu_custom_call.1} parent=35 // pred_region
          %234 = dma.done [#allocation9], 4096
        $region44: #{tpu_custom_call.1} parent=35 // pred_fallthru
          _
        // Predicated region
        $region45: #{tpu_custom_call.1} parent=35 // pred_check
          %p235 = pneg %p88
        $region46: #{tpu_custom_call.1} parent=35 // pred_check_branch
          %237 = sbr.rel (%p235) target = $region48
        $region47: #{tpu_custom_call.1} parent=35 // pred_region
          %239 = dma.done [#allocation9], 8192
        $region48: #{tpu_custom_call.1} parent=35 // pred_fallthru
          _
        // Predicated region
        $region49: #{tpu_custom_call.1} parent=35 // pred_check
          %p240 = pneg %p109
        $region50: #{tpu_custom_call.1} parent=35 // pred_check_branch
          %242 = sbr.rel (%p240) target = $region52
        $region51: #{tpu_custom_call.1} parent=35 // pred_region
          %244 = dma.done [#allocation12], 64
        $region52: #{tpu_custom_call.1} parent=35 // pred_fallthru
          _
        %s245 = sand.u32 %s33, 1
        %s246 = scalar_lea.sflag [#allocation6], %s245
        %s247 = sand.u32 %s33, 1
        %s248 = smul.addr %s247, 32
        %s249 = scalar_lea.vmem [#allocation5], %s248
        %p250 = pneg %p46
        %p251 = pneg %p43
        %p252 = pneg %p67
        %p253 = pneg %p64
        %p254 = pneg %p88
        %p255 = pneg %p85
        %p256 = pneg %p109
        %p257 = pneg %p106
        %p258 = pneg %p130
        %p259 = pneg %p127
        %p260 = scmp.lt.s32.totalorder %s21, 1
        %s261 = scalar_select %p260, %s21, 1
        %s262 = smul.u32 4, %s261
        %p263 = scmp.lt.s32.totalorder %s21, 0
        %s264 = ssub.s32 0, %s21
        %s265 = scalar_select %p263, %s264, %s21
        %s266 = sand.u32 %s265, 1
        %s267 = ssub.s32 0, %s266
        %s268 = scalar_select %p263, %s267, %s266
        %p269 = scmp.ne.s32.totalorder %s268, 0
        %p270 = scmp.lt.s32.totalorder %s268, 0
        %p271 = pnand %p270, %p269
        %p272 = pneg %p271
        %s273 = sadd.s32 %s268, 2
        %s274 = scalar_select %p272, %s273, %s268
        %s275 = ssub.s32 1, %s274
        %p276 = scmp.eq.s32.totalorder %s21, 0
        // Predicated region
        $region53: #{tpu_custom_call.1} parent=35 // pred_check
          %p277 = pneg %p276
        $region54: #{tpu_custom_call.1} parent=35 // pred_check_branch
          %279 = sbr.rel (%p277) target = $region56
        $region55: #{tpu_custom_call.1} parent=35 // pred_region
          %280 = vst [vmem:[#allocation2] sm:$0xff] 0.0
          %281 = vst [vmem:[#allocation3] sm:$0xff] 0.0
          %v282 = vld [vmem:[%s224] sm:$0xff]
          %v283 = vld [vmem:[%s224 + $0x8] sm:$0xff]
          %v284 = vld [vmem:[%s224 + $0x10] sm:$0xff]
          %v285 = vld [vmem:[%s224 + $0x18] sm:$0xff]
          %v286 = vld [vmem:[#allocation8] sm:$0xff]
          %v287 = vld [vmem:[#allocation8 + $0x8] sm:$0xff]
          %v288 = vld [vmem:[#allocation8 + $0x10] sm:$0xff]
          %v289 = vld [vmem:[#allocation8 + $0x18] sm:$0xff]
          %v290 = vld [vmem:[#allocation8 + $0x20] sm:$0xff]
          %v291 = vld [vmem:[#allocation8 + $0x28] sm:$0xff]
          %v292 = vld [vmem:[#allocation8 + $0x30] sm:$0xff]
          %v293 = vld [vmem:[#allocation8 + $0x38] sm:$0xff]
          %v294 = vld [vmem:[#allocation8 + $0x40] sm:$0xff]
          %v295 = vld [vmem:[#allocation8 + $0x48] sm:$0xff]
          %v296 = vld [vmem:[#allocation8 + $0x50] sm:$0xff]
          %v297 = vld [vmem:[#allocation8 + $0x58] sm:$0xff]
          %v298 = vld [vmem:[#allocation8 + $0x60] sm:$0xff]
          %v299 = vld [vmem:[#allocation8 + $0x68] sm:$0xff]
          %v300 = vld [vmem:[#allocation8 + $0x70] sm:$0xff]
          %v301 = vld [vmem:[#allocation8 + $0x78] sm:$0xff]
          %v302 = vld [vmem:[#allocation8 + $0x80] sm:$0xff]
          %v303 = vld [vmem:[#allocation8 + $0x88] sm:$0xff]
          %v304 = vld [vmem:[#allocation8 + $0x90] sm:$0xff]
          %v305 = vld [vmem:[#allocation8 + $0x98] sm:$0xff]
          %v306 = vld [vmem:[#allocation8 + $0xa0] sm:$0xff]
          %v307 = vld [vmem:[#allocation8 + $0xa8] sm:$0xff]
          %v308 = vld [vmem:[#allocation8 + $0xb0] sm:$0xff]
          %v309 = vld [vmem:[#allocation8 + $0xb8] sm:$0xff]
          %v310 = vld [vmem:[#allocation8 + $0xc0] sm:$0xff]
          %v311 = vld [vmem:[#allocation8 + $0xc8] sm:$0xff]
          %v312 = vld [vmem:[#allocation8 + $0xd0] sm:$0xff]
          %v313 = vld [vmem:[#allocation8 + $0xd8] sm:$0xff]
          %v314 = vld [vmem:[#allocation8 + $0xe0] sm:$0xff]
          %v315 = vld [vmem:[#allocation8 + $0xe8] sm:$0xff]
          %v316 = vld [vmem:[#allocation8 + $0xf0] sm:$0xff]
          %v317 = vld [vmem:[#allocation8 + $0xf8] sm:$0xff]
          %v318 = vld [vmem:[#allocation11] sm:$0xf]
          %v320 = vperm.slane %v318, 0
          %v321 = vperm.slane %v318, 1
          %v322 = vperm.slane %v318, 2
          %v323 = vperm.slane %v318, 3
          %vm328 = vcmask 523264
          %v330 = vsel %vm328, %v282, 0
          %v333 = vsel %vm328, %v283, 0
          %v336 = vsel %vm328, %v284, 0
          %v339 = vsel %vm328, %v285, 0
          %341 = vmatpush.msra.mxu0 0.0
          %342 = vmatpush.msra.mxu0 0.0
          %343 = vmatpush.msra.mxu0 0.0
          %344 = vmatpush.msra.mxu0 0.0
          %345 = vmatpush.msra.mxu0 0.0
          %346 = vmatpush.msra.mxu0 0.0
          %347 = vmatpush.msra.mxu0 0.0
          %348 = vmatpush.msra.mxu0 0.0
          %349 = vmatpush.msra.mxu0 %v314
          %350 = vmatpush.msra.mxu0 %v310
          %351 = vmatpush.msra.mxu0 %v306
          %352 = vmatpush.msra.mxu0 %v302
          %353 = vmatpush.msra.mxu0 %v298
          %354 = vmatpush.msra.mxu0 %v294
          %355 = vmatpush.msra.mxu0 %v290
          %356 = vmatpush.msra.mxu0 %v286
          %357 = vmatmul.f32.gmra.mxu0 %v330
          %v358 = vpop.f32.mrf.mxu0
          %v359 = vadd.f32 %v320, %v358
          %360 = vmatmul.f32.gmra.mxu0 %v333
          %v361 = vpop.f32.mrf.mxu0
          %v362 = vadd.f32 %v320, %v361
          %363 = vmatmul.f32.gmra.mxu0 %v336
          %v364 = vpop.f32.mrf.mxu0
          %v365 = vadd.f32 %v320, %v364
          %366 = vmatmul.f32.gmra.mxu0 %v339
          %v367 = vpop.f32.mrf.mxu0
          %v368 = vadd.f32 %v320, %v367
          %369 = vdwg.mxu0
          %370 = vmatpush.msra.mxu0 0.0
          %371 = vmatpush.msra.mxu0 0.0
          %372 = vmatpush.msra.mxu0 0.0
          %373 = vmatpush.msra.mxu0 0.0
          %374 = vmatpush.msra.mxu0 0.0
          %375 = vmatpush.msra.mxu0 0.0
          %376 = vmatpush.msra.mxu0 0.0
          %377 = vmatpush.msra.mxu0 0.0
          %378 = vmatpush.msra.mxu0 %v315
          %379 = vmatpush.msra.mxu0 %v311
          %380 = vmatpush.msra.mxu0 %v307
          %381 = vmatpush.msra.mxu0 %v303
          %382 = vmatpush.msra.mxu0 %v299
          %383 = vmatpush.msra.mxu0 %v295
          %384 = vmatpush.msra.mxu0 %v291
          %385 = vmatpush.msra.mxu0 %v287
          %386 = vmatmul.f32.gmra.mxu0 %v330
          %v387 = vpop.f32.mrf.mxu0
          %v388 = vadd.f32 %v321, %v387
          %389 = vmatmul.f32.gmra.mxu0 %v333
          %v390 = vpop.f32.mrf.mxu0
          %v391 = vadd.f32 %v321, %v390
          %392 = vmatmul.f32.gmra.mxu0 %v336
          %v393 = vpop.f32.mrf.mxu0
          %v394 = vadd.f32 %v321, %v393
          %395 = vmatmul.f32.gmra.mxu0 %v339
          %v396 = vpop.f32.mrf.mxu0
          %v397 = vadd.f32 %v321, %v396
          %398 = vdwg.mxu0
          %399 = vmatpush.msra.mxu0 0.0
          %400 = vmatpush.msra.mxu0 0.0
          %401 = vmatpush.msra.mxu0 0.0
          %402 = vmatpush.msra.mxu0 0.0
          %403 = vmatpush.msra.mxu0 0.0
          %404 = vmatpush.msra.mxu0 0.0
          %405 = vmatpush.msra.mxu0 0.0
          %406 = vmatpush.msra.mxu0 0.0
          %407 = vmatpush.msra.mxu0 %v316
          %408 = vmatpush.msra.mxu0 %v312
          %409 = vmatpush.msra.mxu0 %v308
          %410 = vmatpush.msra.mxu0 %v304
          %411 = vmatpush.msra.mxu0 %v300
          %412 = vmatpush.msra.mxu0 %v296
          %413 = vmatpush.msra.mxu0 %v292
          %414 = vmatpush.msra.mxu0 %v288
          %415 = vmatmul.f32.gmra.mxu0 %v330
          %v416 = vpop.f32.mrf.mxu0
          %v417 = vadd.f32 %v322, %v416
          %418 = vmatmul.f32.gmra.mxu0 %v333
          %v419 = vpop.f32.mrf.mxu0
          %v420 = vadd.f32 %v322, %v419
          %421 = vmatmul.f32.gmra.mxu0 %v336
          %v422 = vpop.f32.mrf.mxu0
          %v423 = vadd.f32 %v322, %v422
          %424 = vmatmul.f32.gmra.mxu0 %v339
          %v425 = vpop.f32.mrf.mxu0
          %v426 = vadd.f32 %v322, %v425
          %427 = vdwg.mxu0
          %428 = vmatpush.msra.mxu0 0.0
          %429 = vmatpush.msra.mxu0 0.0
          %430 = vmatpush.msra.mxu0 0.0
          %431 = vmatpush.msra.mxu0 0.0
          %432 = vmatpush.msra.mxu0 0.0
          %433 = vmatpush.msra.mxu0 0.0
          %434 = vmatpush.msra.mxu0 0.0
          %435 = vmatpush.msra.mxu0 0.0
          %436 = vmatpush.msra.mxu0 %v317
          %437 = vmatpush.msra.mxu0 %v313
          %438 = vmatpush.msra.mxu0 %v309
          %439 = vmatpush.msra.mxu0 %v305
          %440 = vmatpush.msra.mxu0 %v301
          %441 = vmatpush.msra.mxu0 %v297
          %442 = vmatpush.msra.mxu0 %v293
          %443 = vmatpush.msra.mxu0 %v289
          %444 = vmatmul.f32.gmra.mxu0 %v330
          %v445 = vpop.f32.mrf.mxu0
          %v446 = vadd.f32 %v323, %v445
          %447 = vmatmul.f32.gmra.mxu0 %v333
          %v448 = vpop.f32.mrf.mxu0
          %v449 = vadd.f32 %v323, %v448
          %450 = vmatmul.f32.gmra.mxu0 %v336
          %v451 = vpop.f32.mrf.mxu0
          %v452 = vadd.f32 %v323, %v451
          %453 = vmatmul.f32.gmra.mxu0 %v339
          %v454 = vpop.f32.mrf.mxu0
          %v455 = vadd.f32 %v323, %v454
          %456 = vdwg.mxu0
          %s457 = smul.u32 %s274, 16
          %s458 = smul.addr %s457, 8
          %s459 = scalar_lea.vmem [#allocation4], %s458
          %460 = vst [vmem:[%s459] sm:$0xff] %v359
          %461 = vst [vmem:[%s459 + $0x8] sm:$0xff] %v388
          %462 = vst [vmem:[%s459 + $0x10] sm:$0xff] %v417
          %463 = vst [vmem:[%s459 + $0x18] sm:$0xff] %v446
          %464 = vst [vmem:[%s459 + $0x20] sm:$0xff] %v362
          %465 = vst [vmem:[%s459 + $0x28] sm:$0xff] %v391
          %466 = vst [vmem:[%s459 + $0x30] sm:$0xff] %v420
          %467 = vst [vmem:[%s459 + $0x38] sm:$0xff] %v449
          %468 = vst [vmem:[%s459 + $0x40] sm:$0xff] %v365
          %469 = vst [vmem:[%s459 + $0x48] sm:$0xff] %v394
          %470 = vst [vmem:[%s459 + $0x50] sm:$0xff] %v423
          %471 = vst [vmem:[%s459 + $0x58] sm:$0xff] %v452
          %472 = vst [vmem:[%s459 + $0x60] sm:$0xff] %v368
          %473 = vst [vmem:[%s459 + $0x68] sm:$0xff] %v397
          %474 = vst [vmem:[%s459 + $0x70] sm:$0xff] %v426
          %475 = vst [vmem:[%s459 + $0x78] sm:$0xff] %v455
        $region56: #{tpu_custom_call.1} parent=35 // pred_fallthru
          _
        %p476 = scmp.ge.s32.totalorder %s21, 1
        %p477 = scmp.lt.s32.totalorder %s21, 2
        %p478 = pnand %p476, %p477
        %p479 = pneg %p478
        // Predicated region
        $region57: #{tpu_custom_call.1} parent=35 // pred_check
          _
        $region58: #{tpu_custom_call.1} parent=35 // pred_check_branch
          %481 = sbr.rel (%p478) target = $region60
        $region59: #{tpu_custom_call.1} parent=35 // pred_region
          %v482 = vld [vmem:[#allocation2] sm:$0xff]
          %v483 = vld [vmem:[#allocation3] sm:$0xff]
          %s484 = smul.u32 %s275, 16
          %s485 = smul.addr %s484, 8
          %s486 = scalar_lea.vmem [#allocation4], %s485
          %v487 = vld [vmem:[%s486] sm:$0xff]
          %v488 = vld [vmem:[%s486 + $0x8] sm:$0xff]
          %v489 = vld [vmem:[%s486 + $0x10] sm:$0xff]
          %v490 = vld [vmem:[%s486 + $0x18] sm:$0xff]
          %v491 = vld [vmem:[#allocation10] sm:$0xff]
          %v492 = vld [vmem:[#allocation10 + $0x8] sm:$0xff]
          %v493 = vld [vmem:[#allocation10 + $0x10] sm:$0xff]
          %v494 = vld [vmem:[#allocation10 + $0x18] sm:$0xff]
          %v495 = vld [vmem:[#allocation10 + $0x20] sm:$0xff]
          %v496 = vld [vmem:[#allocation10 + $0x28] sm:$0xff]
          %v497 = vld [vmem:[#allocation10 + $0x30] sm:$0xff]
          %v498 = vld [vmem:[#allocation10 + $0x38] sm:$0xff]
          %v499 = vld [vmem:[#allocation10 + $0x40] sm:$0xff]
          %v500 = vld [vmem:[#allocation10 + $0x48] sm:$0xff]
          %v501 = vld [vmem:[#allocation10 + $0x50] sm:$0xff]
          %v502 = vld [vmem:[#allocation10 + $0x58] sm:$0xff]
          %v503 = vld [vmem:[#allocation10 + $0x60] sm:$0xff]
          %v504 = vld [vmem:[#allocation10 + $0x68] sm:$0xff]
          %v505 = vld [vmem:[#allocation10 + $0x70] sm:$0xff]
          %v506 = vld [vmem:[#allocation10 + $0x78] sm:$0xff]
          %v507 = vld [vmem:[#allocation10 + $0x80] sm:$0xff]
          %v508 = vld [vmem:[#allocation10 + $0x88] sm:$0xff]
          %v509 = vld [vmem:[#allocation10 + $0x90] sm:$0xff]
          %v510 = vld [vmem:[#allocation10 + $0x98] sm:$0xff]
          %v511 = vld [vmem:[#allocation10 + $0xa0] sm:$0xff]
          %v512 = vld [vmem:[#allocation10 + $0xa8] sm:$0xff]
          %v513 = vld [vmem:[#allocation10 + $0xb0] sm:$0xff]
          %v514 = vld [vmem:[#allocation10 + $0xb8] sm:$0xff]
          %v515 = vld [vmem:[#allocation10 + $0xc0] sm:$0xff]
          %v516 = vld [vmem:[#allocation10 + $0xc8] sm:$0xff]
          %v517 = vld [vmem:[#allocation10 + $0xd0] sm:$0xff]
          %v518 = vld [vmem:[#allocation10 + $0xd8] sm:$0xff]
          %v519 = vld [vmem:[#allocation10 + $0xe0] sm:$0xff]
          %v520 = vld [vmem:[#allocation10 + $0xe8] sm:$0xff]
          %v521 = vld [vmem:[#allocation10 + $0xf0] sm:$0xff]
          %v522 = vld [vmem:[#allocation10 + $0xf8] sm:$0xff]
          %v523 = vld [vmem:[#allocation10 + $0x100] sm:$0xff]
          %v524 = vld [vmem:[#allocation10 + $0x108] sm:$0xff]
          %v525 = vld [vmem:[#allocation10 + $0x110] sm:$0xff]
          %v526 = vld [vmem:[#allocation10 + $0x118] sm:$0xff]
          %v527 = vld [vmem:[#allocation10 + $0x120] sm:$0xff]
          %v528 = vld [vmem:[#allocation10 + $0x128] sm:$0xff]
          %v529 = vld [vmem:[#allocation10 + $0x130] sm:$0xff]
          %v530 = vld [vmem:[#allocation10 + $0x138] sm:$0xff]
          %v531 = vld [vmem:[#allocation10 + $0x140] sm:$0xff]
          %v532 = vld [vmem:[#allocation10 + $0x148] sm:$0xff]
          %v533 = vld [vmem:[#allocation10 + $0x150] sm:$0xff]
          %v534 = vld [vmem:[#allocation10 + $0x158] sm:$0xff]
          %v535 = vld [vmem:[#allocation10 + $0x160] sm:$0xff]
          %v536 = vld [vmem:[#allocation10 + $0x168] sm:$0xff]
          %v537 = vld [vmem:[#allocation10 + $0x170] sm:$0xff]
          %v538 = vld [vmem:[#allocation10 + $0x178] sm:$0xff]
          %v539 = vld [vmem:[#allocation10 + $0x180] sm:$0xff]
          %v540 = vld [vmem:[#allocation10 + $0x188] sm:$0xff]
          %v541 = vld [vmem:[#allocation10 + $0x190] sm:$0xff]
          %v542 = vld [vmem:[#allocation10 + $0x198] sm:$0xff]
          %v543 = vld [vmem:[#allocation10 + $0x1a0] sm:$0xff]
          %v544 = vld [vmem:[#allocation10 + $0x1a8] sm:$0xff]
          %v545 = vld [vmem:[#allocation10 + $0x1b0] sm:$0xff]
          %v546 = vld [vmem:[#allocation10 + $0x1b8] sm:$0xff]
          %v547 = vld [vmem:[#allocation10 + $0x1c0] sm:$0xff]
          %v548 = vld [vmem:[#allocation10 + $0x1c8] sm:$0xff]
          %v549 = vld [vmem:[#allocation10 + $0x1d0] sm:$0xff]
          %v550 = vld [vmem:[#allocation10 + $0x1d8] sm:$0xff]
          %v551 = vld [vmem:[#allocation10 + $0x1e0] sm:$0xff]
          %v552 = vld [vmem:[#allocation10 + $0x1e8] sm:$0xff]
          %v553 = vld [vmem:[#allocation10 + $0x1f0] sm:$0xff]
          %v554 = vld [vmem:[#allocation10 + $0x1f8] sm:$0xff]
          %555 = vmatpush.msra.mxu0 %v551
          %556 = vmatpush.msra.mxu0 %v547
          %557 = vmatpush.msra.mxu0 %v543
          %558 = vmatpush.msra.mxu0 %v539
          %559 = vmatpush.msra.mxu0 %v535
          %560 = vmatpush.msra.mxu0 %v531
          %561 = vmatpush.msra.mxu0 %v527
          %562 = vmatpush.msra.mxu0 %v523
          %563 = vmatpush.msra.mxu0 %v519
          %564 = vmatpush.msra.mxu0 %v515
          %565 = vmatpush.msra.mxu0 %v511
          %566 = vmatpush.msra.mxu0 %v507
          %567 = vmatpush.msra.mxu0 %v503
          %568 = vmatpush.msra.mxu0 %v499
          %569 = vmatpush.msra.mxu0 %v495
          %570 = vmatpush.msra.mxu0 %v491
          %571 = vmatmul.f32.gmra.mxu0 %v482
          %v572 = vpop.f32.mrf.mxu0
          %v573 = vadd.f32 0.0, %v572
          %574 = vdwg.mxu0
          %575 = vmatpush.msra.mxu0 %v552
          %576 = vmatpush.msra.mxu0 %v548
          %577 = vmatpush.msra.mxu0 %v544
          %578 = vmatpush.msra.mxu0 %v540
          %579 = vmatpush.msra.mxu0 %v536
          %580 = vmatpush.msra.mxu0 %v532
          %581 = vmatpush.msra.mxu0 %v528
          %582 = vmatpush.msra.mxu0 %v524
          %583 = vmatpush.msra.mxu0 %v520
          %584 = vmatpush.msra.mxu0 %v516
          %585 = vmatpush.msra.mxu0 %v512
          %586 = vmatpush.msra.mxu0 %v508
          %587 = vmatpush.msra.mxu0 %v504
          %588 = vmatpush.msra.mxu0 %v500
          %589 = vmatpush.msra.mxu0 %v496
          %590 = vmatpush.msra.mxu0 %v492
          %591 = vmatmul.f32.gmra.mxu0 %v482
          %v592 = vpop.f32.mrf.mxu0
          %v593 = vadd.f32 0.0, %v592
          %594 = vdwg.mxu0
          %595 = vmatpush.msra.mxu0 %v553
          %596 = vmatpush.msra.mxu0 %v549
          %597 = vmatpush.msra.mxu0 %v545
          %598 = vmatpush.msra.mxu0 %v541
          %599 = vmatpush.msra.mxu0 %v537
          %600 = vmatpush.msra.mxu0 %v533
          %601 = vmatpush.msra.mxu0 %v529
          %602 = vmatpush.msra.mxu0 %v525
          %603 = vmatpush.msra.mxu0 %v521
          %604 = vmatpush.msra.mxu0 %v517
          %605 = vmatpush.msra.mxu0 %v513
          %606 = vmatpush.msra.mxu0 %v509
          %607 = vmatpush.msra.mxu0 %v505
          %608 = vmatpush.msra.mxu0 %v501
          %609 = vmatpush.msra.mxu0 %v497
          %610 = vmatpush.msra.mxu0 %v493
          %611 = vmatmul.f32.gmra.mxu0 %v482
          %v612 = vpop.f32.mrf.mxu0
          %v613 = vadd.f32 0.0, %v612
          %614 = vdwg.mxu0
          %615 = vmatpush.msra.mxu0 %v554
          %616 = vmatpush.msra.mxu0 %v550
          %617 = vmatpush.msra.mxu0 %v546
          %618 = vmatpush.msra.mxu0 %v542
          %619 = vmatpush.msra.mxu0 %v538
          %620 = vmatpush.msra.mxu0 %v534
          %621 = vmatpush.msra.mxu0 %v530
          %622 = vmatpush.msra.mxu0 %v526
          %623 = vmatpush.msra.mxu0 %v522
          %624 = vmatpush.msra.mxu0 %v518
          %625 = vmatpush.msra.mxu0 %v514
          %626 = vmatpush.msra.mxu0 %v510
          %627 = vmatpush.msra.mxu0 %v506
          %628 = vmatpush.msra.mxu0 %v502
          %629 = vmatpush.msra.mxu0 %v498
          %630 = vmatpush.msra.mxu0 %v494
          %631 = vmatmul.f32.gmra.mxu0 %v482
          %v632 = vpop.f32.mrf.mxu0
          %v633 = vadd.f32 0.0, %v632
          %634 = vdwg.mxu0
          %v635 = vadd.f32 %v487, %v573
          %v636 = vadd.f32 %v488, %v593
          %v637 = vadd.f32 %v489, %v613
          %v638 = vadd.f32 %v490, %v633
          %v639 = vxor.u32 %v635, 2147483648
          %v640 = vmul.f32 %v639, 1.442695
          %v641 = vpow.pop %v640
          %v642 = vadd.f32 %v641, 1.0
          %v643 = vrcp.pop %v642
          %v644 = vmul.f32 %v642, %v643
          %v645 = vsub.f32 1.0, %v644
          %v646 = vmul.f32 %v643, %v645
          %v647 = vadd.f32 %v643, %v646
          %vm648 = vweird.f32 %v642
          %vm649 = vweird.f32 %v643
          %vm650 = vmor %vm648, %vm649
          %v651 = vsel %vm650, %v643, %v647
          %v652 = vand.u32 2147483647, %v642
          %vm653 = vcmp.eq.f32.partialorder %v652, 8.507059e+37
          %v654 = vand.u32 %v642, 2147483648
          %v655 = vor.u32 1.1754944e-38, %v654
          %v656 = vsel %vm653, %v655, %v651
          %v657 = vmul.f32 1.0, %v656
          %v658 = vxor.u32 %v636, 2147483648
          %v659 = vmul.f32 %v658, 1.442695
          %v660 = vpow.pop %v659
          %v661 = vadd.f32 %v660, 1.0
          %v662 = vrcp.pop %v661
          %v663 = vmul.f32 %v661, %v662
          %v664 = vsub.f32 1.0, %v663
          %v665 = vmul.f32 %v662, %v664
          %v666 = vadd.f32 %v662, %v665
          %vm667 = vweird.f32 %v661
          %vm668 = vweird.f32 %v662
          %vm669 = vmor %vm667, %vm668
          %v670 = vsel %vm669, %v662, %v666
          %v671 = vand.u32 2147483647, %v661
          %vm672 = vcmp.eq.f32.partialorder %v671, 8.507059e+37
          %v673 = vand.u32 %v661, 2147483648
          %v674 = vor.u32 1.1754944e-38, %v673
          %v675 = vsel %vm672, %v674, %v670
          %v676 = vmul.f32 1.0, %v675
          %v677 = vtanh.pop %v637
          %v678 = vxor.u32 %v638, 2147483648
          %v679 = vmul.f32 %v678, 1.442695
          %v680 = vpow.pop %v679
          %v681 = vadd.f32 %v680, 1.0
          %v682 = vrcp.pop %v681
          %v683 = vmul.f32 %v681, %v682
          %v684 = vsub.f32 1.0, %v683
          %v685 = vmul.f32 %v682, %v684
          %v686 = vadd.f32 %v682, %v685
          %vm687 = vweird.f32 %v681
          %vm688 = vweird.f32 %v682
          %vm689 = vmor %vm687, %vm688
          %v690 = vsel %vm689, %v682, %v686
          %v691 = vand.u32 2147483647, %v681
          %vm692 = vcmp.eq.f32.partialorder %v691, 8.507059e+37
          %v693 = vand.u32 %v681, 2147483648
          %v694 = vor.u32 1.1754944e-38, %v693
          %v695 = vsel %vm692, %v694, %v690
          %v696 = vmul.f32 1.0, %v695
          %v697 = vmul.f32 %v676, %v483
          %v698 = vmul.f32 %v657, %v677
          %v699 = vadd.f32 %v697, %v698
          %v700 = vtanh.pop %v699
          %v701 = vmul.f32 %v696, %v700
          %v702 = vld [vmem:[%s486 + $0x20] sm:$0xff]
          %v703 = vld [vmem:[%s486 + $0x28] sm:$0xff]
          %v704 = vld [vmem:[%s486 + $0x30] sm:$0xff]
          %v705 = vld [vmem:[%s486 + $0x38] sm:$0xff]
          %706 = vmatpush.msra.mxu0 %v551
          %707 = vmatpush.msra.mxu0 %v547
          %708 = vmatpush.msra.mxu0 %v543
          %709 = vmatpush.msra.mxu0 %v539
          %710 = vmatpush.msra.mxu0 %v535
          %711 = vmatpush.msra.mxu0 %v531
          %712 = vmatpush.msra.mxu0 %v527
          %713 = vmatpush.msra.mxu0 %v523
          %714 = vmatpush.msra.mxu0 %v519
          %715 = vmatpush.msra.mxu0 %v515
          %716 = vmatpush.msra.mxu0 %v511
          %717 = vmatpush.msra.mxu0 %v507
          %718 = vmatpush.msra.mxu0 %v503
          %719 = vmatpush.msra.mxu0 %v499
          %720 = vmatpush.msra.mxu0 %v495
          %721 = vmatpush.msra.mxu0 %v491
          %722 = vmatmul.f32.gmra.mxu0 %v701
          %v723 = vpop.f32.mrf.mxu0
          %v724 = vadd.f32 0.0, %v723
          %725 = vdwg.mxu0
          %726 = vmatpush.msra.mxu0 %v552
          %727 = vmatpush.msra.mxu0 %v548
          %728 = vmatpush.msra.mxu0 %v544
          %729 = vmatpush.msra.mxu0 %v540
          %730 = vmatpush.msra.mxu0 %v536
          %731 = vmatpush.msra.mxu0 %v532
          %732 = vmatpush.msra.mxu0 %v528
          %733 = vmatpush.msra.mxu0 %v524
          %734 = vmatpush.msra.mxu0 %v520
          %735 = vmatpush.msra.mxu0 %v516
          %736 = vmatpush.msra.mxu0 %v512
          %737 = vmatpush.msra.mxu0 %v508
          %738 = vmatpush.msra.mxu0 %v504
          %739 = vmatpush.msra.mxu0 %v500
          %740 = vmatpush.msra.mxu0 %v496
          %741 = vmatpush.msra.mxu0 %v492
          %742 = vmatmul.f32.gmra.mxu0 %v701
          %v743 = vpop.f32.mrf.mxu0
          %v744 = vadd.f32 0.0, %v743
          %745 = vdwg.mxu0
          %746 = vmatpush.msra.mxu0 %v553
          %747 = vmatpush.msra.mxu0 %v549
          %748 = vmatpush.msra.mxu0 %v545
          %749 = vmatpush.msra.mxu0 %v541
          %750 = vmatpush.msra.mxu0 %v537
          %751 = vmatpush.msra.mxu0 %v533
          %752 = vmatpush.msra.mxu0 %v529
          %753 = vmatpush.msra.mxu0 %v525
          %754 = vmatpush.msra.mxu0 %v521
          %755 = vmatpush.msra.mxu0 %v517
          %756 = vmatpush.msra.mxu0 %v513
          %757 = vmatpush.msra.mxu0 %v509
          %758 = vmatpush.msra.mxu0 %v505
          %759 = vmatpush.msra.mxu0 %v501
          %760 = vmatpush.msra.mxu0 %v497
          %761 = vmatpush.msra.mxu0 %v493
          %762 = vmatmul.f32.gmra.mxu0 %v701
          %v763 = vpop.f32.mrf.mxu0
          %v764 = vadd.f32 0.0, %v763
          %765 = vdwg.mxu0
          %766 = vmatpush.msra.mxu0 %v554
          %767 = vmatpush.msra.mxu0 %v550
          %768 = vmatpush.msra.mxu0 %v546
          %769 = vmatpush.msra.mxu0 %v542
          %770 = vmatpush.msra.mxu0 %v538
          %771 = vmatpush.msra.mxu0 %v534
          %772 = vmatpush.msra.mxu0 %v530
          %773 = vmatpush.msra.mxu0 %v526
          %774 = vmatpush.msra.mxu0 %v522
          %775 = vmatpush.msra.mxu0 %v518
          %776 = vmatpush.msra.mxu0 %v514
          %777 = vmatpush.msra.mxu0 %v510
          %778 = vmatpush.msra.mxu0 %v506
          %779 = vmatpush.msra.mxu0 %v502
          %780 = vmatpush.msra.mxu0 %v498
          %781 = vmatpush.msra.mxu0 %v494
          %782 = vmatmul.f32.gmra.mxu0 %v701
          %v783 = vpop.f32.mrf.mxu0
          %v784 = vadd.f32 0.0, %v783
          %785 = vdwg.mxu0
          %v786 = vadd.f32 %v702, %v724
          %v787 = vadd.f32 %v703, %v744
          %v788 = vadd.f32 %v704, %v764
          %v789 = vadd.f32 %v705, %v784
          %v790 = vxor.u32 %v786, 2147483648
          %v791 = vmul.f32 %v790, 1.442695
          %v792 = vpow.pop %v791
          %v793 = vadd.f32 %v792, 1.0
          %v794 = vrcp.pop %v793
          %v795 = vmul.f32 %v793, %v794
          %v796 = vsub.f32 1.0, %v795
          %v797 = vmul.f32 %v794, %v796
          %v798 = vadd.f32 %v794, %v797
          %vm799 = vweird.f32 %v793
          %vm800 = vweird.f32 %v794
          %vm801 = vmor %vm799, %vm800
          %v802 = vsel %vm801, %v794, %v798
          %v803 = vand.u32 2147483647, %v793
          %vm804 = vcmp.eq.f32.partialorder %v803, 8.507059e+37
          %v805 = vand.u32 %v793, 2147483648
          %v806 = vor.u32 1.1754944e-38, %v805
          %v807 = vsel %vm804, %v806, %v802
          %v808 = vmul.f32 1.0, %v807
          %v809 = vxor.u32 %v787, 2147483648
          %v810 = vmul.f32 %v809, 1.442695
          %v811 = vpow.pop %v810
          %v812 = vadd.f32 %v811, 1.0
          %v813 = vrcp.pop %v812
          %v814 = vmul.f32 %v812, %v813
          %v815 = vsub.f32 1.0, %v814
          %v816 = vmul.f32 %v813, %v815
          %v817 = vadd.f32 %v813, %v816
          %vm818 = vweird.f32 %v812
          %vm819 = vweird.f32 %v813
          %vm820 = vmor %vm818, %vm819
          %v821 = vsel %vm820, %v813, %v817
          %v822 = vand.u32 2147483647, %v812
          %vm823 = vcmp.eq.f32.partialorder %v822, 8.507059e+37
          %v824 = vand.u32 %v812, 2147483648
          %v825 = vor.u32 1.1754944e-38, %v824
          %v826 = vsel %vm823, %v825, %v821
          %v827 = vmul.f32 1.0, %v826
          %v828 = vtanh.pop %v788
          %v829 = vxor.u32 %v789, 2147483648
          %v830 = vmul.f32 %v829, 1.442695
          %v831 = vpow.pop %v830
          %v832 = vadd.f32 %v831, 1.0
          %v833 = vrcp.pop %v832
          %v834 = vmul.f32 %v832, %v833
          %v835 = vsub.f32 1.0, %v834
          %v836 = vmul.f32 %v833, %v835
          %v837 = vadd.f32 %v833, %v836
          %vm838 = vweird.f32 %v832
          %vm839 = vweird.f32 %v833
          %vm840 = vmor %vm838, %vm839
          %v841 = vsel %vm840, %v833, %v837
          %v842 = vand.u32 2147483647, %v832
          %vm843 = vcmp.eq.f32.partialorder %v842, 8.507059e+37
          %v844 = vand.u32 %v832, 2147483648
          %v845 = vor.u32 1.1754944e-38, %v844
          %v846 = vsel %vm843, %v845, %v841
          %v847 = vmul.f32 1.0, %v846
          %v848 = vmul.f32 %v827, %v699
          %v849 = vmul.f32 %v808, %v828
          %v850 = vadd.f32 %v848, %v849
          %v851 = vtanh.pop %v850
          %v852 = vmul.f32 %v847, %v851
          %v853 = vld [vmem:[%s486 + $0x40] sm:$0xff]
          %v854 = vld [vmem:[%s486 + $0x48] sm:$0xff]
          %v855 = vld [vmem:[%s486 + $0x50] sm:$0xff]
          %v856 = vld [vmem:[%s486 + $0x58] sm:$0xff]
          %857 = vmatpush.msra.mxu0 %v551
          %858 = vmatpush.msra.mxu0 %v547
          %859 = vmatpush.msra.mxu0 %v543
          %860 = vmatpush.msra.mxu0 %v539
          %861 = vmatpush.msra.mxu0 %v535
          %862 = vmatpush.msra.mxu0 %v531
          %863 = vmatpush.msra.mxu0 %v527
          %864 = vmatpush.msra.mxu0 %v523
          %865 = vmatpush.msra.mxu0 %v519
          %866 = vmatpush.msra.mxu0 %v515
          %867 = vmatpush.msra.mxu0 %v511
          %868 = vmatpush.msra.mxu0 %v507
          %869 = vmatpush.msra.mxu0 %v503
          %870 = vmatpush.msra.mxu0 %v499
          %871 = vmatpush.msra.mxu0 %v495
          %872 = vmatpush.msra.mxu0 %v491
          %873 = vmatmul.f32.gmra.mxu0 %v852
          %v874 = vpop.f32.mrf.mxu0
          %v875 = vadd.f32 0.0, %v874
          %876 = vdwg.mxu0
          %877 = vmatpush.msra.mxu0 %v552
          %878 = vmatpush.msra.mxu0 %v548
          %879 = vmatpush.msra.mxu0 %v544
          %880 = vmatpush.msra.mxu0 %v540
          %881 = vmatpush.msra.mxu0 %v536
          %882 = vmatpush.msra.mxu0 %v532
          %883 = vmatpush.msra.mxu0 %v528
          %884 = vmatpush.msra.mxu0 %v524
          %885 = vmatpush.msra.mxu0 %v520
          %886 = vmatpush.msra.mxu0 %v516
          %887 = vmatpush.msra.mxu0 %v512
          %888 = vmatpush.msra.mxu0 %v508
          %889 = vmatpush.msra.mxu0 %v504
          %890 = vmatpush.msra.mxu0 %v500
          %891 = vmatpush.msra.mxu0 %v496
          %892 = vmatpush.msra.mxu0 %v492
          %893 = vmatmul.f32.gmra.mxu0 %v852
          %v894 = vpop.f32.mrf.mxu0
          %v895 = vadd.f32 0.0, %v894
          %896 = vdwg.mxu0
          %897 = vmatpush.msra.mxu0 %v553
          %898 = vmatpush.msra.mxu0 %v549
          %899 = vmatpush.msra.mxu0 %v545
          %900 = vmatpush.msra.mxu0 %v541
          %901 = vmatpush.msra.mxu0 %v537
          %902 = vmatpush.msra.mxu0 %v533
          %903 = vmatpush.msra.mxu0 %v529
          %904 = vmatpush.msra.mxu0 %v525
          %905 = vmatpush.msra.mxu0 %v521
          %906 = vmatpush.msra.mxu0 %v517
          %907 = vmatpush.msra.mxu0 %v513
          %908 = vmatpush.msra.mxu0 %v509
          %909 = vmatpush.msra.mxu0 %v505
          %910 = vmatpush.msra.mxu0 %v501
          %911 = vmatpush.msra.mxu0 %v497
          %912 = vmatpush.msra.mxu0 %v493
          %913 = vmatmul.f32.gmra.mxu0 %v852
          %v914 = vpop.f32.mrf.mxu0
          %v915 = vadd.f32 0.0, %v914
          %916 = vdwg.mxu0
          %917 = vmatpush.msra.mxu0 %v554
          %918 = vmatpush.msra.mxu0 %v550
          %919 = vmatpush.msra.mxu0 %v546
          %920 = vmatpush.msra.mxu0 %v542
          %921 = vmatpush.msra.mxu0 %v538
          %922 = vmatpush.msra.mxu0 %v534
          %923 = vmatpush.msra.mxu0 %v530
          %924 = vmatpush.msra.mxu0 %v526
          %925 = vmatpush.msra.mxu0 %v522
          %926 = vmatpush.msra.mxu0 %v518
          %927 = vmatpush.msra.mxu0 %v514
          %928 = vmatpush.msra.mxu0 %v510
          %929 = vmatpush.msra.mxu0 %v506
          %930 = vmatpush.msra.mxu0 %v502
          %931 = vmatpush.msra.mxu0 %v498
          %932 = vmatpush.msra.mxu0 %v494
          %933 = vmatmul.f32.gmra.mxu0 %v852
          %v934 = vpop.f32.mrf.mxu0
          %v935 = vadd.f32 0.0, %v934
          %936 = vdwg.mxu0
          %v937 = vadd.f32 %v853, %v875
          %v938 = vadd.f32 %v854, %v895
          %v939 = vadd.f32 %v855, %v915
          %v940 = vadd.f32 %v856, %v935
          %v941 = vxor.u32 %v937, 2147483648
          %v942 = vmul.f32 %v941, 1.442695
          %v943 = vpow.pop %v942
          %v944 = vadd.f32 %v943, 1.0
          %v945 = vrcp.pop %v944
          %v946 = vmul.f32 %v944, %v945
          %v947 = vsub.f32 1.0, %v946
          %v948 = vmul.f32 %v945, %v947
          %v949 = vadd.f32 %v945, %v948
          %vm950 = vweird.f32 %v944
          %vm951 = vweird.f32 %v945
          %vm952 = vmor %vm950, %vm951
          %v953 = vsel %vm952, %v945, %v949
          %v954 = vand.u32 2147483647, %v944
          %vm955 = vcmp.eq.f32.partialorder %v954, 8.507059e+37
          %v956 = vand.u32 %v944, 2147483648
          %v957 = vor.u32 1.1754944e-38, %v956
          %v958 = vsel %vm955, %v957, %v953
          %v959 = vmul.f32 1.0, %v958
          %v960 = vxor.u32 %v938, 2147483648
          %v961 = vmul.f32 %v960, 1.442695
          %v962 = vpow.pop %v961
          %v963 = vadd.f32 %v962, 1.0
          %v964 = vrcp.pop %v963
          %v965 = vmul.f32 %v963, %v964
          %v966 = vsub.f32 1.0, %v965
          %v967 = vmul.f32 %v964, %v966
          %v968 = vadd.f32 %v964, %v967
          %vm969 = vweird.f32 %v963
          %vm970 = vweird.f32 %v964
          %vm971 = vmor %vm969, %vm970
          %v972 = vsel %vm971, %v964, %v968
          %v973 = vand.u32 2147483647, %v963
          %vm974 = vcmp.eq.f32.partialorder %v973, 8.507059e+37
          %v975 = vand.u32 %v963, 2147483648
          %v976 = vor.u32 1.1754944e-38, %v975
          %v977 = vsel %vm974, %v976, %v972
          %v978 = vmul.f32 1.0, %v977
          %v979 = vtanh.pop %v939
          %v980 = vxor.u32 %v940, 2147483648
          %v981 = vmul.f32 %v980, 1.442695
          %v982 = vpow.pop %v981
          %v983 = vadd.f32 %v982, 1.0
          %v984 = vrcp.pop %v983
          %v985 = vmul.f32 %v983, %v984
          %v986 = vsub.f32 1.0, %v985
          %v987 = vmul.f32 %v984, %v986
          %v988 = vadd.f32 %v984, %v987
          %vm989 = vweird.f32 %v983
          %vm990 = vweird.f32 %v984
          %vm991 = vmor %vm989, %vm990
          %v992 = vsel %vm991, %v984, %v988
          %v993 = vand.u32 2147483647, %v983
          %vm994 = vcmp.eq.f32.partialorder %v993, 8.507059e+37
          %v995 = vand.u32 %v983, 2147483648
          %v996 = vor.u32 1.1754944e-38, %v995
          %v997 = vsel %vm994, %v996, %v992
          %v998 = vmul.f32 1.0, %v997
          %v999 = vmul.f32 %v978, %v850
          %v1000 = vmul.f32 %v959, %v979
          %v1001 = vadd.f32 %v999, %v1000
          %v1002 = vtanh.pop %v1001
          %v1003 = vmul.f32 %v998, %v1002
          %v1004 = vld [vmem:[%s486 + $0x60] sm:$0xff]
          %v1005 = vld [vmem:[%s486 + $0x68] sm:$0xff]
          %v1006 = vld [vmem:[%s486 + $0x70] sm:$0xff]
          %v1007 = vld [vmem:[%s486 + $0x78] sm:$0xff]
          %1008 = vmatpush.msra.mxu0 %v551
          %1009 = vmatpush.msra.mxu0 %v547
          %1010 = vmatpush.msra.mxu0 %v543
          %1011 = vmatpush.msra.mxu0 %v539
          %1012 = vmatpush.msra.mxu0 %v535
          %1013 = vmatpush.msra.mxu0 %v531
          %1014 = vmatpush.msra.mxu0 %v527
          %1015 = vmatpush.msra.mxu0 %v523
          %1016 = vmatpush.msra.mxu0 %v519
          %1017 = vmatpush.msra.mxu0 %v515
          %1018 = vmatpush.msra.mxu0 %v511
          %1019 = vmatpush.msra.mxu0 %v507
          %1020 = vmatpush.msra.mxu0 %v503
          %1021 = vmatpush.msra.mxu0 %v499
          %1022 = vmatpush.msra.mxu0 %v495
          %1023 = vmatpush.msra.mxu0 %v491
          %1024 = vmatmul.f32.gmra.mxu0 %v1003
          %v1025 = vpop.f32.mrf.mxu0
          %v1026 = vadd.f32 0.0, %v1025
          %1027 = vdwg.mxu0
          %1028 = vmatpush.msra.mxu0 %v552
          %1029 = vmatpush.msra.mxu0 %v548
          %1030 = vmatpush.msra.mxu0 %v544
          %1031 = vmatpush.msra.mxu0 %v540
          %1032 = vmatpush.msra.mxu0 %v536
          %1033 = vmatpush.msra.mxu0 %v532
          %1034 = vmatpush.msra.mxu0 %v528
          %1035 = vmatpush.msra.mxu0 %v524
          %1036 = vmatpush.msra.mxu0 %v520
          %1037 = vmatpush.msra.mxu0 %v516
          %1038 = vmatpush.msra.mxu0 %v512
          %1039 = vmatpush.msra.mxu0 %v508
          %1040 = vmatpush.msra.mxu0 %v504
          %1041 = vmatpush.msra.mxu0 %v500
          %1042 = vmatpush.msra.mxu0 %v496
          %1043 = vmatpush.msra.mxu0 %v492
          %1044 = vmatmul.f32.gmra.mxu0 %v1003
          %v1045 = vpop.f32.mrf.mxu0
          %v1046 = vadd.f32 0.0, %v1045
          %1047 = vdwg.mxu0
          %1048 = vmatpush.msra.mxu0 %v553
          %1049 = vmatpush.msra.mxu0 %v549
          %1050 = vmatpush.msra.mxu0 %v545
          %1051 = vmatpush.msra.mxu0 %v541
          %1052 = vmatpush.msra.mxu0 %v537
          %1053 = vmatpush.msra.mxu0 %v533
          %1054 = vmatpush.msra.mxu0 %v529
          %1055 = vmatpush.msra.mxu0 %v525
          %1056 = vmatpush.msra.mxu0 %v521
          %1057 = vmatpush.msra.mxu0 %v517
          %1058 = vmatpush.msra.mxu0 %v513
          %1059 = vmatpush.msra.mxu0 %v509
          %1060 = vmatpush.msra.mxu0 %v505
          %1061 = vmatpush.msra.mxu0 %v501
          %1062 = vmatpush.msra.mxu0 %v497
          %1063 = vmatpush.msra.mxu0 %v493
          %1064 = vmatmul.f32.gmra.mxu0 %v1003
          %v1065 = vpop.f32.mrf.mxu0
          %v1066 = vadd.f32 0.0, %v1065
          %1067 = vdwg.mxu0
          %1068 = vmatpush.msra.mxu0 %v554
          %1069 = vmatpush.msra.mxu0 %v550
          %1070 = vmatpush.msra.mxu0 %v546
          %1071 = vmatpush.msra.mxu0 %v542
          %1072 = vmatpush.msra.mxu0 %v538
          %1073 = vmatpush.msra.mxu0 %v534
          %1074 = vmatpush.msra.mxu0 %v530
          %1075 = vmatpush.msra.mxu0 %v526
          %1076 = vmatpush.msra.mxu0 %v522
          %1077 = vmatpush.msra.mxu0 %v518
          %1078 = vmatpush.msra.mxu0 %v514
          %1079 = vmatpush.msra.mxu0 %v510
          %1080 = vmatpush.msra.mxu0 %v506
          %1081 = vmatpush.msra.mxu0 %v502
          %1082 = vmatpush.msra.mxu0 %v498
          %1083 = vmatpush.msra.mxu0 %v494
          %1084 = vmatmul.f32.gmra.mxu0 %v1003
          %v1085 = vpop.f32.mrf.mxu0
          %v1086 = vadd.f32 0.0, %v1085
          %1087 = vdwg.mxu0
          %v1088 = vadd.f32 %v1004, %v1026
          %v1089 = vadd.f32 %v1005, %v1046
          %v1090 = vadd.f32 %v1006, %v1066
          %v1091 = vadd.f32 %v1007, %v1086
          %v1092 = vxor.u32 %v1088, 2147483648
          %v1093 = vmul.f32 %v1092, 1.442695
          %v1094 = vpow.pop %v1093
          %v1095 = vadd.f32 %v1094, 1.0
          %v1096 = vrcp.pop %v1095
          %v1097 = vmul.f32 %v1095, %v1096
          %v1098 = vsub.f32 1.0, %v1097
          %v1099 = vmul.f32 %v1096, %v1098
          %v1100 = vadd.f32 %v1096, %v1099
          %vm1101 = vweird.f32 %v1095
          %vm1102 = vweird.f32 %v1096
          %vm1103 = vmor %vm1101, %vm1102
          %v1104 = vsel %vm1103, %v1096, %v1100
          %v1105 = vand.u32 2147483647, %v1095
          %vm1106 = vcmp.eq.f32.partialorder %v1105, 8.507059e+37
          %v1107 = vand.u32 %v1095, 2147483648
          %v1108 = vor.u32 1.1754944e-38, %v1107
          %v1109 = vsel %vm1106, %v1108, %v1104
          %v1110 = vmul.f32 1.0, %v1109
          %v1111 = vxor.u32 %v1089, 2147483648
          %v1112 = vmul.f32 %v1111, 1.442695
          %v1113 = vpow.pop %v1112
          %v1114 = vadd.f32 %v1113, 1.0
          %v1115 = vrcp.pop %v1114
          %v1116 = vmul.f32 %v1114, %v1115
          %v1117 = vsub.f32 1.0, %v1116
          %v1118 = vmul.f32 %v1115, %v1117
          %v1119 = vadd.f32 %v1115, %v1118
          %vm1120 = vweird.f32 %v1114
          %vm1121 = vweird.f32 %v1115
          %vm1122 = vmor %vm1120, %vm1121
          %v1123 = vsel %vm1122, %v1115, %v1119
          %v1124 = vand.u32 2147483647, %v1114
          %vm1125 = vcmp.eq.f32.partialorder %v1124, 8.507059e+37
          %v1126 = vand.u32 %v1114, 2147483648
          %v1127 = vor.u32 1.1754944e-38, %v1126
          %v1128 = vsel %vm1125, %v1127, %v1123
          %v1129 = vmul.f32 1.0, %v1128
          %v1130 = vtanh.pop %v1090
          %v1131 = vxor.u32 %v1091, 2147483648
          %v1132 = vmul.f32 %v1131, 1.442695
          %v1133 = vpow.pop %v1132
          %v1134 = vadd.f32 %v1133, 1.0
          %v1135 = vrcp.pop %v1134
          %v1136 = vmul.f32 %v1134, %v1135
          %v1137 = vsub.f32 1.0, %v1136
          %v1138 = vmul.f32 %v1135, %v1137
          %v1139 = vadd.f32 %v1135, %v1138
          %vm1140 = vweird.f32 %v1134
          %vm1141 = vweird.f32 %v1135
          %vm1142 = vmor %vm1140, %vm1141
          %v1143 = vsel %vm1142, %v1135, %v1139
          %v1144 = vand.u32 2147483647, %v1134
          %vm1145 = vcmp.eq.f32.partialorder %v1144, 8.507059e+37
          %v1146 = vand.u32 %v1134, 2147483648
          %v1147 = vor.u32 1.1754944e-38, %v1146
          %v1148 = vsel %vm1145, %v1147, %v1143
          %v1149 = vmul.f32 1.0, %v1148
          %v1150 = vmul.f32 %v1129, %v1001
          %v1151 = vmul.f32 %v1110, %v1130
          %v1152 = vadd.f32 %v1150, %v1151
          %v1153 = vtanh.pop %v1152
          %v1154 = vmul.f32 %v1149, %v1153
          %1155 = vst [vmem:[#allocation2] sm:$0xff] %v1154
          %1156 = vst [vmem:[#allocation3] sm:$0xff] %v1152
          %v1157 = vld [vmem:[%s224] sm:$0xff]
          %v1158 = vld [vmem:[%s224 + $0x8] sm:$0xff]
          %v1159 = vld [vmem:[%s224 + $0x10] sm:$0xff]
          %v1160 = vld [vmem:[%s224 + $0x18] sm:$0xff]
          %v1161 = vld [vmem:[#allocation8] sm:$0xff]
          %v1162 = vld [vmem:[#allocation8 + $0x8] sm:$0xff]
          %v1163 = vld [vmem:[#allocation8 + $0x10] sm:$0xff]
          %v1164 = vld [vmem:[#allocation8 + $0x18] sm:$0xff]
          %v1165 = vld [vmem:[#allocation8 + $0x20] sm:$0xff]
          %v1166 = vld [vmem:[#allocation8 + $0x28] sm:$0xff]
          %v1167 = vld [vmem:[#allocation8 + $0x30] sm:$0xff]
          %v1168 = vld [vmem:[#allocation8 + $0x38] sm:$0xff]
          %v1169 = vld [vmem:[#allocation8 + $0x40] sm:$0xff]
          %v1170 = vld [vmem:[#allocation8 + $0x48] sm:$0xff]
          %v1171 = vld [vmem:[#allocation8 + $0x50] sm:$0xff]
          %v1172 = vld [vmem:[#allocation8 + $0x58] sm:$0xff]
          %v1173 = vld [vmem:[#allocation8 + $0x60] sm:$0xff]
          %v1174 = vld [vmem:[#allocation8 + $0x68] sm:$0xff]
          %v1175 = vld [vmem:[#allocation8 + $0x70] sm:$0xff]
          %v1176 = vld [vmem:[#allocation8 + $0x78] sm:$0xff]
          %v1177 = vld [vmem:[#allocation8 + $0x80] sm:$0xff]
          %v1178 = vld [vmem:[#allocation8 + $0x88] sm:$0xff]
          %v1179 = vld [vmem:[#allocation8 + $0x90] sm:$0xff]
          %v1180 = vld [vmem:[#allocation8 + $0x98] sm:$0xff]
          %v1181 = vld [vmem:[#allocation8 + $0xa0] sm:$0xff]
          %v1182 = vld [vmem:[#allocation8 + $0xa8] sm:$0xff]
          %v1183 = vld [vmem:[#allocation8 + $0xb0] sm:$0xff]
          %v1184 = vld [vmem:[#allocation8 + $0xb8] sm:$0xff]
          %v1185 = vld [vmem:[#allocation8 + $0xc0] sm:$0xff]
          %v1186 = vld [vmem:[#allocation8 + $0xc8] sm:$0xff]
          %v1187 = vld [vmem:[#allocation8 + $0xd0] sm:$0xff]
          %v1188 = vld [vmem:[#allocation8 + $0xd8] sm:$0xff]
          %v1189 = vld [vmem:[#allocation8 + $0xe0] sm:$0xff]
          %v1190 = vld [vmem:[#allocation8 + $0xe8] sm:$0xff]
          %v1191 = vld [vmem:[#allocation8 + $0xf0] sm:$0xff]
          %v1192 = vld [vmem:[#allocation8 + $0xf8] sm:$0xff]
          %v1193 = vld [vmem:[#allocation11] sm:$0xf]
          %v1195 = vperm.slane %v1193, 0
          %v1196 = vperm.slane %v1193, 1
          %v1197 = vperm.slane %v1193, 2
          %v1198 = vperm.slane %v1193, 3
          %vm1203 = vcmask 523264
          %v1205 = vsel %vm1203, %v1157, 0
          %v1208 = vsel %vm1203, %v1158, 0
          %v1211 = vsel %vm1203, %v1159, 0
          %v1214 = vsel %vm1203, %v1160, 0
          %1216 = vmatpush.msra.mxu0 0.0
          %1217 = vmatpush.msra.mxu0 0.0
          %1218 = vmatpush.msra.mxu0 0.0
          %1219 = vmatpush.msra.mxu0 0.0
          %1220 = vmatpush.msra.mxu0 0.0
          %1221 = vmatpush.msra.mxu0 0.0
          %1222 = vmatpush.msra.mxu0 0.0
          %1223 = vmatpush.msra.mxu0 0.0
          %1224 = vmatpush.msra.mxu0 %v1189
          %1225 = vmatpush.msra.mxu0 %v1185
          %1226 = vmatpush.msra.mxu0 %v1181
          %1227 = vmatpush.msra.mxu0 %v1177
          %1228 = vmatpush.msra.mxu0 %v1173
          %1229 = vmatpush.msra.mxu0 %v1169
          %1230 = vmatpush.msra.mxu0 %v1165
          %1231 = vmatpush.msra.mxu0 %v1161
          %1232 = vmatmul.f32.gmra.mxu0 %v1205
          %v1233 = vpop.f32.mrf.mxu0
          %v1234 = vadd.f32 %v1195, %v1233
          %1235 = vmatmul.f32.gmra.mxu0 %v1208
          %v1236 = vpop.f32.mrf.mxu0
          %v1237 = vadd.f32 %v1195, %v1236
          %1238 = vmatmul.f32.gmra.mxu0 %v1211
          %v1239 = vpop.f32.mrf.mxu0
          %v1240 = vadd.f32 %v1195, %v1239
          %1241 = vmatmul.f32.gmra.mxu0 %v1214
          %v1242 = vpop.f32.mrf.mxu0
          %v1243 = vadd.f32 %v1195, %v1242
          %1244 = vdwg.mxu0
          %1245 = vmatpush.msra.mxu0 0.0
          %1246 = vmatpush.msra.mxu0 0.0
          %1247 = vmatpush.msra.mxu0 0.0
          %1248 = vmatpush.msra.mxu0 0.0
          %1249 = vmatpush.msra.mxu0 0.0
          %1250 = vmatpush.msra.mxu0 0.0
          %1251 = vmatpush.msra.mxu0 0.0
          %1252 = vmatpush.msra.mxu0 0.0
          %1253 = vmatpush.msra.mxu0 %v1190
          %1254 = vmatpush.msra.mxu0 %v1186
          %1255 = vmatpush.msra.mxu0 %v1182
          %1256 = vmatpush.msra.mxu0 %v1178
          %1257 = vmatpush.msra.mxu0 %v1174
          %1258 = vmatpush.msra.mxu0 %v1170
          %1259 = vmatpush.msra.mxu0 %v1166
          %1260 = vmatpush.msra.mxu0 %v1162
          %1261 = vmatmul.f32.gmra.mxu0 %v1205
          %v1262 = vpop.f32.mrf.mxu0
          %v1263 = vadd.f32 %v1196, %v1262
          %1264 = vmatmul.f32.gmra.mxu0 %v1208
          %v1265 = vpop.f32.mrf.mxu0
          %v1266 = vadd.f32 %v1196, %v1265
          %1267 = vmatmul.f32.gmra.mxu0 %v1211
          %v1268 = vpop.f32.mrf.mxu0
          %v1269 = vadd.f32 %v1196, %v1268
          %1270 = vmatmul.f32.gmra.mxu0 %v1214
          %v1271 = vpop.f32.mrf.mxu0
          %v1272 = vadd.f32 %v1196, %v1271
          %1273 = vdwg.mxu0
          %1274 = vmatpush.msra.mxu0 0.0
          %1275 = vmatpush.msra.mxu0 0.0
          %1276 = vmatpush.msra.mxu0 0.0
          %1277 = vmatpush.msra.mxu0 0.0
          %1278 = vmatpush.msra.mxu0 0.0
          %1279 = vmatpush.msra.mxu0 0.0
          %1280 = vmatpush.msra.mxu0 0.0
          %1281 = vmatpush.msra.mxu0 0.0
          %1282 = vmatpush.msra.mxu0 %v1191
          %1283 = vmatpush.msra.mxu0 %v1187
          %1284 = vmatpush.msra.mxu0 %v1183
          %1285 = vmatpush.msra.mxu0 %v1179
          %1286 = vmatpush.msra.mxu0 %v1175
          %1287 = vmatpush.msra.mxu0 %v1171
          %1288 = vmatpush.msra.mxu0 %v1167
          %1289 = vmatpush.msra.mxu0 %v1163
          %1290 = vmatmul.f32.gmra.mxu0 %v1205
          %v1291 = vpop.f32.mrf.mxu0
          %v1292 = vadd.f32 %v1197, %v1291
          %1293 = vmatmul.f32.gmra.mxu0 %v1208
          %v1294 = vpop.f32.mrf.mxu0
          %v1295 = vadd.f32 %v1197, %v1294
          %1296 = vmatmul.f32.gmra.mxu0 %v1211
          %v1297 = vpop.f32.mrf.mxu0
          %v1298 = vadd.f32 %v1197, %v1297
          %1299 = vmatmul.f32.gmra.mxu0 %v1214
          %v1300 = vpop.f32.mrf.mxu0
          %v1301 = vadd.f32 %v1197, %v1300
          %1302 = vdwg.mxu0
          %1303 = vmatpush.msra.mxu0 0.0
          %1304 = vmatpush.msra.mxu0 0.0
          %1305 = vmatpush.msra.mxu0 0.0
          %1306 = vmatpush.msra.mxu0 0.0
          %1307 = vmatpush.msra.mxu0 0.0
          %1308 = vmatpush.msra.mxu0 0.0
          %1309 = vmatpush.msra.mxu0 0.0
          %1310 = vmatpush.msra.mxu0 0.0
          %1311 = vmatpush.msra.mxu0 %v1192
          %1312 = vmatpush.msra.mxu0 %v1188
          %1313 = vmatpush.msra.mxu0 %v1184
          %1314 = vmatpush.msra.mxu0 %v1180
          %1315 = vmatpush.msra.mxu0 %v1176
          %1316 = vmatpush.msra.mxu0 %v1172
          %1317 = vmatpush.msra.mxu0 %v1168
          %1318 = vmatpush.msra.mxu0 %v1164
          %1319 = vmatmul.f32.gmra.mxu0 %v1205
          %v1320 = vpop.f32.mrf.mxu0
          %v1321 = vadd.f32 %v1198, %v1320
          %1322 = vmatmul.f32.gmra.mxu0 %v1208
          %v1323 = vpop.f32.mrf.mxu0
          %v1324 = vadd.f32 %v1198, %v1323
          %1325 = vmatmul.f32.gmra.mxu0 %v1211
          %v1326 = vpop.f32.mrf.mxu0
          %v1327 = vadd.f32 %v1198, %v1326
          %1328 = vmatmul.f32.gmra.mxu0 %v1214
          %v1329 = vpop.f32.mrf.mxu0
          %v1330 = vadd.f32 %v1198, %v1329
          %1331 = vdwg.mxu0
          %s1332 = smul.u32 %s274, 16
          %s1333 = smul.addr %s1332, 8
          %s1334 = scalar_lea.vmem [#allocation4], %s1333
          %1335 = vst [vmem:[%s1334] sm:$0xff] %v1234
          %1336 = vst [vmem:[%s1334 + $0x8] sm:$0xff] %v1263
          %1337 = vst [vmem:[%s1334 + $0x10] sm:$0xff] %v1292
          %1338 = vst [vmem:[%s1334 + $0x18] sm:$0xff] %v1321
          %1339 = vst [vmem:[%s1334 + $0x20] sm:$0xff] %v1237
          %1340 = vst [vmem:[%s1334 + $0x28] sm:$0xff] %v1266
          %1341 = vst [vmem:[%s1334 + $0x30] sm:$0xff] %v1295
          %1342 = vst [vmem:[%s1334 + $0x38] sm:$0xff] %v1324
          %1343 = vst [vmem:[%s1334 + $0x40] sm:$0xff] %v1240
          %1344 = vst [vmem:[%s1334 + $0x48] sm:$0xff] %v1269
          %1345 = vst [vmem:[%s1334 + $0x50] sm:$0xff] %v1298
          %1346 = vst [vmem:[%s1334 + $0x58] sm:$0xff] %v1327
          %1347 = vst [vmem:[%s1334 + $0x60] sm:$0xff] %v1243
          %1348 = vst [vmem:[%s1334 + $0x68] sm:$0xff] %v1272
          %1349 = vst [vmem:[%s1334 + $0x70] sm:$0xff] %v1301
          %1350 = vst [vmem:[%s1334 + $0x78] sm:$0xff] %v1330
        $region60: #{tpu_custom_call.1} parent=35 // pred_fallthru
          _
        %p1351 = scmp.eq.s32.totalorder %s21, 2
        // Predicated region
        $region61: #{tpu_custom_call.1} parent=35 // pred_check
          %p1352 = pneg %p1351
        $region62: #{tpu_custom_call.1} parent=35 // pred_check_branch
          %1354 = sbr.rel (%p1352) target = $region64
        $region63: #{tpu_custom_call.1} parent=35 // pred_region
          %v1355 = vld [vmem:[#allocation2] sm:$0xff]
          %v1356 = vld [vmem:[#allocation3] sm:$0xff]
          %s1357 = smul.u32 %s275, 16
          %s1358 = smul.addr %s1357, 8
          %s1359 = scalar_lea.vmem [#allocation4], %s1358
          %v1360 = vld [vmem:[%s1359] sm:$0xff]
          %v1361 = vld [vmem:[%s1359 + $0x8] sm:$0xff]
          %v1362 = vld [vmem:[%s1359 + $0x10] sm:$0xff]
          %v1363 = vld [vmem:[%s1359 + $0x18] sm:$0xff]
          %v1364 = vld [vmem:[#allocation10] sm:$0xff]
          %v1365 = vld [vmem:[#allocation10 + $0x8] sm:$0xff]
          %v1366 = vld [vmem:[#allocation10 + $0x10] sm:$0xff]
          %v1367 = vld [vmem:[#allocation10 + $0x18] sm:$0xff]
          %v1368 = vld [vmem:[#allocation10 + $0x20] sm:$0xff]
          %v1369 = vld [vmem:[#allocation10 + $0x28] sm:$0xff]
          %v1370 = vld [vmem:[#allocation10 + $0x30] sm:$0xff]
          %v1371 = vld [vmem:[#allocation10 + $0x38] sm:$0xff]
          %v1372 = vld [vmem:[#allocation10 + $0x40] sm:$0xff]
          %v1373 = vld [vmem:[#allocation10 + $0x48] sm:$0xff]
          %v1374 = vld [vmem:[#allocation10 + $0x50] sm:$0xff]
          %v1375 = vld [vmem:[#allocation10 + $0x58] sm:$0xff]
          %v1376 = vld [vmem:[#allocation10 + $0x60] sm:$0xff]
          %v1377 = vld [vmem:[#allocation10 + $0x68] sm:$0xff]
          %v1378 = vld [vmem:[#allocation10 + $0x70] sm:$0xff]
          %v1379 = vld [vmem:[#allocation10 + $0x78] sm:$0xff]
          %v1380 = vld [vmem:[#allocation10 + $0x80] sm:$0xff]
          %v1381 = vld [vmem:[#allocation10 + $0x88] sm:$0xff]
          %v1382 = vld [vmem:[#allocation10 + $0x90] sm:$0xff]
          %v1383 = vld [vmem:[#allocation10 + $0x98] sm:$0xff]
          %v1384 = vld [vmem:[#allocation10 + $0xa0] sm:$0xff]
          %v1385 = vld [vmem:[#allocation10 + $0xa8] sm:$0xff]
          %v1386 = vld [vmem:[#allocation10 + $0xb0] sm:$0xff]
          %v1387 = vld [vmem:[#allocation10 + $0xb8] sm:$0xff]
          %v1388 = vld [vmem:[#allocation10 + $0xc0] sm:$0xff]
          %v1389 = vld [vmem:[#allocation10 + $0xc8] sm:$0xff]
          %v1390 = vld [vmem:[#allocation10 + $0xd0] sm:$0xff]
          %v1391 = vld [vmem:[#allocation10 + $0xd8] sm:$0xff]
          %v1392 = vld [vmem:[#allocation10 + $0xe0] sm:$0xff]
          %v1393 = vld [vmem:[#allocation10 + $0xe8] sm:$0xff]
          %v1394 = vld [vmem:[#allocation10 + $0xf0] sm:$0xff]
          %v1395 = vld [vmem:[#allocation10 + $0xf8] sm:$0xff]
          %v1396 = vld [vmem:[#allocation10 + $0x100] sm:$0xff]
          %v1397 = vld [vmem:[#allocation10 + $0x108] sm:$0xff]
          %v1398 = vld [vmem:[#allocation10 + $0x110] sm:$0xff]
          %v1399 = vld [vmem:[#allocation10 + $0x118] sm:$0xff]
          %v1400 = vld [vmem:[#allocation10 + $0x120] sm:$0xff]
          %v1401 = vld [vmem:[#allocation10 + $0x128] sm:$0xff]
          %v1402 = vld [vmem:[#allocation10 + $0x130] sm:$0xff]
          %v1403 = vld [vmem:[#allocation10 + $0x138] sm:$0xff]
          %v1404 = vld [vmem:[#allocation10 + $0x140] sm:$0xff]
          %v1405 = vld [vmem:[#allocation10 + $0x148] sm:$0xff]
          %v1406 = vld [vmem:[#allocation10 + $0x150] sm:$0xff]
          %v1407 = vld [vmem:[#allocation10 + $0x158] sm:$0xff]
          %v1408 = vld [vmem:[#allocation10 + $0x160] sm:$0xff]
          %v1409 = vld [vmem:[#allocation10 + $0x168] sm:$0xff]
          %v1410 = vld [vmem:[#allocation10 + $0x170] sm:$0xff]
          %v1411 = vld [vmem:[#allocation10 + $0x178] sm:$0xff]
          %v1412 = vld [vmem:[#allocation10 + $0x180] sm:$0xff]
          %v1413 = vld [vmem:[#allocation10 + $0x188] sm:$0xff]
          %v1414 = vld [vmem:[#allocation10 + $0x190] sm:$0xff]
          %v1415 = vld [vmem:[#allocation10 + $0x198] sm:$0xff]
          %v1416 = vld [vmem:[#allocation10 + $0x1a0] sm:$0xff]
          %v1417 = vld [vmem:[#allocation10 + $0x1a8] sm:$0xff]
          %v1418 = vld [vmem:[#allocation10 + $0x1b0] sm:$0xff]
          %v1419 = vld [vmem:[#allocation10 + $0x1b8] sm:$0xff]
          %v1420 = vld [vmem:[#allocation10 + $0x1c0] sm:$0xff]
          %v1421 = vld [vmem:[#allocation10 + $0x1c8] sm:$0xff]
          %v1422 = vld [vmem:[#allocation10 + $0x1d0] sm:$0xff]
          %v1423 = vld [vmem:[#allocation10 + $0x1d8] sm:$0xff]
          %v1424 = vld [vmem:[#allocation10 + $0x1e0] sm:$0xff]
          %v1425 = vld [vmem:[#allocation10 + $0x1e8] sm:$0xff]
          %v1426 = vld [vmem:[#allocation10 + $0x1f0] sm:$0xff]
          %v1427 = vld [vmem:[#allocation10 + $0x1f8] sm:$0xff]
          %1428 = vmatpush.msra.mxu0 %v1424
          %1429 = vmatpush.msra.mxu0 %v1420
          %1430 = vmatpush.msra.mxu0 %v1416
          %1431 = vmatpush.msra.mxu0 %v1412
          %1432 = vmatpush.msra.mxu0 %v1408
          %1433 = vmatpush.msra.mxu0 %v1404
          %1434 = vmatpush.msra.mxu0 %v1400
          %1435 = vmatpush.msra.mxu0 %v1396
          %1436 = vmatpush.msra.mxu0 %v1392
          %1437 = vmatpush.msra.mxu0 %v1388
          %1438 = vmatpush.msra.mxu0 %v1384
          %1439 = vmatpush.msra.mxu0 %v1380
          %1440 = vmatpush.msra.mxu0 %v1376
          %1441 = vmatpush.msra.mxu0 %v1372
          %1442 = vmatpush.msra.mxu0 %v1368
          %1443 = vmatpush.msra.mxu0 %v1364
          %1444 = vmatmul.f32.gmra.mxu0 %v1355
          %v1445 = vpop.f32.mrf.mxu0
          %v1446 = vadd.f32 0.0, %v1445
          %1447 = vdwg.mxu0
          %1448 = vmatpush.msra.mxu0 %v1425
          %1449 = vmatpush.msra.mxu0 %v1421
          %1450 = vmatpush.msra.mxu0 %v1417
          %1451 = vmatpush.msra.mxu0 %v1413
          %1452 = vmatpush.msra.mxu0 %v1409
          %1453 = vmatpush.msra.mxu0 %v1405
          %1454 = vmatpush.msra.mxu0 %v1401
          %1455 = vmatpush.msra.mxu0 %v1397
          %1456 = vmatpush.msra.mxu0 %v1393
          %1457 = vmatpush.msra.mxu0 %v1389
          %1458 = vmatpush.msra.mxu0 %v1385
          %1459 = vmatpush.msra.mxu0 %v1381
          %1460 = vmatpush.msra.mxu0 %v1377
          %1461 = vmatpush.msra.mxu0 %v1373
          %1462 = vmatpush.msra.mxu0 %v1369
          %1463 = vmatpush.msra.mxu0 %v1365
          %1464 = vmatmul.f32.gmra.mxu0 %v1355
          %v1465 = vpop.f32.mrf.mxu0
          %v1466 = vadd.f32 0.0, %v1465
          %1467 = vdwg.mxu0
          %1468 = vmatpush.msra.mxu0 %v1426
          %1469 = vmatpush.msra.mxu0 %v1422
          %1470 = vmatpush.msra.mxu0 %v1418
          %1471 = vmatpush.msra.mxu0 %v1414
          %1472 = vmatpush.msra.mxu0 %v1410
          %1473 = vmatpush.msra.mxu0 %v1406
          %1474 = vmatpush.msra.mxu0 %v1402
          %1475 = vmatpush.msra.mxu0 %v1398
          %1476 = vmatpush.msra.mxu0 %v1394
          %1477 = vmatpush.msra.mxu0 %v1390
          %1478 = vmatpush.msra.mxu0 %v1386
          %1479 = vmatpush.msra.mxu0 %v1382
          %1480 = vmatpush.msra.mxu0 %v1378
          %1481 = vmatpush.msra.mxu0 %v1374
          %1482 = vmatpush.msra.mxu0 %v1370
          %1483 = vmatpush.msra.mxu0 %v1366
          %1484 = vmatmul.f32.gmra.mxu0 %v1355
          %v1485 = vpop.f32.mrf.mxu0
          %v1486 = vadd.f32 0.0, %v1485
          %1487 = vdwg.mxu0
          %1488 = vmatpush.msra.mxu0 %v1427
          %1489 = vmatpush.msra.mxu0 %v1423
          %1490 = vmatpush.msra.mxu0 %v1419
          %1491 = vmatpush.msra.mxu0 %v1415
          %1492 = vmatpush.msra.mxu0 %v1411
          %1493 = vmatpush.msra.mxu0 %v1407
          %1494 = vmatpush.msra.mxu0 %v1403
          %1495 = vmatpush.msra.mxu0 %v1399
          %1496 = vmatpush.msra.mxu0 %v1395
          %1497 = vmatpush.msra.mxu0 %v1391
          %1498 = vmatpush.msra.mxu0 %v1387
          %1499 = vmatpush.msra.mxu0 %v1383
          %1500 = vmatpush.msra.mxu0 %v1379
          %1501 = vmatpush.msra.mxu0 %v1375
          %1502 = vmatpush.msra.mxu0 %v1371
          %1503 = vmatpush.msra.mxu0 %v1367
          %1504 = vmatmul.f32.gmra.mxu0 %v1355
          %v1505 = vpop.f32.mrf.mxu0
          %v1506 = vadd.f32 0.0, %v1505
          %1507 = vdwg.mxu0
          %v1508 = vadd.f32 %v1360, %v1446
          %v1509 = vadd.f32 %v1361, %v1466
          %v1510 = vadd.f32 %v1362, %v1486
          %v1511 = vadd.f32 %v1363, %v1506
          %v1512 = vxor.u32 %v1508, 2147483648
          %v1513 = vmul.f32 %v1512, 1.442695
          %v1514 = vpow.pop %v1513
          %v1515 = vadd.f32 %v1514, 1.0
          %v1516 = vrcp.pop %v1515
          %v1517 = vmul.f32 %v1515, %v1516
          %v1518 = vsub.f32 1.0, %v1517
          %v1519 = vmul.f32 %v1516, %v1518
          %v1520 = vadd.f32 %v1516, %v1519
          %vm1521 = vweird.f32 %v1515
          %vm1522 = vweird.f32 %v1516
          %vm1523 = vmor %vm1521, %vm1522
          %v1524 = vsel %vm1523, %v1516, %v1520
          %v1525 = vand.u32 2147483647, %v1515
          %vm1526 = vcmp.eq.f32.partialorder %v1525, 8.507059e+37
          %v1527 = vand.u32 %v1515, 2147483648
          %v1528 = vor.u32 1.1754944e-38, %v1527
          %v1529 = vsel %vm1526, %v1528, %v1524
          %v1530 = vmul.f32 1.0, %v1529
          %v1531 = vxor.u32 %v1509, 2147483648
          %v1532 = vmul.f32 %v1531, 1.442695
          %v1533 = vpow.pop %v1532
          %v1534 = vadd.f32 %v1533, 1.0
          %v1535 = vrcp.pop %v1534
          %v1536 = vmul.f32 %v1534, %v1535
          %v1537 = vsub.f32 1.0, %v1536
          %v1538 = vmul.f32 %v1535, %v1537
          %v1539 = vadd.f32 %v1535, %v1538
          %vm1540 = vweird.f32 %v1534
          %vm1541 = vweird.f32 %v1535
          %vm1542 = vmor %vm1540, %vm1541
          %v1543 = vsel %vm1542, %v1535, %v1539
          %v1544 = vand.u32 2147483647, %v1534
          %vm1545 = vcmp.eq.f32.partialorder %v1544, 8.507059e+37
          %v1546 = vand.u32 %v1534, 2147483648
          %v1547 = vor.u32 1.1754944e-38, %v1546
          %v1548 = vsel %vm1545, %v1547, %v1543
          %v1549 = vmul.f32 1.0, %v1548
          %v1550 = vtanh.pop %v1510
          %v1551 = vxor.u32 %v1511, 2147483648
          %v1552 = vmul.f32 %v1551, 1.442695
          %v1553 = vpow.pop %v1552
          %v1554 = vadd.f32 %v1553, 1.0
          %v1555 = vrcp.pop %v1554
          %v1556 = vmul.f32 %v1554, %v1555
          %v1557 = vsub.f32 1.0, %v1556
          %v1558 = vmul.f32 %v1555, %v1557
          %v1559 = vadd.f32 %v1555, %v1558
          %vm1560 = vweird.f32 %v1554
          %vm1561 = vweird.f32 %v1555
          %vm1562 = vmor %vm1560, %vm1561
          %v1563 = vsel %vm1562, %v1555, %v1559
          %v1564 = vand.u32 2147483647, %v1554
          %vm1565 = vcmp.eq.f32.partialorder %v1564, 8.507059e+37
          %v1566 = vand.u32 %v1554, 2147483648
          %v1567 = vor.u32 1.1754944e-38, %v1566
          %v1568 = vsel %vm1565, %v1567, %v1563
          %v1569 = vmul.f32 1.0, %v1568
          %v1570 = vmul.f32 %v1549, %v1356
          %v1571 = vmul.f32 %v1530, %v1550
          %v1572 = vadd.f32 %v1570, %v1571
          %v1573 = vtanh.pop %v1572
          %v1574 = vmul.f32 %v1569, %v1573
          %v1575 = vld [vmem:[%s1359 + $0x20] sm:$0xff]
          %v1576 = vld [vmem:[%s1359 + $0x28] sm:$0xff]
          %v1577 = vld [vmem:[%s1359 + $0x30] sm:$0xff]
          %v1578 = vld [vmem:[%s1359 + $0x38] sm:$0xff]
          %1579 = vmatpush.msra.mxu0 %v1424
          %1580 = vmatpush.msra.mxu0 %v1420
          %1581 = vmatpush.msra.mxu0 %v1416
          %1582 = vmatpush.msra.mxu0 %v1412
          %1583 = vmatpush.msra.mxu0 %v1408
          %1584 = vmatpush.msra.mxu0 %v1404
          %1585 = vmatpush.msra.mxu0 %v1400
          %1586 = vmatpush.msra.mxu0 %v1396
          %1587 = vmatpush.msra.mxu0 %v1392
          %1588 = vmatpush.msra.mxu0 %v1388
          %1589 = vmatpush.msra.mxu0 %v1384
          %1590 = vmatpush.msra.mxu0 %v1380
          %1591 = vmatpush.msra.mxu0 %v1376
          %1592 = vmatpush.msra.mxu0 %v1372
          %1593 = vmatpush.msra.mxu0 %v1368
          %1594 = vmatpush.msra.mxu0 %v1364
          %1595 = vmatmul.f32.gmra.mxu0 %v1574
          %v1596 = vpop.f32.mrf.mxu0
          %v1597 = vadd.f32 0.0, %v1596
          %1598 = vdwg.mxu0
          %1599 = vmatpush.msra.mxu0 %v1425
          %1600 = vmatpush.msra.mxu0 %v1421
          %1601 = vmatpush.msra.mxu0 %v1417
          %1602 = vmatpush.msra.mxu0 %v1413
          %1603 = vmatpush.msra.mxu0 %v1409
          %1604 = vmatpush.msra.mxu0 %v1405
          %1605 = vmatpush.msra.mxu0 %v1401
          %1606 = vmatpush.msra.mxu0 %v1397
          %1607 = vmatpush.msra.mxu0 %v1393
          %1608 = vmatpush.msra.mxu0 %v1389
          %1609 = vmatpush.msra.mxu0 %v1385
          %1610 = vmatpush.msra.mxu0 %v1381
          %1611 = vmatpush.msra.mxu0 %v1377
          %1612 = vmatpush.msra.mxu0 %v1373
          %1613 = vmatpush.msra.mxu0 %v1369
          %1614 = vmatpush.msra.mxu0 %v1365
          %1615 = vmatmul.f32.gmra.mxu0 %v1574
          %v1616 = vpop.f32.mrf.mxu0
          %v1617 = vadd.f32 0.0, %v1616
          %1618 = vdwg.mxu0
          %1619 = vmatpush.msra.mxu0 %v1426
          %1620 = vmatpush.msra.mxu0 %v1422
          %1621 = vmatpush.msra.mxu0 %v1418
          %1622 = vmatpush.msra.mxu0 %v1414
          %1623 = vmatpush.msra.mxu0 %v1410
          %1624 = vmatpush.msra.mxu0 %v1406
          %1625 = vmatpush.msra.mxu0 %v1402
          %1626 = vmatpush.msra.mxu0 %v1398
          %1627 = vmatpush.msra.mxu0 %v1394
          %1628 = vmatpush.msra.mxu0 %v1390
          %1629 = vmatpush.msra.mxu0 %v1386
          %1630 = vmatpush.msra.mxu0 %v1382
          %1631 = vmatpush.msra.mxu0 %v1378
          %1632 = vmatpush.msra.mxu0 %v1374
          %1633 = vmatpush.msra.mxu0 %v1370
          %1634 = vmatpush.msra.mxu0 %v1366
          %1635 = vmatmul.f32.gmra.mxu0 %v1574
          %v1636 = vpop.f32.mrf.mxu0
          %v1637 = vadd.f32 0.0, %v1636
          %1638 = vdwg.mxu0
          %1639 = vmatpush.msra.mxu0 %v1427
          %1640 = vmatpush.msra.mxu0 %v1423
          %1641 = vmatpush.msra.mxu0 %v1419
          %1642 = vmatpush.msra.mxu0 %v1415
          %1643 = vmatpush.msra.mxu0 %v1411
          %1644 = vmatpush.msra.mxu0 %v1407
          %1645 = vmatpush.msra.mxu0 %v1403
          %1646 = vmatpush.msra.mxu0 %v1399
          %1647 = vmatpush.msra.mxu0 %v1395
          %1648 = vmatpush.msra.mxu0 %v1391
          %1649 = vmatpush.msra.mxu0 %v1387
          %1650 = vmatpush.msra.mxu0 %v1383
          %1651 = vmatpush.msra.mxu0 %v1379
          %1652 = vmatpush.msra.mxu0 %v1375
          %1653 = vmatpush.msra.mxu0 %v1371
          %1654 = vmatpush.msra.mxu0 %v1367
          %1655 = vmatmul.f32.gmra.mxu0 %v1574
          %v1656 = vpop.f32.mrf.mxu0
          %v1657 = vadd.f32 0.0, %v1656
          %1658 = vdwg.mxu0
          %v1659 = vadd.f32 %v1575, %v1597
          %v1660 = vadd.f32 %v1576, %v1617
          %v1661 = vadd.f32 %v1577, %v1637
          %v1662 = vadd.f32 %v1578, %v1657
          %v1663 = vxor.u32 %v1659, 2147483648
          %v1664 = vmul.f32 %v1663, 1.442695
          %v1665 = vpow.pop %v1664
          %v1666 = vadd.f32 %v1665, 1.0
          %v1667 = vrcp.pop %v1666
          %v1668 = vmul.f32 %v1666, %v1667
          %v1669 = vsub.f32 1.0, %v1668
          %v1670 = vmul.f32 %v1667, %v1669
          %v1671 = vadd.f32 %v1667, %v1670
          %vm1672 = vweird.f32 %v1666
          %vm1673 = vweird.f32 %v1667
          %vm1674 = vmor %vm1672, %vm1673
          %v1675 = vsel %vm1674, %v1667, %v1671
          %v1676 = vand.u32 2147483647, %v1666
          %vm1677 = vcmp.eq.f32.partialorder %v1676, 8.507059e+37
          %v1678 = vand.u32 %v1666, 2147483648
          %v1679 = vor.u32 1.1754944e-38, %v1678
          %v1680 = vsel %vm1677, %v1679, %v1675
          %v1681 = vmul.f32 1.0, %v1680
          %v1682 = vxor.u32 %v1660, 2147483648
          %v1683 = vmul.f32 %v1682, 1.442695
          %v1684 = vpow.pop %v1683
          %v1685 = vadd.f32 %v1684, 1.0
          %v1686 = vrcp.pop %v1685
          %v1687 = vmul.f32 %v1685, %v1686
          %v1688 = vsub.f32 1.0, %v1687
          %v1689 = vmul.f32 %v1686, %v1688
          %v1690 = vadd.f32 %v1686, %v1689
          %vm1691 = vweird.f32 %v1685
          %vm1692 = vweird.f32 %v1686
          %vm1693 = vmor %vm1691, %vm1692
          %v1694 = vsel %vm1693, %v1686, %v1690
          %v1695 = vand.u32 2147483647, %v1685
          %vm1696 = vcmp.eq.f32.partialorder %v1695, 8.507059e+37
          %v1697 = vand.u32 %v1685, 2147483648
          %v1698 = vor.u32 1.1754944e-38, %v1697
          %v1699 = vsel %vm1696, %v1698, %v1694
          %v1700 = vmul.f32 1.0, %v1699
          %v1701 = vtanh.pop %v1661
          %v1702 = vxor.u32 %v1662, 2147483648
          %v1703 = vmul.f32 %v1702, 1.442695
          %v1704 = vpow.pop %v1703
          %v1705 = vadd.f32 %v1704, 1.0
          %v1706 = vrcp.pop %v1705
          %v1707 = vmul.f32 %v1705, %v1706
          %v1708 = vsub.f32 1.0, %v1707
          %v1709 = vmul.f32 %v1706, %v1708
          %v1710 = vadd.f32 %v1706, %v1709
          %vm1711 = vweird.f32 %v1705
          %vm1712 = vweird.f32 %v1706
          %vm1713 = vmor %vm1711, %vm1712
          %v1714 = vsel %vm1713, %v1706, %v1710
          %v1715 = vand.u32 2147483647, %v1705
          %vm1716 = vcmp.eq.f32.partialorder %v1715, 8.507059e+37
          %v1717 = vand.u32 %v1705, 2147483648
          %v1718 = vor.u32 1.1754944e-38, %v1717
          %v1719 = vsel %vm1716, %v1718, %v1714
          %v1720 = vmul.f32 1.0, %v1719
          %v1721 = vmul.f32 %v1700, %v1572
          %v1722 = vmul.f32 %v1681, %v1701
          %v1723 = vadd.f32 %v1721, %v1722
          %v1724 = vtanh.pop %v1723
          %v1725 = vmul.f32 %v1720, %v1724
          %v1726 = vld [vmem:[%s1359 + $0x40] sm:$0xff]
          %v1727 = vld [vmem:[%s1359 + $0x48] sm:$0xff]
          %v1728 = vld [vmem:[%s1359 + $0x50] sm:$0xff]
          %v1729 = vld [vmem:[%s1359 + $0x58] sm:$0xff]
          %1730 = vmatpush.msra.mxu0 %v1424
          %1731 = vmatpush.msra.mxu0 %v1420
          %1732 = vmatpush.msra.mxu0 %v1416
          %1733 = vmatpush.msra.mxu0 %v1412
          %1734 = vmatpush.msra.mxu0 %v1408
          %1735 = vmatpush.msra.mxu0 %v1404
          %1736 = vmatpush.msra.mxu0 %v1400
          %1737 = vmatpush.msra.mxu0 %v1396
          %1738 = vmatpush.msra.mxu0 %v1392
          %1739 = vmatpush.msra.mxu0 %v1388
          %1740 = vmatpush.msra.mxu0 %v1384
          %1741 = vmatpush.msra.mxu0 %v1380
          %1742 = vmatpush.msra.mxu0 %v1376
          %1743 = vmatpush.msra.mxu0 %v1372
          %1744 = vmatpush.msra.mxu0 %v1368
          %1745 = vmatpush.msra.mxu0 %v1364
          %1746 = vmatmul.f32.gmra.mxu0 %v1725
          %v1747 = vpop.f32.mrf.mxu0
          %v1748 = vadd.f32 0.0, %v1747
          %1749 = vdwg.mxu0
          %1750 = vmatpush.msra.mxu0 %v1425
          %1751 = vmatpush.msra.mxu0 %v1421
          %1752 = vmatpush.msra.mxu0 %v1417
          %1753 = vmatpush.msra.mxu0 %v1413
          %1754 = vmatpush.msra.mxu0 %v1409
          %1755 = vmatpush.msra.mxu0 %v1405
          %1756 = vmatpush.msra.mxu0 %v1401
          %1757 = vmatpush.msra.mxu0 %v1397
          %1758 = vmatpush.msra.mxu0 %v1393
          %1759 = vmatpush.msra.mxu0 %v1389
          %1760 = vmatpush.msra.mxu0 %v1385
          %1761 = vmatpush.msra.mxu0 %v1381
          %1762 = vmatpush.msra.mxu0 %v1377
          %1763 = vmatpush.msra.mxu0 %v1373
          %1764 = vmatpush.msra.mxu0 %v1369
          %1765 = vmatpush.msra.mxu0 %v1365
          %1766 = vmatmul.f32.gmra.mxu0 %v1725
          %v1767 = vpop.f32.mrf.mxu0
          %v1768 = vadd.f32 0.0, %v1767
          %1769 = vdwg.mxu0
          %1770 = vmatpush.msra.mxu0 %v1426
          %1771 = vmatpush.msra.mxu0 %v1422
          %1772 = vmatpush.msra.mxu0 %v1418
          %1773 = vmatpush.msra.mxu0 %v1414
          %1774 = vmatpush.msra.mxu0 %v1410
          %1775 = vmatpush.msra.mxu0 %v1406
          %1776 = vmatpush.msra.mxu0 %v1402
          %1777 = vmatpush.msra.mxu0 %v1398
          %1778 = vmatpush.msra.mxu0 %v1394
          %1779 = vmatpush.msra.mxu0 %v1390
          %1780 = vmatpush.msra.mxu0 %v1386
          %1781 = vmatpush.msra.mxu0 %v1382
          %1782 = vmatpush.msra.mxu0 %v1378
          %1783 = vmatpush.msra.mxu0 %v1374
          %1784 = vmatpush.msra.mxu0 %v1370
          %1785 = vmatpush.msra.mxu0 %v1366
          %1786 = vmatmul.f32.gmra.mxu0 %v1725
          %v1787 = vpop.f32.mrf.mxu0
          %v1788 = vadd.f32 0.0, %v1787
          %1789 = vdwg.mxu0
          %1790 = vmatpush.msra.mxu0 %v1427
          %1791 = vmatpush.msra.mxu0 %v1423
          %1792 = vmatpush.msra.mxu0 %v1419
          %1793 = vmatpush.msra.mxu0 %v1415
          %1794 = vmatpush.msra.mxu0 %v1411
          %1795 = vmatpush.msra.mxu0 %v1407
          %1796 = vmatpush.msra.mxu0 %v1403
          %1797 = vmatpush.msra.mxu0 %v1399
          %1798 = vmatpush.msra.mxu0 %v1395
          %1799 = vmatpush.msra.mxu0 %v1391
          %1800 = vmatpush.msra.mxu0 %v1387
          %1801 = vmatpush.msra.mxu0 %v1383
          %1802 = vmatpush.msra.mxu0 %v1379
          %1803 = vmatpush.msra.mxu0 %v1375
          %1804 = vmatpush.msra.mxu0 %v1371
          %1805 = vmatpush.msra.mxu0 %v1367
          %1806 = vmatmul.f32.gmra.mxu0 %v1725
          %v1807 = vpop.f32.mrf.mxu0
          %v1808 = vadd.f32 0.0, %v1807
          %1809 = vdwg.mxu0
          %v1810 = vadd.f32 %v1726, %v1748
          %v1811 = vadd.f32 %v1727, %v1768
          %v1812 = vadd.f32 %v1728, %v1788
          %v1813 = vadd.f32 %v1729, %v1808
          %v1814 = vxor.u32 %v1810, 2147483648
          %v1815 = vmul.f32 %v1814, 1.442695
          %v1816 = vpow.pop %v1815
          %v1817 = vadd.f32 %v1816, 1.0
          %v1818 = vrcp.pop %v1817
          %v1819 = vmul.f32 %v1817, %v1818
          %v1820 = vsub.f32 1.0, %v1819
          %v1821 = vmul.f32 %v1818, %v1820
          %v1822 = vadd.f32 %v1818, %v1821
          %vm1823 = vweird.f32 %v1817
          %vm1824 = vweird.f32 %v1818
          %vm1825 = vmor %vm1823, %vm1824
          %v1826 = vsel %vm1825, %v1818, %v1822
          %v1827 = vand.u32 2147483647, %v1817
          %vm1828 = vcmp.eq.f32.partialorder %v1827, 8.507059e+37
          %v1829 = vand.u32 %v1817, 2147483648
          %v1830 = vor.u32 1.1754944e-38, %v1829
          %v1831 = vsel %vm1828, %v1830, %v1826
          %v1832 = vmul.f32 1.0, %v1831
          %v1833 = vxor.u32 %v1811, 2147483648
          %v1834 = vmul.f32 %v1833, 1.442695
          %v1835 = vpow.pop %v1834
          %v1836 = vadd.f32 %v1835, 1.0
          %v1837 = vrcp.pop %v1836
          %v1838 = vmul.f32 %v1836, %v1837
          %v1839 = vsub.f32 1.0, %v1838
          %v1840 = vmul.f32 %v1837, %v1839
          %v1841 = vadd.f32 %v1837, %v1840
          %vm1842 = vweird.f32 %v1836
          %vm1843 = vweird.f32 %v1837
          %vm1844 = vmor %vm1842, %vm1843
          %v1845 = vsel %vm1844, %v1837, %v1841
          %v1846 = vand.u32 2147483647, %v1836
          %vm1847 = vcmp.eq.f32.partialorder %v1846, 8.507059e+37
          %v1848 = vand.u32 %v1836, 2147483648
          %v1849 = vor.u32 1.1754944e-38, %v1848
          %v1850 = vsel %vm1847, %v1849, %v1845
          %v1851 = vmul.f32 1.0, %v1850
          %v1852 = vtanh.pop %v1812
          %v1853 = vxor.u32 %v1813, 2147483648
          %v1854 = vmul.f32 %v1853, 1.442695
          %v1855 = vpow.pop %v1854
          %v1856 = vadd.f32 %v1855, 1.0
          %v1857 = vrcp.pop %v1856
          %v1858 = vmul.f32 %v1856, %v1857
          %v1859 = vsub.f32 1.0, %v1858
          %v1860 = vmul.f32 %v1857, %v1859
          %v1861 = vadd.f32 %v1857, %v1860
          %vm1862 = vweird.f32 %v1856
          %vm1863 = vweird.f32 %v1857
          %vm1864 = vmor %vm1862, %vm1863
          %v1865 = vsel %vm1864, %v1857, %v1861
          %v1866 = vand.u32 2147483647, %v1856
          %vm1867 = vcmp.eq.f32.partialorder %v1866, 8.507059e+37
          %v1868 = vand.u32 %v1856, 2147483648
          %v1869 = vor.u32 1.1754944e-38, %v1868
          %v1870 = vsel %vm1867, %v1869, %v1865
          %v1871 = vmul.f32 1.0, %v1870
          %v1872 = vmul.f32 %v1851, %v1723
          %v1873 = vmul.f32 %v1832, %v1852
          %v1874 = vadd.f32 %v1872, %v1873
          %v1875 = vtanh.pop %v1874
          %v1876 = vmul.f32 %v1871, %v1875
          %v1877 = vld [vmem:[%s1359 + $0x60] sm:$0xff]
          %v1878 = vld [vmem:[%s1359 + $0x68] sm:$0xff]
          %v1879 = vld [vmem:[%s1359 + $0x70] sm:$0xff]
          %v1880 = vld [vmem:[%s1359 + $0x78] sm:$0xff]
          %1881 = vmatpush.msra.mxu0 %v1424
          %1882 = vmatpush.msra.mxu0 %v1420
          %1883 = vmatpush.msra.mxu0 %v1416
          %1884 = vmatpush.msra.mxu0 %v1412
          %1885 = vmatpush.msra.mxu0 %v1408
          %1886 = vmatpush.msra.mxu0 %v1404
          %1887 = vmatpush.msra.mxu0 %v1400
          %1888 = vmatpush.msra.mxu0 %v1396
          %1889 = vmatpush.msra.mxu0 %v1392
          %1890 = vmatpush.msra.mxu0 %v1388
          %1891 = vmatpush.msra.mxu0 %v1384
          %1892 = vmatpush.msra.mxu0 %v1380
          %1893 = vmatpush.msra.mxu0 %v1376
          %1894 = vmatpush.msra.mxu0 %v1372
          %1895 = vmatpush.msra.mxu0 %v1368
          %1896 = vmatpush.msra.mxu0 %v1364
          %1897 = vmatmul.f32.gmra.mxu0 %v1876
          %v1898 = vpop.f32.mrf.mxu0
          %v1899 = vadd.f32 0.0, %v1898
          %1900 = vdwg.mxu0
          %1901 = vmatpush.msra.mxu0 %v1425
          %1902 = vmatpush.msra.mxu0 %v1421
          %1903 = vmatpush.msra.mxu0 %v1417
          %1904 = vmatpush.msra.mxu0 %v1413
          %1905 = vmatpush.msra.mxu0 %v1409
          %1906 = vmatpush.msra.mxu0 %v1405
          %1907 = vmatpush.msra.mxu0 %v1401
          %1908 = vmatpush.msra.mxu0 %v1397
          %1909 = vmatpush.msra.mxu0 %v1393
          %1910 = vmatpush.msra.mxu0 %v1389
          %1911 = vmatpush.msra.mxu0 %v1385
          %1912 = vmatpush.msra.mxu0 %v1381
          %1913 = vmatpush.msra.mxu0 %v1377
          %1914 = vmatpush.msra.mxu0 %v1373
          %1915 = vmatpush.msra.mxu0 %v1369
          %1916 = vmatpush.msra.mxu0 %v1365
          %1917 = vmatmul.f32.gmra.mxu0 %v1876
          %v1918 = vpop.f32.mrf.mxu0
          %v1919 = vadd.f32 0.0, %v1918
          %1920 = vdwg.mxu0
          %1921 = vmatpush.msra.mxu0 %v1426
          %1922 = vmatpush.msra.mxu0 %v1422
          %1923 = vmatpush.msra.mxu0 %v1418
          %1924 = vmatpush.msra.mxu0 %v1414
          %1925 = vmatpush.msra.mxu0 %v1410
          %1926 = vmatpush.msra.mxu0 %v1406
          %1927 = vmatpush.msra.mxu0 %v1402
          %1928 = vmatpush.msra.mxu0 %v1398
          %1929 = vmatpush.msra.mxu0 %v1394
          %1930 = vmatpush.msra.mxu0 %v1390
          %1931 = vmatpush.msra.mxu0 %v1386
          %1932 = vmatpush.msra.mxu0 %v1382
          %1933 = vmatpush.msra.mxu0 %v1378
          %1934 = vmatpush.msra.mxu0 %v1374
          %1935 = vmatpush.msra.mxu0 %v1370
          %1936 = vmatpush.msra.mxu0 %v1366
          %1937 = vmatmul.f32.gmra.mxu0 %v1876
          %v1938 = vpop.f32.mrf.mxu0
          %v1939 = vadd.f32 0.0, %v1938
          %1940 = vdwg.mxu0
          %1941 = vmatpush.msra.mxu0 %v1427
          %1942 = vmatpush.msra.mxu0 %v1423
          %1943 = vmatpush.msra.mxu0 %v1419
          %1944 = vmatpush.msra.mxu0 %v1415
          %1945 = vmatpush.msra.mxu0 %v1411
          %1946 = vmatpush.msra.mxu0 %v1407
          %1947 = vmatpush.msra.mxu0 %v1403
          %1948 = vmatpush.msra.mxu0 %v1399
          %1949 = vmatpush.msra.mxu0 %v1395
          %1950 = vmatpush.msra.mxu0 %v1391
          %1951 = vmatpush.msra.mxu0 %v1387
          %1952 = vmatpush.msra.mxu0 %v1383
          %1953 = vmatpush.msra.mxu0 %v1379
          %1954 = vmatpush.msra.mxu0 %v1375
          %1955 = vmatpush.msra.mxu0 %v1371
          %1956 = vmatpush.msra.mxu0 %v1367
          %1957 = vmatmul.f32.gmra.mxu0 %v1876
          %v1958 = vpop.f32.mrf.mxu0
          %v1959 = vadd.f32 0.0, %v1958
          %1960 = vdwg.mxu0
          %v1961 = vadd.f32 %v1877, %v1899
          %v1962 = vadd.f32 %v1878, %v1919
          %v1963 = vadd.f32 %v1879, %v1939
          %v1964 = vadd.f32 %v1880, %v1959
          %v1965 = vxor.u32 %v1961, 2147483648
          %v1966 = vmul.f32 %v1965, 1.442695
          %v1967 = vpow.pop %v1966
          %v1968 = vadd.f32 %v1967, 1.0
          %v1969 = vrcp.pop %v1968
          %v1970 = vmul.f32 %v1968, %v1969
          %v1971 = vsub.f32 1.0, %v1970
          %v1972 = vmul.f32 %v1969, %v1971
          %v1973 = vadd.f32 %v1969, %v1972
          %vm1974 = vweird.f32 %v1968
          %vm1975 = vweird.f32 %v1969
          %vm1976 = vmor %vm1974, %vm1975
          %v1977 = vsel %vm1976, %v1969, %v1973
          %v1978 = vand.u32 2147483647, %v1968
          %vm1979 = vcmp.eq.f32.partialorder %v1978, 8.507059e+37
          %v1980 = vand.u32 %v1968, 2147483648
          %v1981 = vor.u32 1.1754944e-38, %v1980
          %v1982 = vsel %vm1979, %v1981, %v1977
          %v1983 = vmul.f32 1.0, %v1982
          %v1984 = vxor.u32 %v1962, 2147483648
          %v1985 = vmul.f32 %v1984, 1.442695
          %v1986 = vpow.pop %v1985
          %v1987 = vadd.f32 %v1986, 1.0
          %v1988 = vrcp.pop %v1987
          %v1989 = vmul.f32 %v1987, %v1988
          %v1990 = vsub.f32 1.0, %v1989
          %v1991 = vmul.f32 %v1988, %v1990
          %v1992 = vadd.f32 %v1988, %v1991
          %vm1993 = vweird.f32 %v1987
          %vm1994 = vweird.f32 %v1988
          %vm1995 = vmor %vm1993, %vm1994
          %v1996 = vsel %vm1995, %v1988, %v1992
          %v1997 = vand.u32 2147483647, %v1987
          %vm1998 = vcmp.eq.f32.partialorder %v1997, 8.507059e+37
          %v1999 = vand.u32 %v1987, 2147483648
          %v2000 = vor.u32 1.1754944e-38, %v1999
          %v2001 = vsel %vm1998, %v2000, %v1996
          %v2002 = vmul.f32 1.0, %v2001
          %v2003 = vtanh.pop %v1963
          %v2004 = vxor.u32 %v1964, 2147483648
          %v2005 = vmul.f32 %v2004, 1.442695
          %v2006 = vpow.pop %v2005
          %v2007 = vadd.f32 %v2006, 1.0
          %v2008 = vrcp.pop %v2007
          %v2009 = vmul.f32 %v2007, %v2008
          %v2010 = vsub.f32 1.0, %v2009
          %v2011 = vmul.f32 %v2008, %v2010
          %v2012 = vadd.f32 %v2008, %v2011
          %vm2013 = vweird.f32 %v2007
          %vm2014 = vweird.f32 %v2008
          %vm2015 = vmor %vm2013, %vm2014
          %v2016 = vsel %vm2015, %v2008, %v2012
          %v2017 = vand.u32 2147483647, %v2007
          %vm2018 = vcmp.eq.f32.partialorder %v2017, 8.507059e+37
          %v2019 = vand.u32 %v2007, 2147483648
          %v2020 = vor.u32 1.1754944e-38, %v2019
          %v2021 = vsel %vm2018, %v2020, %v2016
          %v2022 = vmul.f32 1.0, %v2021
          %v2023 = vmul.f32 %v2002, %v1874
          %v2024 = vmul.f32 %v1983, %v2003
          %v2025 = vadd.f32 %v2023, %v2024
          %v2026 = vtanh.pop %v2025
          %v2027 = vmul.f32 %v2022, %v2026
          %2028 = vst [vmem:[#allocation2] sm:$0xff] %v2027
          %2029 = vst [vmem:[#allocation3] sm:$0xff] %v2025
          %2030 = vst [vmem:[#allocation13] sm:$0xff] %v2027
        $region64: #{tpu_custom_call.1} parent=35 // pred_fallthru
          _
        // Predicated region
        $region65: #{tpu_custom_call.1} parent=35 // pred_check
          %p2031 = pneg %p127
        $region66: #{tpu_custom_call.1} parent=35 // pred_check_branch
          %2033 = sbr.rel (%p2031) target = $region68
        $region67: #{tpu_custom_call.1} parent=35 // pred_region
          %2035 = vsyncadd [#allocation7], 0
          %s2037 = sshll.u32 [#allocation13], 4
          %s2038 = int_to_ptr.vmem [resolvable:$true] %s2037
          %s2039 = sshll.u32 %s4, 4
          %s2040 = int_to_ptr.hbm [resolvable:$true] %s2039
          %2042 = dma.vmem_to_hbm [thread:$0]  %s2038, 128, %s2040, [#allocation7]
        $region68: #{tpu_custom_call.1} parent=35 // pred_fallthru
          _
        // Predicated region
        $region69: #{tpu_custom_call.1} parent=35 // pred_check
          %p2043 = pneg %p127
        $region70: #{tpu_custom_call.1} parent=35 // pred_check_branch
          %2045 = sbr.rel (%p2043) target = $region72
        $region71: #{tpu_custom_call.1} parent=35 // pred_region
          %2047 = dma.done [#allocation7], 128
        $region72: #{tpu_custom_call.1} parent=35 // pred_fallthru
          _
      $region36: #{tpu_custom_call.1} parent=5 // pred_fallthru
        _
      %p2048 = scmp.le.s32.totalorder 2, %s16
      // Predicated region
      $region73: #{tpu_custom_call.1} parent=5 // pred_check
        %p2049 = pneg %p2048
      $region74: #{tpu_custom_call.1} parent=5 // pred_check_branch
        %2051 = sbr.rel (%p2049) target = $region76
      $region75: #{tpu_custom_call.1} parent=5 // pred_region
        %s2052 = ssub.s32 %s16, 2
      $region76: #{tpu_custom_call.1} parent=5 // pred_fallthru
        _
    $region6: #{tpu_custom_call.1} parent=1 // loop_footer
      %s20 = sadd.s32 1, %s16
    $region7: #{tpu_custom_call.1} parent=1 // loop_footer_branch
      %15 = sbr.rel target = $region3
    $region8: #{tpu_custom_call.1} parent=1 // loop_exit
      _
    %2053 = vsyncpa [#allocation6], 1
    %s2054 = scalar_lea.sflag [#allocation6], 1
    %2055 = vsyncpa %s2054, 1
    %2056 = vsyncpa [#allocation9], 1
    %2057 = vsyncpa [#allocation12], 1
    %2058 = vsyncpa [#allocation7], 1
    %s2059 = scalar_lea.sflag [#allocation7], 1
    %2060 = vsyncpa %s2059, 1

</llo_original>
